<compile_context>
chip_gen: v7x
topology: tpu7x:2x2x1
jax: 0.10.0
libtpu: 0.0.40
codegen_flags: <defaults>
</compile_context>

<pallas_src>
import functools

import jax
import jax.numpy as jnp
from jax import lax
from jax.experimental import pallas as pl
from jax.experimental.pallas import tpu as pltpu

# ----- hyperparameters from CnnModel.__init__ -----
WAYS = 2
DIM_CNN_OUT = 128
FILTER_NUM = 32
FILTER_SIZES = (1, 2, 4, 8, 16, 24)
VOCAB_SIZE = 5
EMBED_DIM = 128

# tap bookkeeping for the stacked conv weight
_TAP_BASE = []
_n = 0
for _fsz in FILTER_SIZES:
    _TAP_BASE.append(_n)
    _n += _fsz
TOTAL_TAPS = _n                                   # 55
N_TAPCOLS = TOTAL_TAPS * FILTER_NUM               # 1760
N_TAPPAD = ((N_TAPCOLS + 255) // 256) * 256       # 1792 (256-multiple for MXU)


# ------------------------------------------------------------------
# Fused kernel: gather + 6 convs + ReLU + max-pool + full dense head
# ------------------------------------------------------------------
def _textcnn_kernel(ids_ref, tw_ref, bconv_ref, w1_ref, b1_ref,
                    w2_ref, b2_ref, w34_ref, b34_ref,
                    logits_ref, featcnn_ref, *, B, S):
    C = FILTER_NUM
    V = VOCAB_SIZE

    # ---- embedding gather + every conv tap as ONE wide MXU matmul ----
    ids = ids_ref[...]                                            # (B, S) int32
    onehot = (ids[:, :, None] ==
              lax.broadcasted_iota(jnp.int32, (B, S, V), 2)).astype(jnp.float32)
    y = jnp.dot(onehot.reshape(B * S, V), tw_ref[...],
                preferred_element_type=jnp.float32)               # (B*S, 1792)
    y3 = y.reshape(B, S, N_TAPPAD)

    bconv = bconv_ref[...]                                        # (1, 192)

    # ---- per filter: sum shifted taps (narrow C=32 slabs), bias, ReLU, max ----
    pooled = []
    for f, fsz in enumerate(FILTER_SIZES):
        L = S - fsz + 1
        c0 = _TAP_BASE[f] * C
        acc = y3[:, 0:L, c0:c0 + C]                               # tap 0
        for i in range(1, fsz):                                   # static unroll
            acc = acc + y3[:, i:i + L, c0 + i * C:c0 + (i + 1) * C]
        acc = acc + bconv[:, f * C:(f + 1) * C][:, None, :]
        acc = jnp.maximum(acc, 0.0)                               # ReLU
        pooled.append(jnp.max(acc, axis=1))                       # (B, C)

    # ---- linear_cnn as a sum of row-block matmuls (feat never leaves VMEM) ----
    w1 = w1_ref[...]                                              # (192, 128)
    h = jnp.dot(pooled[0], w1[0:C, :], preferred_element_type=jnp.float32)
    for f in range(1, len(FILTER_SIZES)):
        h = h + jnp.dot(pooled[f], w1[f * C:(f + 1) * C, :],
                        preferred_element_type=jnp.float32)
    h = h + b1_ref[...]                                           # (B, 128)
    featcnn_ref[...] = h

    # ---- fc_task (+ folded classifier) ----
    # TODO(synk): nn.Dropout layers are identity at inference time; omitted.
    t = jnp.maximum(
        jnp.dot(h, w2_ref[...], preferred_element_type=jnp.float32) + b2_ref[...],
        0.0)                                                      # (B, 64)
    logits_ref[...] = (
        jnp.dot(t, w34_ref[...], preferred_element_type=jnp.float32) + b34_ref[...])


def textcnn_forward(fused, input_ids):
    B, S = input_ids.shape
    vmem = pl.BlockSpec(memory_space=pltpu.MemorySpace.VMEM)
    return pl.pallas_call(
        functools.partial(_textcnn_kernel, B=B, S=S),
        out_shape=(jax.ShapeDtypeStruct((B, WAYS), jnp.float32),
                   jax.ShapeDtypeStruct((B, DIM_CNN_OUT), jnp.float32)),
        in_specs=[vmem] * 9,
        out_specs=(vmem, vmem),
    )(input_ids, fused["tw"], fused["b_conv"], fused["w1"], fused["b1"],
      fused["w2"], fused["b2"], fused["w34"], fused["b34"])


# ------------------------------------------------------------------
# Parameter construction (deterministic, synthetic) — PyTorch-like layout
# ------------------------------------------------------------------
def init_params(key):
    keys = jax.random.split(key, 16)
    p = {}
    p["emb_table"] = jax.random.normal(keys[0], (VOCAB_SIZE, EMBED_DIM), jnp.float32)

    conv_w, conv_b = [], []
    for i, fsz in enumerate(FILTER_SIZES):
        fan_in = fsz * EMBED_DIM
        # stored as (fsz, E, C): weight[c, 0, i, e] == w[i, e, c]
        w = jax.random.normal(keys[1 + i], (fsz, EMBED_DIM, FILTER_NUM),
                              jnp.float32) / jnp.sqrt(float(fan_in))
        b = jnp.zeros((FILTER_NUM,), jnp.float32)
        conv_w.append(w)
        conv_b.append(b)
    p["conv_w"], p["conv_b"] = conv_w, conv_b

    def lin(k, fin, fout):
        return jax.random.normal(k, (fin, fout), jnp.float32) / jnp.sqrt(float(fin))

    cat_dim = len(FILTER_SIZES) * FILTER_NUM  # 192
    p["w1"] = lin(keys[8], cat_dim, DIM_CNN_OUT)
    p["b1"] = jnp.zeros((DIM_CNN_OUT,), jnp.float32)
    p["w2"] = lin(keys[9], EMBED_DIM, EMBED_DIM // 2)
    p["b2"] = jnp.zeros((EMBED_DIM // 2,), jnp.float32)
    p["w3"] = lin(keys[10], EMBED_DIM // 2, EMBED_DIM // 4)
    p["b3"] = jnp.zeros((EMBED_DIM // 4,), jnp.float32)
    p["w4"] = lin(keys[11], EMBED_DIM // 4, WAYS)
    p["b4"] = jnp.zeros((WAYS,), jnp.float32)
    return p


def prepare_fused_params(params):
    """One-time host-side algebraic folding for the fused kernel."""
    C, E = FILTER_NUM, EMBED_DIM
    # stack all taps of all filters along the output-channel axis: (E, 1760)
    blocks = []
    for f, fsz in enumerate(FILTER_SIZES):
        w = params["conv_w"][f]                                  # (fsz, E, C)
        blocks.append(jnp.transpose(w, (1, 0, 2)).reshape(E, fsz * C))
    w_all = jnp.concatenate(blocks, axis=1)                      # (E, 1760)
    # fold the embedding table into the conv weight (gather == one-hot matmul)
    tw = params["emb_table"] @ w_all                             # (V, 1760)
    tw = jnp.pad(tw, ((0, 0), (0, N_TAPPAD - N_TAPCOLS)))        # (V, 1792)
    # fold classifier into fc_task's last Linear (no nonlinearity between them)
    w34 = params["w3"] @ params["w4"]                            # (64, 2)
    b34 = params["b3"] @ params["w4"] + params["b4"]             # (2,)
    return {
        "tw": tw,
        "b_conv": jnp.concatenate(params["conv_b"]).reshape(1, -1),  # (1, 192)
        "w1": params["w1"], "b1": params["b1"].reshape(1, -1),
        "w2": params["w2"], "b2": params["b2"].reshape(1, -1),
        "w34": w34, "b34": b34.reshape(1, -1),
    }


# ------------------------------------------------------------------
# Pure-JAX reference (unfused, uses original params) for sanity check
# ------------------------------------------------------------------
def cnn_model_reference(params, input_ids):
    emb = jnp.take(params["emb_table"], input_ids, axis=0)
    B, S, _ = emb.shape
    pooled = []
    for i, fsz in enumerate(FILTER_SIZES):
        L = S - fsz + 1
        w, b = params["conv_w"][i], params["conv_b"][i]
        acc = jnp.zeros((B, L, FILTER_NUM), jnp.float32)
        for t in range(fsz):
            acc = acc + jnp.einsum("ble,ec->blc", emb[:, t:t + L, :], w[t])
        acc = jnp.maximum(acc + b[None, None, :], 0.0)
        pooled.append(jnp.max(acc, axis=1))
    feat = jnp.concatenate(pooled, axis=1)
    h = feat @ params["w1"] + params["b1"]
    t = jnp.maximum(h @ params["w2"] + params["b2"], 0.0)
    t = t @ params["w3"] + params["b3"]
    logits = t @ params["w4"] + params["b4"]
    return logits, h


if __name__ == "__main__":
    key = jax.random.PRNGKey(0)
    k_param, k_ids = jax.random.split(key)

    B, S = 2, 32  # S must be >= max(FILTER_SIZES) = 24
    input_ids = jax.random.randint(k_ids, (B, S), 0, VOCAB_SIZE, dtype=jnp.int32)

    params = init_params(k_param)
    fused = prepare_fused_params(params)

    fwd = jax.jit(textcnn_forward)
    logits, feature_cnn = fwd(fused, input_ids)
    logits = jax.block_until_ready(logits)
    feature_cnn = jax.block_until_ready(feature_cnn)

    ref_logits, ref_feat = cnn_model_reference(params, input_ids)
    assert logits.shape == (B, WAYS)
    assert feature_cnn.shape == (B, DIM_CNN_OUT)
    assert jnp.allclose(logits, ref_logits, atol=1e-3, rtol=1e-3)
    assert jnp.allclose(feature_cnn, ref_feat, atol=1e-3, rtol=1e-3)

    print("KERNEL_OK")
</pallas_src>

<mosaic_0001>
module attributes {stable_mosaic.version = 11 : i64} {
  func.func @_textcnn_kernel(%arg0: memref<2x32xi32, #tpu.memory_space<vmem>>, %arg1: memref<5x1792xf32, #tpu.memory_space<vmem>>, %arg2: memref<1x192xf32, #tpu.memory_space<vmem>>, %arg3: memref<192x128xf32, #tpu.memory_space<vmem>>, %arg4: memref<1x128xf32, #tpu.memory_space<vmem>>, %arg5: memref<128x64xf32, #tpu.memory_space<vmem>>, %arg6: memref<1x64xf32, #tpu.memory_space<vmem>>, %arg7: memref<64x2xf32, #tpu.memory_space<vmem>>, %arg8: memref<1x2xf32, #tpu.memory_space<vmem>>, %arg9: memref<2x2xf32, #tpu.memory_space<vmem>>, %arg10: memref<2x128xf32, #tpu.memory_space<vmem>>) attributes {dimension_semantics = [], scalar_prefetch = 0 : i64, scratch_operands = 0 : i64, tpu.core_type = #tpu.core_type<tc>} {
    %c0 = arith.constant 0 : index
    %c0_0 = arith.constant 0 : index
    %0 = vector.load %arg0[%c0, %c0_0] : memref<2x32xi32, #tpu.memory_space<vmem>>, vector<2x32xi32>
    %1 = vector.shape_cast %0 : vector<2x32xi32> to vector<2x32x1xi32>
    %2 = tpu.iota {dimensions = array<i32: 2>} : vector<2x32x5xi32>
    %3 = vector.broadcast %1 : vector<2x32x1xi32> to vector<2x32x5xi32>
    %4 = arith.cmpi eq, %3, %2 : vector<2x32x5xi32>
    %5 = arith.extui %4 : vector<2x32x5xi1> to vector<2x32x5xi32>
    %6 = arith.sitofp %5 : vector<2x32x5xi32> to vector<2x32x5xf32>
    %7 = vector.shape_cast %6 : vector<2x32x5xf32> to vector<64x5xf32>
    %c0_1 = arith.constant 0 : index
    %c0_2 = arith.constant 0 : index
    %8 = vector.load %arg1[%c0_1, %c0_2] : memref<5x1792xf32, #tpu.memory_space<vmem>>, vector<5x1792xf32>
    %cst = arith.constant dense<0.000000e+00> : vector<64x1792xf32>
    %9 = tpu.matmul %7, %8, %cst {dimension_numbers = #tpu.dot_dimension_numbers<[1], [0], [0], [1], [0, 0, 1, 1], [], []>} : vector<64x5xf32>, vector<5x1792xf32>, vector<64x1792xf32> -> vector<64x1792xf32>
    %10 = vector.shape_cast %9 : vector<64x1792xf32> to vector<2x32x1792xf32>
    %c0_3 = arith.constant 0 : index
    %c0_4 = arith.constant 0 : index
    %11 = vector.load %arg2[%c0_3, %c0_4] : memref<1x192xf32, #tpu.memory_space<vmem>>, vector<1x192xf32>
    %12 = vector.extract_strided_slice %10 {offsets = [0, 0, 0], sizes = [2, 32, 32], strides = [1, 1, 1]} : vector<2x32x1792xf32> to vector<2x32x32xf32>
    %13 = vector.extract_strided_slice %11 {offsets = [0, 0], sizes = [1, 32], strides = [1, 1]} : vector<1x192xf32> to vector<1x32xf32>
    %14 = vector.shape_cast %13 : vector<1x32xf32> to vector<1x1x32xf32>
    %15 = vector.broadcast %14 : vector<1x1x32xf32> to vector<2x32x32xf32>
    %16 = arith.addf %12, %15 : vector<2x32x32xf32>
    %cst_5 = arith.constant 0.000000e+00 : f32
    %17 = vector.broadcast %cst_5 : f32 to vector<2x32x32xf32>
    %18 = arith.maximumf %16, %17 : vector<2x32x32xf32>
    %cst_6 = arith.constant dense<0xFF800000> : vector<2x32xf32>
    %19 = vector.multi_reduction <maximumf>, %18, %cst_6 [1] : vector<2x32x32xf32> to vector<2x32xf32>
    %20 = vector.extract_strided_slice %10 {offsets = [0, 0, 32], sizes = [2, 31, 32], strides = [1, 1, 1]} : vector<2x32x1792xf32> to vector<2x31x32xf32>
    %21 = vector.extract_strided_slice %10 {offsets = [0, 1, 64], sizes = [2, 31, 32], strides = [1, 1, 1]} : vector<2x32x1792xf32> to vector<2x31x32xf32>
    %22 = arith.addf %20, %21 : vector<2x31x32xf32>
    %23 = vector.extract_strided_slice %11 {offsets = [0, 32], sizes = [1, 32], strides = [1, 1]} : vector<1x192xf32> to vector<1x32xf32>
    %24 = vector.shape_cast %23 : vector<1x32xf32> to vector<1x1x32xf32>
    %25 = vector.broadcast %24 : vector<1x1x32xf32> to vector<2x31x32xf32>
    %26 = arith.addf %22, %25 : vector<2x31x32xf32>
    %cst_7 = arith.constant 0.000000e+00 : f32
    %27 = vector.broadcast %cst_7 : f32 to vector<2x31x32xf32>
    %28 = arith.maximumf %26, %27 : vector<2x31x32xf32>
    %cst_8 = arith.constant dense<0xFF800000> : vector<2x32xf32>
    %29 = vector.multi_reduction <maximumf>, %28, %cst_8 [1] : vector<2x31x32xf32> to vector<2x32xf32>
    %30 = vector.extract_strided_slice %10 {offsets = [0, 0, 96], sizes = [2, 29, 32], strides = [1, 1, 1]} : vector<2x32x1792xf32> to vector<2x29x32xf32>
    %31 = vector.extract_strided_slice %10 {offsets = [0, 1, 128], sizes = [2, 29, 32], strides = [1, 1, 1]} : vector<2x32x1792xf32> to vector<2x29x32xf32>
    %32 = arith.addf %30, %31 : vector<2x29x32xf32>
    %33 = vector.extract_strided_slice %10 {offsets = [0, 2, 160], sizes = [2, 29, 32], strides = [1, 1, 1]} : vector<2x32x1792xf32> to vector<2x29x32xf32>
    %34 = arith.addf %32, %33 : vector<2x29x32xf32>
    %35 = vector.extract_strided_slice %10 {offsets = [0, 3, 192], sizes = [2, 29, 32], strides = [1, 1, 1]} : vector<2x32x1792xf32> to vector<2x29x32xf32>
    %36 = arith.addf %34, %35 : vector<2x29x32xf32>
    %37 = vector.extract_strided_slice %11 {offsets = [0, 64], sizes = [1, 32], strides = [1, 1]} : vector<1x192xf32> to vector<1x32xf32>
    %38 = vector.shape_cast %37 : vector<1x32xf32> to vector<1x1x32xf32>
    %39 = vector.broadcast %38 : vector<1x1x32xf32> to vector<2x29x32xf32>
    %40 = arith.addf %36, %39 : vector<2x29x32xf32>
    %cst_9 = arith.constant 0.000000e+00 : f32
    %41 = vector.broadcast %cst_9 : f32 to vector<2x29x32xf32>
    %42 = arith.maximumf %40, %41 : vector<2x29x32xf32>
    %cst_10 = arith.constant dense<0xFF800000> : vector<2x32xf32>
    %43 = vector.multi_reduction <maximumf>, %42, %cst_10 [1] : vector<2x29x32xf32> to vector<2x32xf32>
    %44 = vector.extract_strided_slice %10 {offsets = [0, 0, 224], sizes = [2, 25, 32], strides = [1, 1, 1]} : vector<2x32x1792xf32> to vector<2x25x32xf32>
    %45 = vector.extract_strided_slice %10 {offsets = [0, 1, 256], sizes = [2, 25, 32], strides = [1, 1, 1]} : vector<2x32x1792xf32> to vector<2x25x32xf32>
    %46 = arith.addf %44, %45 : vector<2x25x32xf32>
    %47 = vector.extract_strided_slice %10 {offsets = [0, 2, 288], sizes = [2, 25, 32], strides = [1, 1, 1]} : vector<2x32x1792xf32> to vector<2x25x32xf32>
    %48 = arith.addf %46, %47 : vector<2x25x32xf32>
    %49 = vector.extract_strided_slice %10 {offsets = [0, 3, 320], sizes = [2, 25, 32], strides = [1, 1, 1]} : vector<2x32x1792xf32> to vector<2x25x32xf32>
    %50 = arith.addf %48, %49 : vector<2x25x32xf32>
    %51 = vector.extract_strided_slice %10 {offsets = [0, 4, 352], sizes = [2, 25, 32], strides = [1, 1, 1]} : vector<2x32x1792xf32> to vector<2x25x32xf32>
    %52 = arith.addf %50, %51 : vector<2x25x32xf32>
    %53 = vector.extract_strided_slice %10 {offsets = [0, 5, 384], sizes = [2, 25, 32], strides = [1, 1, 1]} : vector<2x32x1792xf32> to vector<2x25x32xf32>
    %54 = arith.addf %52, %53 : vector<2x25x32xf32>
    %55 = vector.extract_strided_slice %10 {offsets = [0, 6, 416], sizes = [2, 25, 32], strides = [1, 1, 1]} : vector<2x32x1792xf32> to vector<2x25x32xf32>
    %56 = arith.addf %54, %55 : vector<2x25x32xf32>
    %57 = vector.extract_strided_slice %10 {offsets = [0, 7, 448], sizes = [2, 25, 32], strides = [1, 1, 1]} : vector<2x32x1792xf32> to vector<2x25x32xf32>
    %58 = arith.addf %56, %57 : vector<2x25x32xf32>
    %59 = vector.extract_strided_slice %11 {offsets = [0, 96], sizes = [1, 32], strides = [1, 1]} : vector<1x192xf32> to vector<1x32xf32>
    %60 = vector.shape_cast %59 : vector<1x32xf32> to vector<1x1x32xf32>
    %61 = vector.broadcast %60 : vector<1x1x32xf32> to vector<2x25x32xf32>
    %62 = arith.addf %58, %61 : vector<2x25x32xf32>
    %cst_11 = arith.constant 0.000000e+00 : f32
    %63 = vector.broadcast %cst_11 : f32 to vector<2x25x32xf32>
    %64 = arith.maximumf %62, %63 : vector<2x25x32xf32>
    %cst_12 = arith.constant dense<0xFF800000> : vector<2x32xf32>
    %65 = vector.multi_reduction <maximumf>, %64, %cst_12 [1] : vector<2x25x32xf32> to vector<2x32xf32>
    %66 = vector.extract_strided_slice %10 {offsets = [0, 0, 480], sizes = [2, 17, 32], strides = [1, 1, 1]} : vector<2x32x1792xf32> to vector<2x17x32xf32>
    %67 = vector.extract_strided_slice %10 {offsets = [0, 1, 512], sizes = [2, 17, 32], strides = [1, 1, 1]} : vector<2x32x1792xf32> to vector<2x17x32xf32>
    %68 = arith.addf %66, %67 : vector<2x17x32xf32>
    %69 = vector.extract_strided_slice %10 {offsets = [0, 2, 544], sizes = [2, 17, 32], strides = [1, 1, 1]} : vector<2x32x1792xf32> to vector<2x17x32xf32>
    %70 = arith.addf %68, %69 : vector<2x17x32xf32>
    %71 = vector.extract_strided_slice %10 {offsets = [0, 3, 576], sizes = [2, 17, 32], strides = [1, 1, 1]} : vector<2x32x1792xf32> to vector<2x17x32xf32>
    %72 = arith.addf %70, %71 : vector<2x17x32xf32>
    %73 = vector.extract_strided_slice %10 {offsets = [0, 4, 608], sizes = [2, 17, 32], strides = [1, 1, 1]} : vector<2x32x1792xf32> to vector<2x17x32xf32>
    %74 = arith.addf %72, %73 : vector<2x17x32xf32>
    %75 = vector.extract_strided_slice %10 {offsets = [0, 5, 640], sizes = [2, 17, 32], strides = [1, 1, 1]} : vector<2x32x1792xf32> to vector<2x17x32xf32>
    %76 = arith.addf %74, %75 : vector<2x17x32xf32>
    %77 = vector.extract_strided_slice %10 {offsets = [0, 6, 672], sizes = [2, 17, 32], strides = [1, 1, 1]} : vector<2x32x1792xf32> to vector<2x17x32xf32>
    %78 = arith.addf %76, %77 : vector<2x17x32xf32>
    %79 = vector.extract_strided_slice %10 {offsets = [0, 7, 704], sizes = [2, 17, 32], strides = [1, 1, 1]} : vector<2x32x1792xf32> to vector<2x17x32xf32>
    %80 = arith.addf %78, %79 : vector<2x17x32xf32>
    %81 = vector.extract_strided_slice %10 {offsets = [0, 8, 736], sizes = [2, 17, 32], strides = [1, 1, 1]} : vector<2x32x1792xf32> to vector<2x17x32xf32>
    %82 = arith.addf %80, %81 : vector<2x17x32xf32>
    %83 = vector.extract_strided_slice %10 {offsets = [0, 9, 768], sizes = [2, 17, 32], strides = [1, 1, 1]} : vector<2x32x1792xf32> to vector<2x17x32xf32>
    %84 = arith.addf %82, %83 : vector<2x17x32xf32>
    %85 = vector.extract_strided_slice %10 {offsets = [0, 10, 800], sizes = [2, 17, 32], strides = [1, 1, 1]} : vector<2x32x1792xf32> to vector<2x17x32xf32>
    %86 = arith.addf %84, %85 : vector<2x17x32xf32>
    %87 = vector.extract_strided_slice %10 {offsets = [0, 11, 832], sizes = [2, 17, 32], strides = [1, 1, 1]} : vector<2x32x1792xf32> to vector<2x17x32xf32>
    %88 = arith.addf %86, %87 : vector<2x17x32xf32>
    %89 = vector.extract_strided_slice %10 {offsets = [0, 12, 864], sizes = [2, 17, 32], strides = [1, 1, 1]} : vector<2x32x1792xf32> to vector<2x17x32xf32>
    %90 = arith.addf %88, %89 : vector<2x17x32xf32>
    %91 = vector.extract_strided_slice %10 {offsets = [0, 13, 896], sizes = [2, 17, 32], strides = [1, 1, 1]} : vector<2x32x1792xf32> to vector<2x17x32xf32>
    %92 = arith.addf %90, %91 : vector<2x17x32xf32>
    %93 = vector.extract_strided_slice %10 {offsets = [0, 14, 928], sizes = [2, 17, 32], strides = [1, 1, 1]} : vector<2x32x1792xf32> to vector<2x17x32xf32>
    %94 = arith.addf %92, %93 : vector<2x17x32xf32>
    %95 = vector.extract_strided_slice %10 {offsets = [0, 15, 960], sizes = [2, 17, 32], strides = [1, 1, 1]} : vector<2x32x1792xf32> to vector<2x17x32xf32>
    %96 = arith.addf %94, %95 : vector<2x17x32xf32>
    %97 = vector.extract_strided_slice %11 {offsets = [0, 128], sizes = [1, 32], strides = [1, 1]} : vector<1x192xf32> to vector<1x32xf32>
    %98 = vector.shape_cast %97 : vector<1x32xf32> to vector<1x1x32xf32>
    %99 = vector.broadcast %98 : vector<1x1x32xf32> to vector<2x17x32xf32>
    %100 = arith.addf %96, %99 : vector<2x17x32xf32>
    %cst_13 = arith.constant 0.000000e+00 : f32
    %101 = vector.broadcast %cst_13 : f32 to vector<2x17x32xf32>
    %102 = arith.maximumf %100, %101 : vector<2x17x32xf32>
    %cst_14 = arith.constant dense<0xFF800000> : vector<2x32xf32>
    %103 = vector.multi_reduction <maximumf>, %102, %cst_14 [1] : vector<2x17x32xf32> to vector<2x32xf32>
    %104 = vector.extract_strided_slice %10 {offsets = [0, 0, 992], sizes = [2, 9, 32], strides = [1, 1, 1]} : vector<2x32x1792xf32> to vector<2x9x32xf32>
    %105 = vector.extract_strided_slice %10 {offsets = [0, 1, 1024], sizes = [2, 9, 32], strides = [1, 1, 1]} : vector<2x32x1792xf32> to vector<2x9x32xf32>
    %106 = arith.addf %104, %105 : vector<2x9x32xf32>
    %107 = vector.extract_strided_slice %10 {offsets = [0, 2, 1056], sizes = [2, 9, 32], strides = [1, 1, 1]} : vector<2x32x1792xf32> to vector<2x9x32xf32>
    %108 = arith.addf %106, %107 : vector<2x9x32xf32>
    %109 = vector.extract_strided_slice %10 {offsets = [0, 3, 1088], sizes = [2, 9, 32], strides = [1, 1, 1]} : vector<2x32x1792xf32> to vector<2x9x32xf32>
    %110 = arith.addf %108, %109 : vector<2x9x32xf32>
    %111 = vector.extract_strided_slice %10 {offsets = [0, 4, 1120], sizes = [2, 9, 32], strides = [1, 1, 1]} : vector<2x32x1792xf32> to vector<2x9x32xf32>
    %112 = arith.addf %110, %111 : vector<2x9x32xf32>
    %113 = vector.extract_strided_slice %10 {offsets = [0, 5, 1152], sizes = [2, 9, 32], strides = [1, 1, 1]} : vector<2x32x1792xf32> to vector<2x9x32xf32>
    %114 = arith.addf %112, %113 : vector<2x9x32xf32>
    %115 = vector.extract_strided_slice %10 {offsets = [0, 6, 1184], sizes = [2, 9, 32], strides = [1, 1, 1]} : vector<2x32x1792xf32> to vector<2x9x32xf32>
    %116 = arith.addf %114, %115 : vector<2x9x32xf32>
    %117 = vector.extract_strided_slice %10 {offsets = [0, 7, 1216], sizes = [2, 9, 32], strides = [1, 1, 1]} : vector<2x32x1792xf32> to vector<2x9x32xf32>
    %118 = arith.addf %116, %117 : vector<2x9x32xf32>
    %119 = vector.extract_strided_slice %10 {offsets = [0, 8, 1248], sizes = [2, 9, 32], strides = [1, 1, 1]} : vector<2x32x1792xf32> to vector<2x9x32xf32>
    %120 = arith.addf %118, %119 : vector<2x9x32xf32>
    %121 = vector.extract_strided_slice %10 {offsets = [0, 9, 1280], sizes = [2, 9, 32], strides = [1, 1, 1]} : vector<2x32x1792xf32> to vector<2x9x32xf32>
    %122 = arith.addf %120, %121 : vector<2x9x32xf32>
    %123 = vector.extract_strided_slice %10 {offsets = [0, 10, 1312], sizes = [2, 9, 32], strides = [1, 1, 1]} : vector<2x32x1792xf32> to vector<2x9x32xf32>
    %124 = arith.addf %122, %123 : vector<2x9x32xf32>
    %125 = vector.extract_strided_slice %10 {offsets = [0, 11, 1344], sizes = [2, 9, 32], strides = [1, 1, 1]} : vector<2x32x1792xf32> to vector<2x9x32xf32>
    %126 = arith.addf %124, %125 : vector<2x9x32xf32>
    %127 = vector.extract_strided_slice %10 {offsets = [0, 12, 1376], sizes = [2, 9, 32], strides = [1, 1, 1]} : vector<2x32x1792xf32> to vector<2x9x32xf32>
    %128 = arith.addf %126, %127 : vector<2x9x32xf32>
    %129 = vector.extract_strided_slice %10 {offsets = [0, 13, 1408], sizes = [2, 9, 32], strides = [1, 1, 1]} : vector<2x32x1792xf32> to vector<2x9x32xf32>
    %130 = arith.addf %128, %129 : vector<2x9x32xf32>
    %131 = vector.extract_strided_slice %10 {offsets = [0, 14, 1440], sizes = [2, 9, 32], strides = [1, 1, 1]} : vector<2x32x1792xf32> to vector<2x9x32xf32>
    %132 = arith.addf %130, %131 : vector<2x9x32xf32>
    %133 = vector.extract_strided_slice %10 {offsets = [0, 15, 1472], sizes = [2, 9, 32], strides = [1, 1, 1]} : vector<2x32x1792xf32> to vector<2x9x32xf32>
    %134 = arith.addf %132, %133 : vector<2x9x32xf32>
    %135 = vector.extract_strided_slice %10 {offsets = [0, 16, 1504], sizes = [2, 9, 32], strides = [1, 1, 1]} : vector<2x32x1792xf32> to vector<2x9x32xf32>
    %136 = arith.addf %134, %135 : vector<2x9x32xf32>
    %137 = vector.extract_strided_slice %10 {offsets = [0, 17, 1536], sizes = [2, 9, 32], strides = [1, 1, 1]} : vector<2x32x1792xf32> to vector<2x9x32xf32>
    %138 = arith.addf %136, %137 : vector<2x9x32xf32>
    %139 = vector.extract_strided_slice %10 {offsets = [0, 18, 1568], sizes = [2, 9, 32], strides = [1, 1, 1]} : vector<2x32x1792xf32> to vector<2x9x32xf32>
    %140 = arith.addf %138, %139 : vector<2x9x32xf32>
    %141 = vector.extract_strided_slice %10 {offsets = [0, 19, 1600], sizes = [2, 9, 32], strides = [1, 1, 1]} : vector<2x32x1792xf32> to vector<2x9x32xf32>
    %142 = arith.addf %140, %141 : vector<2x9x32xf32>
    %143 = vector.extract_strided_slice %10 {offsets = [0, 20, 1632], sizes = [2, 9, 32], strides = [1, 1, 1]} : vector<2x32x1792xf32> to vector<2x9x32xf32>
    %144 = arith.addf %142, %143 : vector<2x9x32xf32>
    %145 = vector.extract_strided_slice %10 {offsets = [0, 21, 1664], sizes = [2, 9, 32], strides = [1, 1, 1]} : vector<2x32x1792xf32> to vector<2x9x32xf32>
    %146 = arith.addf %144, %145 : vector<2x9x32xf32>
    %147 = vector.extract_strided_slice %10 {offsets = [0, 22, 1696], sizes = [2, 9, 32], strides = [1, 1, 1]} : vector<2x32x1792xf32> to vector<2x9x32xf32>
    %148 = arith.addf %146, %147 : vector<2x9x32xf32>
    %149 = vector.extract_strided_slice %10 {offsets = [0, 23, 1728], sizes = [2, 9, 32], strides = [1, 1, 1]} : vector<2x32x1792xf32> to vector<2x9x32xf32>
    %150 = arith.addf %148, %149 : vector<2x9x32xf32>
    %151 = vector.extract_strided_slice %11 {offsets = [0, 160], sizes = [1, 32], strides = [1, 1]} : vector<1x192xf32> to vector<1x32xf32>
    %152 = vector.shape_cast %151 : vector<1x32xf32> to vector<1x1x32xf32>
    %153 = vector.broadcast %152 : vector<1x1x32xf32> to vector<2x9x32xf32>
    %154 = arith.addf %150, %153 : vector<2x9x32xf32>
    %cst_15 = arith.constant 0.000000e+00 : f32
    %155 = vector.broadcast %cst_15 : f32 to vector<2x9x32xf32>
    %156 = arith.maximumf %154, %155 : vector<2x9x32xf32>
    %cst_16 = arith.constant dense<0xFF800000> : vector<2x32xf32>
    %157 = vector.multi_reduction <maximumf>, %156, %cst_16 [1] : vector<2x9x32xf32> to vector<2x32xf32>
    %c0_17 = arith.constant 0 : index
    %c0_18 = arith.constant 0 : index
    %158 = vector.load %arg3[%c0_17, %c0_18] : memref<192x128xf32, #tpu.memory_space<vmem>>, vector<192x128xf32>
    %159 = vector.extract_strided_slice %158 {offsets = [0, 0], sizes = [32, 128], strides = [1, 1]} : vector<192x128xf32> to vector<32x128xf32>
    %cst_19 = arith.constant dense<0.000000e+00> : vector<2x128xf32>
    %160 = tpu.matmul %19, %159, %cst_19 {dimension_numbers = #tpu.dot_dimension_numbers<[1], [0], [0], [1], [0, 0, 1, 1], [], []>} : vector<2x32xf32>, vector<32x128xf32>, vector<2x128xf32> -> vector<2x128xf32>
    %161 = vector.extract_strided_slice %158 {offsets = [32, 0], sizes = [32, 128], strides = [1, 1]} : vector<192x128xf32> to vector<32x128xf32>
    %cst_20 = arith.constant dense<0.000000e+00> : vector<2x128xf32>
    %162 = tpu.matmul %29, %161, %cst_20 {dimension_numbers = #tpu.dot_dimension_numbers<[1], [0], [0], [1], [0, 0, 1, 1], [], []>} : vector<2x32xf32>, vector<32x128xf32>, vector<2x128xf32> -> vector<2x128xf32>
    %163 = arith.addf %160, %162 : vector<2x128xf32>
    %164 = vector.extract_strided_slice %158 {offsets = [64, 0], sizes = [32, 128], strides = [1, 1]} : vector<192x128xf32> to vector<32x128xf32>
    %cst_21 = arith.constant dense<0.000000e+00> : vector<2x128xf32>
    %165 = tpu.matmul %43, %164, %cst_21 {dimension_numbers = #tpu.dot_dimension_numbers<[1], [0], [0], [1], [0, 0, 1, 1], [], []>} : vector<2x32xf32>, vector<32x128xf32>, vector<2x128xf32> -> vector<2x128xf32>
    %166 = arith.addf %163, %165 : vector<2x128xf32>
    %167 = vector.extract_strided_slice %158 {offsets = [96, 0], sizes = [32, 128], strides = [1, 1]} : vector<192x128xf32> to vector<32x128xf32>
    %cst_22 = arith.constant dense<0.000000e+00> : vector<2x128xf32>
    %168 = tpu.matmul %65, %167, %cst_22 {dimension_numbers = #tpu.dot_dimension_numbers<[1], [0], [0], [1], [0, 0, 1, 1], [], []>} : vector<2x32xf32>, vector<32x128xf32>, vector<2x128xf32> -> vector<2x128xf32>
    %169 = arith.addf %166, %168 : vector<2x128xf32>
    %170 = vector.extract_strided_slice %158 {offsets = [128, 0], sizes = [32, 128], strides = [1, 1]} : vector<192x128xf32> to vector<32x128xf32>
    %cst_23 = arith.constant dense<0.000000e+00> : vector<2x128xf32>
    %171 = tpu.matmul %103, %170, %cst_23 {dimension_numbers = #tpu.dot_dimension_numbers<[1], [0], [0], [1], [0, 0, 1, 1], [], []>} : vector<2x32xf32>, vector<32x128xf32>, vector<2x128xf32> -> vector<2x128xf32>
    %172 = arith.addf %169, %171 : vector<2x128xf32>
    %173 = vector.extract_strided_slice %158 {offsets = [160, 0], sizes = [32, 128], strides = [1, 1]} : vector<192x128xf32> to vector<32x128xf32>
    %cst_24 = arith.constant dense<0.000000e+00> : vector<2x128xf32>
    %174 = tpu.matmul %157, %173, %cst_24 {dimension_numbers = #tpu.dot_dimension_numbers<[1], [0], [0], [1], [0, 0, 1, 1], [], []>} : vector<2x32xf32>, vector<32x128xf32>, vector<2x128xf32> -> vector<2x128xf32>
    %175 = arith.addf %172, %174 : vector<2x128xf32>
    %c0_25 = arith.constant 0 : index
    %c0_26 = arith.constant 0 : index
    %176 = vector.load %arg4[%c0_25, %c0_26] : memref<1x128xf32, #tpu.memory_space<vmem>>, vector<1x128xf32>
    %177 = vector.broadcast %176 : vector<1x128xf32> to vector<2x128xf32>
    %178 = arith.addf %175, %177 : vector<2x128xf32>
    %c0_27 = arith.constant 0 : index
    %c0_28 = arith.constant 0 : index
    %179 = vector.load %arg10[%c0_27, %c0_28] : memref<2x128xf32, #tpu.memory_space<vmem>>, vector<2x128xf32>
    tpu.vector_store %arg10[%c0_27, %c0_28], %178 {strides = array<i32>} : memref<2x128xf32, #tpu.memory_space<vmem>>, vector<2x128xf32>,
    %c0_29 = arith.constant 0 : index
    %c0_30 = arith.constant 0 : index
    %180 = vector.load %arg5[%c0_29, %c0_30] : memref<128x64xf32, #tpu.memory_space<vmem>>, vector<128x64xf32>
    %cst_31 = arith.constant dense<0.000000e+00> : vector<2x64xf32>
    %181 = tpu.matmul %178, %180, %cst_31 {dimension_numbers = #tpu.dot_dimension_numbers<[1], [0], [0], [1], [0, 0, 1, 1], [], []>} : vector<2x128xf32>, vector<128x64xf32>, vector<2x64xf32> -> vector<2x64xf32>
    %c0_32 = arith.constant 0 : index
    %c0_33 = arith.constant 0 : index
    %182 = vector.load %arg6[%c0_32, %c0_33] : memref<1x64xf32, #tpu.memory_space<vmem>>, vector<1x64xf32>
    %183 = vector.broadcast %182 : vector<1x64xf32> to vector<2x64xf32>
    %184 = arith.addf %181, %183 : vector<2x64xf32>
    %cst_34 = arith.constant 0.000000e+00 : f32
    %185 = vector.broadcast %cst_34 : f32 to vector<2x64xf32>
    %186 = arith.maximumf %184, %185 : vector<2x64xf32>
    %c0_35 = arith.constant 0 : index
    %c0_36 = arith.constant 0 : index
    %187 = vector.load %arg7[%c0_35, %c0_36] : memref<64x2xf32, #tpu.memory_space<vmem>>, vector<64x2xf32>
    %cst_37 = arith.constant dense<0.000000e+00> : vector<2x2xf32>
    %188 = tpu.matmul %186, %187, %cst_37 {dimension_numbers = #tpu.dot_dimension_numbers<[1], [0], [0], [1], [0, 0, 1, 1], [], []>} : vector<2x64xf32>, vector<64x2xf32>, vector<2x2xf32> -> vector<2x2xf32>
    %c0_38 = arith.constant 0 : index
    %c0_39 = arith.constant 0 : index
    %189 = vector.load %arg8[%c0_38, %c0_39] : memref<1x2xf32, #tpu.memory_space<vmem>>, vector<1x2xf32>
    %190 = vector.broadcast %189 : vector<1x2xf32> to vector<2x2xf32>
    %191 = arith.addf %188, %190 : vector<2x2xf32>
    %c0_40 = arith.constant 0 : index
    %c0_41 = arith.constant 0 : index
    %192 = vector.load %arg9[%c0_40, %c0_41] : memref<2x2xf32, #tpu.memory_space<vmem>>, vector<2x2xf32>
    tpu.vector_store %arg9[%c0_40, %c0_41], %191 {strides = array<i32>} : memref<2x2xf32, #tpu.memory_space<vmem>>, vector<2x2xf32>,
    return
  }
}

</mosaic_0001>

<llo_original>
// kernel: textcnn_forward.1
$region0: #{textcnn_forward.1}
  #allocation0 [shape = 'u32[]', space=smem, size = 0x4, offset = 0x4, fixed_abs, tag = 'smem constant byte address 0x4 - core index']
  #allocation1 [shape = 'u32[144,128]{1,0:T(1,128)}', space=vmem, size = 0x12000, scoped, tag = 'internal scratch']
  %s0 = inlined_call_operand.vmem [shape: s32[2,32], index: 0, kind: input, shape index: {}]
  %s1 = inlined_call_operand.hbm [shape: f32[5,1792], index: 1, kind: input, shape index: {}]
  %s2 = inlined_call_operand.vmem [shape: f32[1,192], index: 2, kind: input, shape index: {}]
  %s3 = inlined_call_operand.vmem [shape: f32[192,128], index: 3, kind: input, shape index: {}]
  %s4 = inlined_call_operand.vmem [shape: f32[1,128], index: 4, kind: input, shape index: {}]
  %s5 = inlined_call_operand.vmem [shape: f32[128,64], index: 5, kind: input, shape index: {}]
  %s6 = inlined_call_operand.vmem [shape: f32[1,64], index: 6, kind: input, shape index: {}]
  %s7 = inlined_call_operand.vmem [shape: f32[64,2], index: 7, kind: input, shape index: {}]
  %s8 = inlined_call_operand.vmem [shape: f32[1,2], index: 8, kind: input, shape index: {}]
  %s9 = inlined_call_operand.hbm [shape: f32[2,2], index: 9, kind: output, shape index: {0}]
  %s10 = inlined_call_operand.hbm [shape: f32[2,128], index: 10, kind: output, shape index: {1}]
  %11 = xla_tuple %s9, %s10
  %s12 = sld [smem:[#allocation0]]
  $region58: #{textcnn_forward.1} parent=0
    _
  %s14 = ssub.s32 1, %s12
  %s15 = scalar_select 0, %s14, %s12
  $region1: #{textcnn_forward.1} parent=0
    #allocation2 [shape = 'u8[57344]{0}', space=vmem, size = 0xe000, scoped, tag = 'input window, operand 1, single buffered']
    #allocation3 [shape = 's32[1]{0}', space=sflag, size = 0x4, scoped, tag = 'scoped memory for textcnn_forward.1']
    #allocation4 [shape = 's32[1]{0}', space=sflag, size = 0x4, scoped, tag = 'scoped memory for textcnn_forward.1']
    #allocation5 [shape = 'u8[1024]{0}', space=vmem, size = 0x400, scoped, tag = 'output window, operand 0, single buffered']
    #allocation6 [shape = 'u8[1024]{0}', space=vmem, size = 0x400, scoped, tag = 'output window, operand 1, single buffered']
    #allocation7 [shape = 's32[1]{0}', space=sflag, size = 0x4, scoped, tag = 'scoped memory for textcnn_forward.1']
    %16 = vsyncpa [#allocation3], 0
    %17 = vsyncpa [#allocation4], 0
    %18 = vsyncpa [#allocation7], 0
    // Predicated region
    $region2: #{textcnn_forward.1} parent=1 // pred_check
      _
    $region3: #{textcnn_forward.1} parent=1 // pred_check_branch
      %20 = sbr.rel (0) target = $region5
    $region4: #{textcnn_forward.1} parent=1 // pred_region
      _
    $region5: #{textcnn_forward.1} parent=1 // pred_fallthru
      _
    // Predicated region
    $region6: #{textcnn_forward.1} parent=1 // pred_check
      _
    $region7: #{textcnn_forward.1} parent=1 // pred_check_branch
      %22 = sbr.rel (0) target = $region9
    $region8: #{textcnn_forward.1} parent=1 // pred_region
      %s24 = ssub.s32 1792, 1792
      %25 = vsyncadd [#allocation3], %s24
      %s27 = sshll.u32 [#allocation2], 4
      %s28 = int_to_ptr.vmem [resolvable:$true] %s27
      %30 = dma.hbm_to_vmem [thread:$0]  %s1, 1792, %s28, [#allocation3]
    $region9: #{textcnn_forward.1} parent=1 // pred_fallthru
      _
    // Predicated region
    $region10: #{textcnn_forward.1} parent=1 // pred_check
      _
    $region11: #{textcnn_forward.1} parent=1 // pred_check_branch
      %32 = sbr.rel (0) target = $region13
    $region12: #{textcnn_forward.1} parent=1 // pred_region
      _
    $region13: #{textcnn_forward.1} parent=1 // pred_fallthru
      _
    // Predicated region
    $region14: #{textcnn_forward.1} parent=1 // pred_check
      _
    $region15: #{textcnn_forward.1} parent=1 // pred_check_branch
      %34 = sbr.rel (0) target = $region17
    $region16: #{textcnn_forward.1} parent=1 // pred_region
      _
    $region17: #{textcnn_forward.1} parent=1 // pred_fallthru
      _
    // Predicated region
    $region18: #{textcnn_forward.1} parent=1 // pred_check
      _
    $region19: #{textcnn_forward.1} parent=1 // pred_check_branch
      %36 = sbr.rel (0) target = $region21
    $region20: #{textcnn_forward.1} parent=1 // pred_region
      _
    $region21: #{textcnn_forward.1} parent=1 // pred_fallthru
      _
    // Predicated region
    $region22: #{textcnn_forward.1} parent=1 // pred_check
      _
    $region23: #{textcnn_forward.1} parent=1 // pred_check_branch
      %38 = sbr.rel (0) target = $region25
    $region24: #{textcnn_forward.1} parent=1 // pred_region
      _
    $region25: #{textcnn_forward.1} parent=1 // pred_fallthru
      _
    // Predicated region
    $region26: #{textcnn_forward.1} parent=1 // pred_check
      _
    $region27: #{textcnn_forward.1} parent=1 // pred_check_branch
      %40 = sbr.rel (0) target = $region29
    $region28: #{textcnn_forward.1} parent=1 // pred_region
      _
    $region29: #{textcnn_forward.1} parent=1 // pred_fallthru
      _
    // Predicated region
    $region30: #{textcnn_forward.1} parent=1 // pred_check
      _
    $region31: #{textcnn_forward.1} parent=1 // pred_check_branch
      %42 = sbr.rel (0) target = $region33
    $region32: #{textcnn_forward.1} parent=1 // pred_region
      _
    $region33: #{textcnn_forward.1} parent=1 // pred_fallthru
      _
    // Predicated region
    $region34: #{textcnn_forward.1} parent=1 // pred_check
      _
    $region35: #{textcnn_forward.1} parent=1 // pred_check_branch
      %44 = sbr.rel (0) target = $region37
    $region36: #{textcnn_forward.1} parent=1 // pred_region
      _
    $region37: #{textcnn_forward.1} parent=1 // pred_fallthru
      _
    // Predicated region
    $region38: #{textcnn_forward.1} parent=1 // pred_check
      _
    $region39: #{textcnn_forward.1} parent=1 // pred_check_branch
      %46 = sbr.rel (0) target = $region41
    $region40: #{textcnn_forward.1} parent=1 // pred_region
      %47 = dma.done [#allocation3], 1792
    $region41: #{textcnn_forward.1} parent=1 // pred_fallthru
      _
    %v48 = vld [vmem:[%s0] sm:$0x3]
    %v49 = vlaneseq
    %v50 = vshrl.u32 %v49, 7
    %v51 = vsub.s32 0, %v50
    %v52 = vrot.slane %v48, %v51
    %54 = vbcast.lane.b32.xlu0 %v52, 256
    %v55 = vpop.permute.xlu0 %54
    %s57 = sor.u32 256, 8
    %58 = vbcast.lane.b32.xlu0 %v52, %s57
    %v59 = vpop.permute.xlu0 %58
    %s61 = sor.u32 256, 16
    %62 = vbcast.lane.b32.xlu0 %v52, %s61
    %v63 = vpop.permute.xlu0 %62
    %s65 = sor.u32 256, 24
    %66 = vbcast.lane.b32.xlu0 %v52, %s65
    %v67 = vpop.permute.xlu0 %66
    %v68 = vlaneseq
    %v69 = vshrl.u32 %v68, 7
    %v70 = vsub.s32 1, %v69
    %v71 = vrot.slane %v48, %v70
    %73 = vbcast.lane.b32.xlu0 %v71, 256
    %v74 = vpop.permute.xlu0 %73
    %s76 = sor.u32 256, 8
    %77 = vbcast.lane.b32.xlu0 %v71, %s76
    %v78 = vpop.permute.xlu0 %77
    %s80 = sor.u32 256, 16
    %81 = vbcast.lane.b32.xlu0 %v71, %s80
    %v82 = vpop.permute.xlu0 %81
    %s84 = sor.u32 256, 24
    %85 = vbcast.lane.b32.xlu0 %v71, %s84
    %v86 = vpop.permute.xlu0 %85
    %v87 = vlaneseq
    %v88 = vand.u32 %v87, 127
    %vm89 = vcmp.eq.s32.totalorder %v55, %v88
    %vm90 = vcmp.eq.s32.totalorder %v59, %v88
    %vm91 = vcmp.eq.s32.totalorder %v63, %v88
    %vm92 = vcmp.eq.s32.totalorder %v67, %v88
    %vm93 = vcmp.eq.s32.totalorder %v74, %v88
    %vm94 = vcmp.eq.s32.totalorder %v78, %v88
    %vm95 = vcmp.eq.s32.totalorder %v82, %v88
    %vm96 = vcmp.eq.s32.totalorder %v86, %v88
    %v97 = vsel %vm89, 1, 0
    %v98 = vsel %vm90, 1, 0
    %v99 = vsel %vm91, 1, 0
    %v100 = vsel %vm92, 1, 0
    %v101 = vsel %vm93, 1, 0
    %v102 = vsel %vm94, 1, 0
    %v103 = vsel %vm95, 1, 0
    %v104 = vsel %vm96, 1, 0
    %v105 = vcvt.s32.f32 %v97
    %v106 = vcvt.s32.f32 %v98
    %v107 = vcvt.s32.f32 %v99
    %v108 = vcvt.s32.f32 %v100
    %v109 = vcvt.s32.f32 %v101
    %v110 = vcvt.s32.f32 %v102
    %v111 = vcvt.s32.f32 %v103
    %v112 = vcvt.s32.f32 %v104
    %v113 = vld [vmem:[#allocation2] sm:$0x1f]
    %v114 = vld [vmem:[#allocation2 + $0x8] sm:$0x1f]
    %v115 = vld [vmem:[#allocation2 + $0x10] sm:$0x1f]
    %v116 = vld [vmem:[#allocation2 + $0x18] sm:$0x1f]
    %v117 = vld [vmem:[#allocation2 + $0x20] sm:$0x1f]
    %v118 = vld [vmem:[#allocation2 + $0x28] sm:$0x1f]
    %v119 = vld [vmem:[#allocation2 + $0x30] sm:$0x1f]
    %v120 = vld [vmem:[#allocation2 + $0x38] sm:$0x1f]
    %v121 = vld [vmem:[#allocation2 + $0x40] sm:$0x1f]
    %v122 = vld [vmem:[#allocation2 + $0x48] sm:$0x1f]
    %v123 = vld [vmem:[#allocation2 + $0x50] sm:$0x1f]
    %v124 = vld [vmem:[#allocation2 + $0x58] sm:$0x1f]
    %v125 = vld [vmem:[#allocation2 + $0x60] sm:$0x1f]
    %v126 = vld [vmem:[#allocation2 + $0x68] sm:$0x1f]
    %vm127 = vcmask 39936
    %v129 = vsel %vm127, %v105, 0
    %v132 = vsel %vm127, %v106, 0
    %v135 = vsel %vm127, %v107, 0
    %v138 = vsel %vm127, %v108, 0
    %v141 = vsel %vm127, %v109, 0
    %v144 = vsel %vm127, %v110, 0
    %v147 = vsel %vm127, %v111, 0
    %v150 = vsel %vm127, %v112, 0
    %vm152 = vcmask 1044480
    %v154 = vsel %vm152, %v113, 0
    %v157 = vsel %vm152, %v114, 0
    %v160 = vsel %vm152, %v115, 0
    %v163 = vsel %vm152, %v116, 0
    %v166 = vsel %vm152, %v117, 0
    %v169 = vsel %vm152, %v118, 0
    %v172 = vsel %vm152, %v119, 0
    %v175 = vsel %vm152, %v120, 0
    %v178 = vsel %vm152, %v121, 0
    %v181 = vsel %vm152, %v122, 0
    %v184 = vsel %vm152, %v123, 0
    %v187 = vsel %vm152, %v124, 0
    %v190 = vsel %vm152, %v125, 0
    %v193 = vsel %vm152, %v126, 0
    %195 = vmatprep.subr.mxu0 %v157
    %196 = vmatpush1.msra.mxu0 %v154
    %197 = vmatprep.subr.mxu0 0.0
    %198 = vmatpush1.msra.mxu0 0.0
    %199 = vmatprep.subr.mxu0 0.0
    %200 = vmatpush1.msra.mxu0 0.0
    %201 = vmatprep.subr.mxu0 0.0
    %202 = vmatpush1.msra.mxu0 0.0
    %203 = vmatprep.subr.mxu0 0.0
    %204 = vmatpush1.msra.mxu0 0.0
    %205 = vmatprep.subr.mxu0 0.0
    %206 = vmatpush1.msra.mxu0 0.0
    %207 = vmatprep.subr.mxu0 0.0
    %208 = vmatpush1.msra.mxu0 0.0
    %209 = vmatprep.subr.mxu0 0.0
    %210 = vmatpush1.msra.mxu0 0.0
    %211 = vmatprep.subr.mxu0 0.0
    %212 = vmatpush1.msra.mxu0 0.0
    %213 = vmatprep.subr.mxu0 0.0
    %214 = vmatpush1.msra.mxu0 0.0
    %215 = vmatprep.subr.mxu0 0.0
    %216 = vmatpush1.msra.mxu0 0.0
    %217 = vmatprep.subr.mxu0 0.0
    %218 = vmatpush1.msra.mxu0 0.0
    %219 = vmatprep.subr.mxu0 0.0
    %220 = vmatpush1.msra.mxu0 0.0
    %221 = vmatprep.subr.mxu0 0.0
    %222 = vmatpush1.msra.mxu0 0.0
    %223 = vmatprep.subr.mxu0 0.0
    %224 = vmatpush1.msra.mxu0 0.0
    %225 = vmatprep.subr.mxu0 0.0
    %226 = vmatpush1.msra.mxu0 0.0
    %227 = vmatprep.subr.mxu0 0.0
    %228 = vmatpush1.msra.mxu0 0.0
    %229 = vmatprep.subr.mxu0 0.0
    %230 = vmatpush1.msra.mxu0 0.0
    %231 = vmatprep.subr.mxu0 0.0
    %232 = vmatpush1.msra.mxu0 0.0
    %233 = vmatprep.subr.mxu0 0.0
    %234 = vmatpush1.msra.mxu0 0.0
    %235 = vmatprep.subr.mxu0 0.0
    %236 = vmatpush1.msra.mxu0 0.0
    %237 = vmatprep.subr.mxu0 0.0
    %238 = vmatpush1.msra.mxu0 0.0
    %239 = vmatprep.subr.mxu0 0.0
    %240 = vmatpush1.msra.mxu0 0.0
    %241 = vmatprep.subr.mxu0 0.0
    %242 = vmatpush1.msra.mxu0 0.0
    %243 = vmatprep.subr.mxu0 0.0
    %244 = vmatpush1.msra.mxu0 0.0
    %245 = vmatprep.subr.mxu0 0.0
    %246 = vmatpush1.msra.mxu0 0.0
    %247 = vmatprep.subr.mxu0 0.0
    %248 = vmatpush1.msra.mxu0 0.0
    %249 = vmatprep.subr.mxu0 0.0
    %250 = vmatpush1.msra.mxu0 0.0
    %251 = vmatprep.subr.mxu0 0.0
    %252 = vmatpush1.msra.mxu0 0.0
    %253 = vmatprep.subr.mxu0 0.0
    %254 = vmatpush1.msra.mxu0 0.0
    %255 = vmatprep.subr.mxu0 0.0
    %256 = vmatpush1.msra.mxu0 0.0
    %257 = vmatprep.subr.mxu0 0.0
    %258 = vmatpush1.msra.mxu0 0.0
    %259 = vmatprep.mubr.f32.mxu0 0.0
    %260 = vmatmul.mubr.f32.gmra.mrb[0].mxu0 %v129
    %v261 = vpop.f32.mrb[0].mxu0
    %v262 = vadd.f32 0.0, %v261
    %v263 = vpop.f32.mrb[0].mxu0
    %v264 = vadd.f32 0.0, %v263
    %265 = vmatprep.mubr.f32.mxu0 0.0
    %266 = vmatmul.mubr.f32.gmra.mrb[0].mxu0 %v132
    %v267 = vpop.f32.mrb[0].mxu0
    %v268 = vadd.f32 0.0, %v267
    %v269 = vpop.f32.mrb[0].mxu0
    %v270 = vadd.f32 0.0, %v269
    %271 = vmatprep.mubr.f32.mxu0 0.0
    %272 = vmatmul.mubr.f32.gmra.mrb[0].mxu0 %v135
    %v273 = vpop.f32.mrb[0].mxu0
    %v274 = vadd.f32 0.0, %v273
    %v275 = vpop.f32.mrb[0].mxu0
    %v276 = vadd.f32 0.0, %v275
    %277 = vmatprep.mubr.f32.mxu0 0.0
    %278 = vmatmul.mubr.f32.gmra.mrb[0].mxu0 %v138
    %v279 = vpop.f32.mrb[0].mxu0
    %v280 = vadd.f32 0.0, %v279
    %v281 = vpop.f32.mrb[0].mxu0
    %v282 = vadd.f32 0.0, %v281
    %283 = vmatprep.mubr.f32.mxu0 0.0
    %284 = vmatmul.mubr.f32.gmra.mrb[0].mxu0 %v141
    %v285 = vpop.f32.mrb[0].mxu0
    %v286 = vadd.f32 0.0, %v285
    %v287 = vpop.f32.mrb[0].mxu0
    %v288 = vadd.f32 0.0, %v287
    %289 = vmatprep.mubr.f32.mxu0 0.0
    %290 = vmatmul.mubr.f32.gmra.mrb[0].mxu0 %v144
    %v291 = vpop.f32.mrb[0].mxu0
    %v292 = vadd.f32 0.0, %v291
    %v293 = vpop.f32.mrb[0].mxu0
    %v294 = vadd.f32 0.0, %v293
    %295 = vmatprep.mubr.f32.mxu0 0.0
    %296 = vmatmul.mubr.f32.gmra.mrb[0].mxu0 %v147
    %v297 = vpop.f32.mrb[0].mxu0
    %v298 = vadd.f32 0.0, %v297
    %v299 = vpop.f32.mrb[0].mxu0
    %v300 = vadd.f32 0.0, %v299
    %301 = vmatprep.mubr.f32.mxu0 0.0
    %302 = vmatmul.mubr.f32.gmra.mrb[0].mxu0 %v150
    %v303 = vpop.f32.mrb[0].mxu0
    %v304 = vadd.f32 0.0, %v303
    %v305 = vpop.f32.mrb[0].mxu0
    %v306 = vadd.f32 0.0, %v305
    %307 = vdwg.mxu0
    %308 = vmatprep.subr.mxu0 %v163
    %309 = vmatpush1.msra.mxu0 %v160
    %310 = vmatprep.subr.mxu0 0.0
    %311 = vmatpush1.msra.mxu0 0.0
    %312 = vmatprep.subr.mxu0 0.0
    %313 = vmatpush1.msra.mxu0 0.0
    %314 = vmatprep.subr.mxu0 0.0
    %315 = vmatpush1.msra.mxu0 0.0
    %316 = vmatprep.subr.mxu0 0.0
    %317 = vmatpush1.msra.mxu0 0.0
    %318 = vmatprep.subr.mxu0 0.0
    %319 = vmatpush1.msra.mxu0 0.0
    %320 = vmatprep.subr.mxu0 0.0
    %321 = vmatpush1.msra.mxu0 0.0
    %322 = vmatprep.subr.mxu0 0.0
    %323 = vmatpush1.msra.mxu0 0.0
    %324 = vmatprep.subr.mxu0 0.0
    %325 = vmatpush1.msra.mxu0 0.0
    %326 = vmatprep.subr.mxu0 0.0
    %327 = vmatpush1.msra.mxu0 0.0
    %328 = vmatprep.subr.mxu0 0.0
    %329 = vmatpush1.msra.mxu0 0.0
    %330 = vmatprep.subr.mxu0 0.0
    %331 = vmatpush1.msra.mxu0 0.0
    %332 = vmatprep.subr.mxu0 0.0
    %333 = vmatpush1.msra.mxu0 0.0
    %334 = vmatprep.subr.mxu0 0.0
    %335 = vmatpush1.msra.mxu0 0.0
    %336 = vmatprep.subr.mxu0 0.0
    %337 = vmatpush1.msra.mxu0 0.0
    %338 = vmatprep.subr.mxu0 0.0
    %339 = vmatpush1.msra.mxu0 0.0
    %340 = vmatprep.subr.mxu0 0.0
    %341 = vmatpush1.msra.mxu0 0.0
    %342 = vmatprep.subr.mxu0 0.0
    %343 = vmatpush1.msra.mxu0 0.0
    %344 = vmatprep.subr.mxu0 0.0
    %345 = vmatpush1.msra.mxu0 0.0
    %346 = vmatprep.subr.mxu0 0.0
    %347 = vmatpush1.msra.mxu0 0.0
    %348 = vmatprep.subr.mxu0 0.0
    %349 = vmatpush1.msra.mxu0 0.0
    %350 = vmatprep.subr.mxu0 0.0
    %351 = vmatpush1.msra.mxu0 0.0
    %352 = vmatprep.subr.mxu0 0.0
    %353 = vmatpush1.msra.mxu0 0.0
    %354 = vmatprep.subr.mxu0 0.0
    %355 = vmatpush1.msra.mxu0 0.0
    %356 = vmatprep.subr.mxu0 0.0
    %357 = vmatpush1.msra.mxu0 0.0
    %358 = vmatprep.subr.mxu0 0.0
    %359 = vmatpush1.msra.mxu0 0.0
    %360 = vmatprep.subr.mxu0 0.0
    %361 = vmatpush1.msra.mxu0 0.0
    %362 = vmatprep.subr.mxu0 0.0
    %363 = vmatpush1.msra.mxu0 0.0
    %364 = vmatprep.subr.mxu0 0.0
    %365 = vmatpush1.msra.mxu0 0.0
    %366 = vmatprep.subr.mxu0 0.0
    %367 = vmatpush1.msra.mxu0 0.0
    %368 = vmatprep.subr.mxu0 0.0
    %369 = vmatpush1.msra.mxu0 0.0
    %370 = vmatprep.subr.mxu0 0.0
    %371 = vmatpush1.msra.mxu0 0.0
    %372 = vmatprep.mubr.f32.mxu0 0.0
    %373 = vmatmul.mubr.f32.gmra.mrb[0].mxu0 %v129
    %v374 = vpop.f32.mrb[0].mxu0
    %v375 = vadd.f32 0.0, %v374
    %v376 = vpop.f32.mrb[0].mxu0
    %v377 = vadd.f32 0.0, %v376
    %378 = vmatprep.mubr.f32.mxu0 0.0
    %379 = vmatmul.mubr.f32.gmra.mrb[0].mxu0 %v132
    %v380 = vpop.f32.mrb[0].mxu0
    %v381 = vadd.f32 0.0, %v380
    %v382 = vpop.f32.mrb[0].mxu0
    %v383 = vadd.f32 0.0, %v382
    %384 = vmatprep.mubr.f32.mxu0 0.0
    %385 = vmatmul.mubr.f32.gmra.mrb[0].mxu0 %v135
    %v386 = vpop.f32.mrb[0].mxu0
    %v387 = vadd.f32 0.0, %v386
    %v388 = vpop.f32.mrb[0].mxu0
    %v389 = vadd.f32 0.0, %v388
    %390 = vmatprep.mubr.f32.mxu0 0.0
    %391 = vmatmul.mubr.f32.gmra.mrb[0].mxu0 %v138
    %v392 = vpop.f32.mrb[0].mxu0
    %v393 = vadd.f32 0.0, %v392
    %v394 = vpop.f32.mrb[0].mxu0
    %v395 = vadd.f32 0.0, %v394
    %396 = vmatprep.mubr.f32.mxu0 0.0
    %397 = vmatmul.mubr.f32.gmra.mrb[0].mxu0 %v141
    %v398 = vpop.f32.mrb[0].mxu0
    %v399 = vadd.f32 0.0, %v398
    %v400 = vpop.f32.mrb[0].mxu0
    %v401 = vadd.f32 0.0, %v400
    %402 = vmatprep.mubr.f32.mxu0 0.0
    %403 = vmatmul.mubr.f32.gmra.mrb[0].mxu0 %v144
    %v404 = vpop.f32.mrb[0].mxu0
    %v405 = vadd.f32 0.0, %v404
    %v406 = vpop.f32.mrb[0].mxu0
    %v407 = vadd.f32 0.0, %v406
    %408 = vmatprep.mubr.f32.mxu0 0.0
    %409 = vmatmul.mubr.f32.gmra.mrb[0].mxu0 %v147
    %v410 = vpop.f32.mrb[0].mxu0
    %v411 = vadd.f32 0.0, %v410
    %v412 = vpop.f32.mrb[0].mxu0
    %v413 = vadd.f32 0.0, %v412
    %414 = vmatprep.mubr.f32.mxu0 0.0
    %415 = vmatmul.mubr.f32.gmra.mrb[0].mxu0 %v150
    %v416 = vpop.f32.mrb[0].mxu0
    %v417 = vadd.f32 0.0, %v416
    %v418 = vpop.f32.mrb[0].mxu0
    %v419 = vadd.f32 0.0, %v418
    %420 = vdwg.mxu0
    %421 = vmatprep.subr.mxu0 %v169
    %422 = vmatpush1.msra.mxu0 %v166
    %423 = vmatprep.subr.mxu0 0.0
    %424 = vmatpush1.msra.mxu0 0.0
    %425 = vmatprep.subr.mxu0 0.0
    %426 = vmatpush1.msra.mxu0 0.0
    %427 = vmatprep.subr.mxu0 0.0
    %428 = vmatpush1.msra.mxu0 0.0
    %429 = vmatprep.subr.mxu0 0.0
    %430 = vmatpush1.msra.mxu0 0.0
    %431 = vmatprep.subr.mxu0 0.0
    %432 = vmatpush1.msra.mxu0 0.0
    %433 = vmatprep.subr.mxu0 0.0
    %434 = vmatpush1.msra.mxu0 0.0
    %435 = vmatprep.subr.mxu0 0.0
    %436 = vmatpush1.msra.mxu0 0.0
    %437 = vmatprep.subr.mxu0 0.0
    %438 = vmatpush1.msra.mxu0 0.0
    %439 = vmatprep.subr.mxu0 0.0
    %440 = vmatpush1.msra.mxu0 0.0
    %441 = vmatprep.subr.mxu0 0.0
    %442 = vmatpush1.msra.mxu0 0.0
    %443 = vmatprep.subr.mxu0 0.0
    %444 = vmatpush1.msra.mxu0 0.0
    %445 = vmatprep.subr.mxu0 0.0
    %446 = vmatpush1.msra.mxu0 0.0
    %447 = vmatprep.subr.mxu0 0.0
    %448 = vmatpush1.msra.mxu0 0.0
    %449 = vmatprep.subr.mxu0 0.0
    %450 = vmatpush1.msra.mxu0 0.0
    %451 = vmatprep.subr.mxu0 0.0
    %452 = vmatpush1.msra.mxu0 0.0
    %453 = vmatprep.subr.mxu0 0.0
    %454 = vmatpush1.msra.mxu0 0.0
    %455 = vmatprep.subr.mxu0 0.0
    %456 = vmatpush1.msra.mxu0 0.0
    %457 = vmatprep.subr.mxu0 0.0
    %458 = vmatpush1.msra.mxu0 0.0
    %459 = vmatprep.subr.mxu0 0.0
    %460 = vmatpush1.msra.mxu0 0.0
    %461 = vmatprep.subr.mxu0 0.0
    %462 = vmatpush1.msra.mxu0 0.0
    %463 = vmatprep.subr.mxu0 0.0
    %464 = vmatpush1.msra.mxu0 0.0
    %465 = vmatprep.subr.mxu0 0.0
    %466 = vmatpush1.msra.mxu0 0.0
    %467 = vmatprep.subr.mxu0 0.0
    %468 = vmatpush1.msra.mxu0 0.0
    %469 = vmatprep.subr.mxu0 0.0
    %470 = vmatpush1.msra.mxu0 0.0
    %471 = vmatprep.subr.mxu0 0.0
    %472 = vmatpush1.msra.mxu0 0.0
    %473 = vmatprep.subr.mxu0 0.0
    %474 = vmatpush1.msra.mxu0 0.0
    %475 = vmatprep.subr.mxu0 0.0
    %476 = vmatpush1.msra.mxu0 0.0
    %477 = vmatprep.subr.mxu0 0.0
    %478 = vmatpush1.msra.mxu0 0.0
    %479 = vmatprep.subr.mxu0 0.0
    %480 = vmatpush1.msra.mxu0 0.0
    %481 = vmatprep.subr.mxu0 0.0
    %482 = vmatpush1.msra.mxu0 0.0
    %483 = vmatprep.subr.mxu0 0.0
    %484 = vmatpush1.msra.mxu0 0.0
    %485 = vmatprep.mubr.f32.mxu0 0.0
    %486 = vmatmul.mubr.f32.gmra.mrb[0].mxu0 %v129
    %v487 = vpop.f32.mrb[0].mxu0
    %v488 = vadd.f32 0.0, %v487
    %v489 = vpop.f32.mrb[0].mxu0
    %v490 = vadd.f32 0.0, %v489
    %491 = vmatprep.mubr.f32.mxu0 0.0
    %492 = vmatmul.mubr.f32.gmra.mrb[0].mxu0 %v132
    %v493 = vpop.f32.mrb[0].mxu0
    %v494 = vadd.f32 0.0, %v493
    %v495 = vpop.f32.mrb[0].mxu0
    %v496 = vadd.f32 0.0, %v495
    %497 = vmatprep.mubr.f32.mxu0 0.0
    %498 = vmatmul.mubr.f32.gmra.mrb[0].mxu0 %v135
    %v499 = vpop.f32.mrb[0].mxu0
    %v500 = vadd.f32 0.0, %v499
    %v501 = vpop.f32.mrb[0].mxu0
    %v502 = vadd.f32 0.0, %v501
    %503 = vmatprep.mubr.f32.mxu0 0.0
    %504 = vmatmul.mubr.f32.gmra.mrb[0].mxu0 %v138
    %v505 = vpop.f32.mrb[0].mxu0
    %v506 = vpop.f32.mrb[0].mxu0
    %v507 = vadd.f32 0.0, %v506
    %508 = vmatprep.mubr.f32.mxu0 0.0
    %509 = vmatmul.mubr.f32.gmra.mrb[0].mxu0 %v141
    %v510 = vpop.f32.mrb[0].mxu0
    %v511 = vadd.f32 0.0, %v510
    %v512 = vpop.f32.mrb[0].mxu0
    %v513 = vadd.f32 0.0, %v512
    %514 = vmatprep.mubr.f32.mxu0 0.0
    %515 = vmatmul.mubr.f32.gmra.mrb[0].mxu0 %v144
    %v516 = vpop.f32.mrb[0].mxu0
    %v517 = vadd.f32 0.0, %v516
    %v518 = vpop.f32.mrb[0].mxu0
    %v519 = vadd.f32 0.0, %v518
    %520 = vmatprep.mubr.f32.mxu0 0.0
    %521 = vmatmul.mubr.f32.gmra.mrb[0].mxu0 %v147
    %v522 = vpop.f32.mrb[0].mxu0
    %v523 = vadd.f32 0.0, %v522
    %v524 = vpop.f32.mrb[0].mxu0
    %v525 = vadd.f32 0.0, %v524
    %526 = vmatprep.mubr.f32.mxu0 0.0
    %527 = vmatmul.mubr.f32.gmra.mrb[0].mxu0 %v150
    %v528 = vpop.f32.mrb[0].mxu0
    %v529 = vpop.f32.mrb[0].mxu0
    %v530 = vadd.f32 0.0, %v529
    %531 = vdwg.mxu0
    %532 = vmatprep.subr.mxu0 %v175
    %533 = vmatpush1.msra.mxu0 %v172
    %534 = vmatprep.subr.mxu0 0.0
    %535 = vmatpush1.msra.mxu0 0.0
    %536 = vmatprep.subr.mxu0 0.0
    %537 = vmatpush1.msra.mxu0 0.0
    %538 = vmatprep.subr.mxu0 0.0
    %539 = vmatpush1.msra.mxu0 0.0
    %540 = vmatprep.subr.mxu0 0.0
    %541 = vmatpush1.msra.mxu0 0.0
    %542 = vmatprep.subr.mxu0 0.0
    %543 = vmatpush1.msra.mxu0 0.0
    %544 = vmatprep.subr.mxu0 0.0
    %545 = vmatpush1.msra.mxu0 0.0
    %546 = vmatprep.subr.mxu0 0.0
    %547 = vmatpush1.msra.mxu0 0.0
    %548 = vmatprep.subr.mxu0 0.0
    %549 = vmatpush1.msra.mxu0 0.0
    %550 = vmatprep.subr.mxu0 0.0
    %551 = vmatpush1.msra.mxu0 0.0
    %552 = vmatprep.subr.mxu0 0.0
    %553 = vmatpush1.msra.mxu0 0.0
    %554 = vmatprep.subr.mxu0 0.0
    %555 = vmatpush1.msra.mxu0 0.0
    %556 = vmatprep.subr.mxu0 0.0
    %557 = vmatpush1.msra.mxu0 0.0
    %558 = vmatprep.subr.mxu0 0.0
    %559 = vmatpush1.msra.mxu0 0.0
    %560 = vmatprep.subr.mxu0 0.0
    %561 = vmatpush1.msra.mxu0 0.0
    %562 = vmatprep.subr.mxu0 0.0
    %563 = vmatpush1.msra.mxu0 0.0
    %564 = vmatprep.subr.mxu0 0.0
    %565 = vmatpush1.msra.mxu0 0.0
    %566 = vmatprep.subr.mxu0 0.0
    %567 = vmatpush1.msra.mxu0 0.0
    %568 = vmatprep.subr.mxu0 0.0
    %569 = vmatpush1.msra.mxu0 0.0
    %570 = vmatprep.subr.mxu0 0.0
    %571 = vmatpush1.msra.mxu0 0.0
    %572 = vmatprep.subr.mxu0 0.0
    %573 = vmatpush1.msra.mxu0 0.0
    %574 = vmatprep.subr.mxu0 0.0
    %575 = vmatpush1.msra.mxu0 0.0
    %576 = vmatprep.subr.mxu0 0.0
    %577 = vmatpush1.msra.mxu0 0.0
    %578 = vmatprep.subr.mxu0 0.0
    %579 = vmatpush1.msra.mxu0 0.0
    %580 = vmatprep.subr.mxu0 0.0
    %581 = vmatpush1.msra.mxu0 0.0
    %582 = vmatprep.subr.mxu0 0.0
    %583 = vmatpush1.msra.mxu0 0.0
    %584 = vmatprep.subr.mxu0 0.0
    %585 = vmatpush1.msra.mxu0 0.0
    %586 = vmatprep.subr.mxu0 0.0
    %587 = vmatpush1.msra.mxu0 0.0
    %588 = vmatprep.subr.mxu0 0.0
    %589 = vmatpush1.msra.mxu0 0.0
    %590 = vmatprep.subr.mxu0 0.0
    %591 = vmatpush1.msra.mxu0 0.0
    %592 = vmatprep.subr.mxu0 0.0
    %593 = vmatpush1.msra.mxu0 0.0
    %594 = vmatprep.subr.mxu0 0.0
    %595 = vmatpush1.msra.mxu0 0.0
    %596 = vmatprep.mubr.f32.mxu0 0.0
    %597 = vmatmul.mubr.f32.gmra.mrb[0].mxu0 %v129
    %v598 = vpop.f32.mrb[0].mxu0
    %v599 = vpop.f32.mrb[0].mxu0
    %v600 = vadd.f32 0.0, %v599
    %601 = vmatprep.mubr.f32.mxu0 0.0
    %602 = vmatmul.mubr.f32.gmra.mrb[0].mxu0 %v132
    %v603 = vpop.f32.mrb[0].mxu0
    %v604 = vadd.f32 0.0, %v603
    %v605 = vpop.f32.mrb[0].mxu0
    %v606 = vadd.f32 0.0, %v605
    %607 = vmatprep.mubr.f32.mxu0 0.0
    %608 = vmatmul.mubr.f32.gmra.mrb[0].mxu0 %v135
    %v609 = vpop.f32.mrb[0].mxu0
    %v610 = vadd.f32 0.0, %v609
    %v611 = vpop.f32.mrb[0].mxu0
    %v612 = vadd.f32 0.0, %v611
    %613 = vmatprep.mubr.f32.mxu0 0.0
    %614 = vmatmul.mubr.f32.gmra.mrb[0].mxu0 %v138
    %v615 = vpop.f32.mrb[0].mxu0
    %v616 = vadd.f32 0.0, %v615
    %v617 = vpop.f32.mrb[0].mxu0
    %v618 = vadd.f32 0.0, %v617
    %619 = vmatprep.mubr.f32.mxu0 0.0
    %620 = vmatmul.mubr.f32.gmra.mrb[0].mxu0 %v141
    %v621 = vpop.f32.mrb[0].mxu0
    %v622 = vpop.f32.mrb[0].mxu0
    %v623 = vadd.f32 0.0, %v622
    %624 = vmatprep.mubr.f32.mxu0 0.0
    %625 = vmatmul.mubr.f32.gmra.mrb[0].mxu0 %v144
    %v626 = vpop.f32.mrb[0].mxu0
    %v627 = vadd.f32 0.0, %v626
    %v628 = vpop.f32.mrb[0].mxu0
    %v629 = vadd.f32 0.0, %v628
    %630 = vmatprep.mubr.f32.mxu0 0.0
    %631 = vmatmul.mubr.f32.gmra.mrb[0].mxu0 %v147
    %v632 = vpop.f32.mrb[0].mxu0
    %v633 = vadd.f32 0.0, %v632
    %v634 = vpop.f32.mrb[0].mxu0
    %v635 = vadd.f32 0.0, %v634
    %636 = vmatprep.mubr.f32.mxu0 0.0
    %637 = vmatmul.mubr.f32.gmra.mrb[0].mxu0 %v150
    %v638 = vpop.f32.mrb[0].mxu0
    %v639 = vadd.f32 0.0, %v638
    %v640 = vpop.f32.mrb[0].mxu0
    %v641 = vadd.f32 0.0, %v640
    %642 = vdwg.mxu0
    %643 = vmatprep.subr.mxu0 %v181
    %644 = vmatpush1.msra.mxu0 %v178
    %645 = vmatprep.subr.mxu0 0.0
    %646 = vmatpush1.msra.mxu0 0.0
    %647 = vmatprep.subr.mxu0 0.0
    %648 = vmatpush1.msra.mxu0 0.0
    %649 = vmatprep.subr.mxu0 0.0
    %650 = vmatpush1.msra.mxu0 0.0
    %651 = vmatprep.subr.mxu0 0.0
    %652 = vmatpush1.msra.mxu0 0.0
    %653 = vmatprep.subr.mxu0 0.0
    %654 = vmatpush1.msra.mxu0 0.0
    %655 = vmatprep.subr.mxu0 0.0
    %656 = vmatpush1.msra.mxu0 0.0
    %657 = vmatprep.subr.mxu0 0.0
    %658 = vmatpush1.msra.mxu0 0.0
    %659 = vmatprep.subr.mxu0 0.0
    %660 = vmatpush1.msra.mxu0 0.0
    %661 = vmatprep.subr.mxu0 0.0
    %662 = vmatpush1.msra.mxu0 0.0
    %663 = vmatprep.subr.mxu0 0.0
    %664 = vmatpush1.msra.mxu0 0.0
    %665 = vmatprep.subr.mxu0 0.0
    %666 = vmatpush1.msra.mxu0 0.0
    %667 = vmatprep.subr.mxu0 0.0
    %668 = vmatpush1.msra.mxu0 0.0
    %669 = vmatprep.subr.mxu0 0.0
    %670 = vmatpush1.msra.mxu0 0.0
    %671 = vmatprep.subr.mxu0 0.0
    %672 = vmatpush1.msra.mxu0 0.0
    %673 = vmatprep.subr.mxu0 0.0
    %674 = vmatpush1.msra.mxu0 0.0
    %675 = vmatprep.subr.mxu0 0.0
    %676 = vmatpush1.msra.mxu0 0.0
    %677 = vmatprep.subr.mxu0 0.0
    %678 = vmatpush1.msra.mxu0 0.0
    %679 = vmatprep.subr.mxu0 0.0
    %680 = vmatpush1.msra.mxu0 0.0
    %681 = vmatprep.subr.mxu0 0.0
    %682 = vmatpush1.msra.mxu0 0.0
    %683 = vmatprep.subr.mxu0 0.0
    %684 = vmatpush1.msra.mxu0 0.0
    %685 = vmatprep.subr.mxu0 0.0
    %686 = vmatpush1.msra.mxu0 0.0
    %687 = vmatprep.subr.mxu0 0.0
    %688 = vmatpush1.msra.mxu0 0.0
    %689 = vmatprep.subr.mxu0 0.0
    %690 = vmatpush1.msra.mxu0 0.0
    %691 = vmatprep.subr.mxu0 0.0
    %692 = vmatpush1.msra.mxu0 0.0
    %693 = vmatprep.subr.mxu0 0.0
    %694 = vmatpush1.msra.mxu0 0.0
    %695 = vmatprep.subr.mxu0 0.0
    %696 = vmatpush1.msra.mxu0 0.0
    %697 = vmatprep.subr.mxu0 0.0
    %698 = vmatpush1.msra.mxu0 0.0
    %699 = vmatprep.subr.mxu0 0.0
    %700 = vmatpush1.msra.mxu0 0.0
    %701 = vmatprep.subr.mxu0 0.0
    %702 = vmatpush1.msra.mxu0 0.0
    %703 = vmatprep.subr.mxu0 0.0
    %704 = vmatpush1.msra.mxu0 0.0
    %705 = vmatprep.subr.mxu0 0.0
    %706 = vmatpush1.msra.mxu0 0.0
    %707 = vmatprep.mubr.f32.mxu0 0.0
    %708 = vmatmul.mubr.f32.gmra.mrb[0].mxu0 %v129
    %v709 = vpop.f32.mrb[0].mxu0
    %v710 = vadd.f32 0.0, %v709
    %v711 = vpop.f32.mrb[0].mxu0
    %v712 = vadd.f32 0.0, %v711
    %713 = vmatprep.mubr.f32.mxu0 0.0
    %714 = vmatmul.mubr.f32.gmra.mrb[0].mxu0 %v132
    %v715 = vpop.f32.mrb[0].mxu0
    %v716 = vadd.f32 0.0, %v715
    %v717 = vpop.f32.mrb[0].mxu0
    %v718 = vadd.f32 0.0, %v717
    %719 = vmatprep.mubr.f32.mxu0 0.0
    %720 = vmatmul.mubr.f32.gmra.mrb[0].mxu0 %v135
    %v721 = vpop.f32.mrb[0].mxu0
    %v722 = vpop.f32.mrb[0].mxu0
    %v723 = vadd.f32 0.0, %v722
    %724 = vmatprep.mubr.f32.mxu0 0.0
    %725 = vmatmul.mubr.f32.gmra.mrb[0].mxu0 %v138
    %v726 = vpop.f32.mrb[0].mxu0
    %v727 = vpop.f32.mrb[0].mxu0
    %728 = vmatprep.mubr.f32.mxu0 0.0
    %729 = vmatmul.mubr.f32.gmra.mrb[0].mxu0 %v141
    %v730 = vpop.f32.mrb[0].mxu0
    %v731 = vadd.f32 0.0, %v730
    %v732 = vpop.f32.mrb[0].mxu0
    %v733 = vadd.f32 0.0, %v732
    %734 = vmatprep.mubr.f32.mxu0 0.0
    %735 = vmatmul.mubr.f32.gmra.mrb[0].mxu0 %v144
    %v736 = vpop.f32.mrb[0].mxu0
    %v737 = vadd.f32 0.0, %v736
    %v738 = vpop.f32.mrb[0].mxu0
    %v739 = vadd.f32 0.0, %v738
    %740 = vmatprep.mubr.f32.mxu0 0.0
    %741 = vmatmul.mubr.f32.gmra.mrb[0].mxu0 %v147
    %v742 = vpop.f32.mrb[0].mxu0
    %v743 = vpop.f32.mrb[0].mxu0
    %v744 = vadd.f32 0.0, %v743
    %745 = vmatprep.mubr.f32.mxu0 0.0
    %746 = vmatmul.mubr.f32.gmra.mrb[0].mxu0 %v150
    %v747 = vpop.f32.mrb[0].mxu0
    %v748 = vpop.f32.mrb[0].mxu0
    %749 = vdwg.mxu0
    %750 = vmatprep.subr.mxu0 %v187
    %751 = vmatpush1.msra.mxu0 %v184
    %752 = vmatprep.subr.mxu0 0.0
    %753 = vmatpush1.msra.mxu0 0.0
    %754 = vmatprep.subr.mxu0 0.0
    %755 = vmatpush1.msra.mxu0 0.0
    %756 = vmatprep.subr.mxu0 0.0
    %757 = vmatpush1.msra.mxu0 0.0
    %758 = vmatprep.subr.mxu0 0.0
    %759 = vmatpush1.msra.mxu0 0.0
    %760 = vmatprep.subr.mxu0 0.0
    %761 = vmatpush1.msra.mxu0 0.0
    %762 = vmatprep.subr.mxu0 0.0
    %763 = vmatpush1.msra.mxu0 0.0
    %764 = vmatprep.subr.mxu0 0.0
    %765 = vmatpush1.msra.mxu0 0.0
    %766 = vmatprep.subr.mxu0 0.0
    %767 = vmatpush1.msra.mxu0 0.0
    %768 = vmatprep.subr.mxu0 0.0
    %769 = vmatpush1.msra.mxu0 0.0
    %770 = vmatprep.subr.mxu0 0.0
    %771 = vmatpush1.msra.mxu0 0.0
    %772 = vmatprep.subr.mxu0 0.0
    %773 = vmatpush1.msra.mxu0 0.0
    %774 = vmatprep.subr.mxu0 0.0
    %775 = vmatpush1.msra.mxu0 0.0
    %776 = vmatprep.subr.mxu0 0.0
    %777 = vmatpush1.msra.mxu0 0.0
    %778 = vmatprep.subr.mxu0 0.0
    %779 = vmatpush1.msra.mxu0 0.0
    %780 = vmatprep.subr.mxu0 0.0
    %781 = vmatpush1.msra.mxu0 0.0
    %782 = vmatprep.subr.mxu0 0.0
    %783 = vmatpush1.msra.mxu0 0.0
    %784 = vmatprep.subr.mxu0 0.0
    %785 = vmatpush1.msra.mxu0 0.0
    %786 = vmatprep.subr.mxu0 0.0
    %787 = vmatpush1.msra.mxu0 0.0
    %788 = vmatprep.subr.mxu0 0.0
    %789 = vmatpush1.msra.mxu0 0.0
    %790 = vmatprep.subr.mxu0 0.0
    %791 = vmatpush1.msra.mxu0 0.0
    %792 = vmatprep.subr.mxu0 0.0
    %793 = vmatpush1.msra.mxu0 0.0
    %794 = vmatprep.subr.mxu0 0.0
    %795 = vmatpush1.msra.mxu0 0.0
    %796 = vmatprep.subr.mxu0 0.0
    %797 = vmatpush1.msra.mxu0 0.0
    %798 = vmatprep.subr.mxu0 0.0
    %799 = vmatpush1.msra.mxu0 0.0
    %800 = vmatprep.subr.mxu0 0.0
    %801 = vmatpush1.msra.mxu0 0.0
    %802 = vmatprep.subr.mxu0 0.0
    %803 = vmatpush1.msra.mxu0 0.0
    %804 = vmatprep.subr.mxu0 0.0
    %805 = vmatpush1.msra.mxu0 0.0
    %806 = vmatprep.subr.mxu0 0.0
    %807 = vmatpush1.msra.mxu0 0.0
    %808 = vmatprep.subr.mxu0 0.0
    %809 = vmatpush1.msra.mxu0 0.0
    %810 = vmatprep.subr.mxu0 0.0
    %811 = vmatpush1.msra.mxu0 0.0
    %812 = vmatprep.subr.mxu0 0.0
    %813 = vmatpush1.msra.mxu0 0.0
    %814 = vmatprep.mubr.f32.mxu0 0.0
    %815 = vmatmul.mubr.f32.gmra.mrb[0].mxu0 %v129
    %v816 = vpop.f32.mrb[0].mxu0
    %v817 = vpop.f32.mrb[0].mxu0
    %818 = vmatprep.mubr.f32.mxu0 0.0
    %819 = vmatmul.mubr.f32.gmra.mrb[0].mxu0 %v132
    %v820 = vpop.f32.mrb[0].mxu0
    %v821 = vadd.f32 0.0, %v820
    %v822 = vpop.f32.mrb[0].mxu0
    %v823 = vadd.f32 0.0, %v822
    %824 = vmatprep.mubr.f32.mxu0 0.0
    %825 = vmatmul.mubr.f32.gmra.mrb[0].mxu0 %v135
    %v826 = vpop.f32.mrb[0].mxu0
    %v827 = vadd.f32 0.0, %v826
    %v828 = vpop.f32.mrb[0].mxu0
    %v829 = vadd.f32 0.0, %v828
    %830 = vmatprep.mubr.f32.mxu0 0.0
    %831 = vmatmul.mubr.f32.gmra.mrb[0].mxu0 %v138
    %v832 = vpop.f32.mrb[0].mxu0
    %v833 = vpop.f32.mrb[0].mxu0
    %v834 = vadd.f32 0.0, %v833
    %835 = vmatprep.mubr.f32.mxu0 0.0
    %836 = vmatmul.mubr.f32.gmra.mrb[0].mxu0 %v141
    %v837 = vpop.f32.mrb[0].mxu0
    %v838 = vpop.f32.mrb[0].mxu0
    %839 = vmatprep.mubr.f32.mxu0 0.0
    %840 = vmatmul.mubr.f32.gmra.mrb[0].mxu0 %v144
    %v841 = vpop.f32.mrb[0].mxu0
    %v842 = vadd.f32 0.0, %v841
    %v843 = vpop.f32.mrb[0].mxu0
    %v844 = vadd.f32 0.0, %v843
    %845 = vmatprep.mubr.f32.mxu0 0.0
    %846 = vmatmul.mubr.f32.gmra.mrb[0].mxu0 %v147
    %v847 = vpop.f32.mrb[0].mxu0
    %v848 = vadd.f32 0.0, %v847
    %v849 = vpop.f32.mrb[0].mxu0
    %v850 = vadd.f32 0.0, %v849
    %851 = vmatprep.mubr.f32.mxu0 0.0
    %852 = vmatmul.mubr.f32.gmra.mrb[0].mxu0 %v150
    %v853 = vpop.f32.mrb[0].mxu0
    %v854 = vpop.f32.mrb[0].mxu0
    %v855 = vadd.f32 0.0, %v854
    %856 = vdwg.mxu0
    %857 = vmatprep.subr.mxu0 %v193
    %858 = vmatpush1.msra.mxu0 %v190
    %859 = vmatprep.subr.mxu0 0.0
    %860 = vmatpush1.msra.mxu0 0.0
    %861 = vmatprep.subr.mxu0 0.0
    %862 = vmatpush1.msra.mxu0 0.0
    %863 = vmatprep.subr.mxu0 0.0
    %864 = vmatpush1.msra.mxu0 0.0
    %865 = vmatprep.subr.mxu0 0.0
    %866 = vmatpush1.msra.mxu0 0.0
    %867 = vmatprep.subr.mxu0 0.0
    %868 = vmatpush1.msra.mxu0 0.0
    %869 = vmatprep.subr.mxu0 0.0
    %870 = vmatpush1.msra.mxu0 0.0
    %871 = vmatprep.subr.mxu0 0.0
    %872 = vmatpush1.msra.mxu0 0.0
    %873 = vmatprep.subr.mxu0 0.0
    %874 = vmatpush1.msra.mxu0 0.0
    %875 = vmatprep.subr.mxu0 0.0
    %876 = vmatpush1.msra.mxu0 0.0
    %877 = vmatprep.subr.mxu0 0.0
    %878 = vmatpush1.msra.mxu0 0.0
    %879 = vmatprep.subr.mxu0 0.0
    %880 = vmatpush1.msra.mxu0 0.0
    %881 = vmatprep.subr.mxu0 0.0
    %882 = vmatpush1.msra.mxu0 0.0
    %883 = vmatprep.subr.mxu0 0.0
    %884 = vmatpush1.msra.mxu0 0.0
    %885 = vmatprep.subr.mxu0 0.0
    %886 = vmatpush1.msra.mxu0 0.0
    %887 = vmatprep.subr.mxu0 0.0
    %888 = vmatpush1.msra.mxu0 0.0
    %889 = vmatprep.subr.mxu0 0.0
    %890 = vmatpush1.msra.mxu0 0.0
    %891 = vmatprep.subr.mxu0 0.0
    %892 = vmatpush1.msra.mxu0 0.0
    %893 = vmatprep.subr.mxu0 0.0
    %894 = vmatpush1.msra.mxu0 0.0
    %895 = vmatprep.subr.mxu0 0.0
    %896 = vmatpush1.msra.mxu0 0.0
    %897 = vmatprep.subr.mxu0 0.0
    %898 = vmatpush1.msra.mxu0 0.0
    %899 = vmatprep.subr.mxu0 0.0
    %900 = vmatpush1.msra.mxu0 0.0
    %901 = vmatprep.subr.mxu0 0.0
    %902 = vmatpush1.msra.mxu0 0.0
    %903 = vmatprep.subr.mxu0 0.0
    %904 = vmatpush1.msra.mxu0 0.0
    %905 = vmatprep.subr.mxu0 0.0
    %906 = vmatpush1.msra.mxu0 0.0
    %907 = vmatprep.subr.mxu0 0.0
    %908 = vmatpush1.msra.mxu0 0.0
    %909 = vmatprep.subr.mxu0 0.0
    %910 = vmatpush1.msra.mxu0 0.0
    %911 = vmatprep.subr.mxu0 0.0
    %912 = vmatpush1.msra.mxu0 0.0
    %913 = vmatprep.subr.mxu0 0.0
    %914 = vmatpush1.msra.mxu0 0.0
    %915 = vmatprep.subr.mxu0 0.0
    %916 = vmatpush1.msra.mxu0 0.0
    %917 = vmatprep.subr.mxu0 0.0
    %918 = vmatpush1.msra.mxu0 0.0
    %919 = vmatprep.subr.mxu0 0.0
    %920 = vmatpush1.msra.mxu0 0.0
    %921 = vmatprep.mubr.f32.mxu0 0.0
    %922 = vmatmul.mubr.f32.gmra.mrb[0].mxu0 %v129
    %v923 = vpop.f32.mrb[0].mxu0
    %v924 = vpop.f32.mrb[0].mxu0
    %925 = vmatprep.mubr.f32.mxu0 0.0
    %926 = vmatmul.mubr.f32.gmra.mrb[0].mxu0 %v132
    %v927 = vpop.f32.mrb[0].mxu0
    %v928 = vpop.f32.mrb[0].mxu0
    %929 = vmatprep.mubr.f32.mxu0 0.0
    %930 = vmatmul.mubr.f32.gmra.mrb[0].mxu0 %v135
    %v931 = vpop.f32.mrb[0].mxu0
    %v932 = vadd.f32 0.0, %v931
    %v933 = vpop.f32.mrb[0].mxu0
    %v934 = vadd.f32 0.0, %v933
    %935 = vmatprep.mubr.f32.mxu0 0.0
    %936 = vmatmul.mubr.f32.gmra.mrb[0].mxu0 %v138
    %v937 = vpop.f32.mrb[0].mxu0
    %v938 = vadd.f32 0.0, %v937
    %v939 = vpop.f32.mrb[0].mxu0
    %v940 = vadd.f32 0.0, %v939
    %941 = vmatprep.mubr.f32.mxu0 0.0
    %942 = vmatmul.mubr.f32.gmra.mrb[0].mxu0 %v141
    %v943 = vpop.f32.mrb[0].mxu0
    %v944 = vpop.f32.mrb[0].mxu0
    %945 = vmatprep.mubr.f32.mxu0 0.0
    %946 = vmatmul.mubr.f32.gmra.mrb[0].mxu0 %v144
    %v947 = vpop.f32.mrb[0].mxu0
    %v948 = vpop.f32.mrb[0].mxu0
    %949 = vmatprep.mubr.f32.mxu0 0.0
    %950 = vmatmul.mubr.f32.gmra.mrb[0].mxu0 %v147
    %v951 = vpop.f32.mrb[0].mxu0
    %v952 = vadd.f32 0.0, %v951
    %v953 = vpop.f32.mrb[0].mxu0
    %v954 = vadd.f32 0.0, %v953
    %955 = vmatprep.mubr.f32.mxu0 0.0
    %956 = vmatmul.mubr.f32.gmra.mrb[0].mxu0 %v150
    %v957 = vpop.f32.mrb[0].mxu0
    %v958 = vadd.f32 0.0, %v957
    %v959 = vpop.f32.mrb[0].mxu0
    %v960 = vadd.f32 0.0, %v959
    %961 = vdwg.mxu0
    %v962 = vld [vmem:[%s2] sm:$0x3]
    %v964 = vlaneseq
    %v965 = vshrl.u32 %v964, 7
    %v966 = vsub.s32 0, %v965
    %v967 = vrot.slane %v962, %v966
    %v969 = vadd.f32 %v262, %v967
    %v970 = vadd.f32 %v268, %v967
    %v971 = vadd.f32 %v274, %v967
    %v972 = vadd.f32 %v280, %v967
    %v973 = vadd.f32 %v286, %v967
    %v974 = vadd.f32 %v292, %v967
    %v975 = vadd.f32 %v298, %v967
    %v976 = vadd.f32 %v304, %v967
    %v977 = vmax.f32 %v969, 0.0
    %v978 = vmax.f32 %v970, 0.0
    %v979 = vmax.f32 %v971, 0.0
    %v980 = vmax.f32 %v972, 0.0
    %v981 = vmax.f32 %v973, 0.0
    %v982 = vmax.f32 %v974, 0.0
    %v983 = vmax.f32 %v975, 0.0
    %v984 = vmax.f32 %v976, 0.0
    %vm985 = vcmask 261120
    %v986 = vsel %vm985, %v977, -inf
    %v987 = vsel %vm985, %v978, -inf
    %v988 = vsel %vm985, %v979, -inf
    %v989 = vmax.f32 %v986, %v988
    %v990 = vsel %vm985, %v980, -inf
    %v991 = vmax.f32 %v987, %v990
    %v992 = vmax.f32 %v989, %v991
    %v993 = vrot.slane %v992, 4
    %v994 = vmax.f32 %v992, %v993
    %v995 = vrot.slane %v994, 2
    %v996 = vmax.f32 %v994, %v995
    %v997 = vrot.slane %v996, 1
    %v998 = vmax.f32 %v996, %v997
    %v999 = vsel %vm985, %v981, -inf
    %v1000 = vsel %vm985, %v982, -inf
    %v1001 = vsel %vm985, %v983, -inf
    %v1002 = vmax.f32 %v999, %v1001
    %v1003 = vsel %vm985, %v984, -inf
    %v1004 = vmax.f32 %v1000, %v1003
    %v1005 = vmax.f32 %v1002, %v1004
    %v1006 = vrot.slane %v1005, 4
    %v1007 = vmax.f32 %v1005, %v1006
    %v1008 = vrot.slane %v1007, 2
    %v1009 = vmax.f32 %v1007, %v1008
    %v1010 = vrot.slane %v1009, 1
    %v1011 = vmax.f32 %v1009, %v1010
    %vm1020 = vcmask 1046528
    %v1021 = vrot.slane %v262, 1
    %v1022 = vrot.slane %v268, 1
    %v1023 = vsel %vm1020, %v1021, %v1022
    %v1024 = vrot.slane %v274, 1
    %v1025 = vsel %vm1020, %v1022, %v1024
    %v1026 = vrot.slane %v280, 1
    %v1027 = vsel %vm1020, %v1024, %v1026
    %v1028 = vrot.slane %v286, 1
    %v1029 = vrot.slane %v292, 1
    %v1030 = vsel %vm1020, %v1028, %v1029
    %v1031 = vrot.slane %v298, 1
    %v1032 = vsel %vm1020, %v1029, %v1031
    %v1033 = vrot.slane %v304, 1
    %v1034 = vsel %vm1020, %v1031, %v1033
    %1035 = vrot.lane.b32.xlu0 %v1023, 96
    %v1036 = vpop.permute.xlu0 %1035
    %1037 = vrot.lane.b32.xlu0 %v1025, 96
    %v1038 = vpop.permute.xlu0 %1037
    %1039 = vrot.lane.b32.xlu0 %v1027, 96
    %v1040 = vpop.permute.xlu0 %1039
    %1041 = vrot.lane.b32.xlu0 %v1026, 96
    %v1042 = vpop.permute.xlu0 %1041
    %1043 = vrot.lane.b32.xlu0 %v1030, 96
    %v1044 = vpop.permute.xlu0 %1043
    %1045 = vrot.lane.b32.xlu0 %v1032, 96
    %v1046 = vpop.permute.xlu0 %1045
    %1047 = vrot.lane.b32.xlu0 %v1034, 96
    %v1048 = vpop.permute.xlu0 %1047
    %1049 = vrot.lane.b32.xlu0 %v1033, 96
    %v1050 = vpop.permute.xlu0 %1049
    %v1059 = vadd.f32 %v262, %v1036
    %v1060 = vadd.f32 %v268, %v1038
    %v1061 = vadd.f32 %v274, %v1040
    %v1062 = vadd.f32 %v280, %v1042
    %v1063 = vadd.f32 %v286, %v1044
    %v1064 = vadd.f32 %v292, %v1046
    %v1065 = vadd.f32 %v298, %v1048
    %v1066 = vadd.f32 %v304, %v1050
    %v1067 = vadd.f32 %v1059, %v967
    %v1068 = vadd.f32 %v1060, %v967
    %v1069 = vadd.f32 %v1061, %v967
    %v1070 = vadd.f32 %v1062, %v967
    %v1071 = vadd.f32 %v1063, %v967
    %v1072 = vadd.f32 %v1064, %v967
    %v1073 = vadd.f32 %v1065, %v967
    %v1074 = vadd.f32 %v1066, %v967
    %v1075 = vmax.f32 %v1067, 0.0
    %v1076 = vmax.f32 %v1068, 0.0
    %v1077 = vmax.f32 %v1069, 0.0
    %v1078 = vmax.f32 %v1070, 0.0
    %v1079 = vmax.f32 %v1071, 0.0
    %v1080 = vmax.f32 %v1072, 0.0
    %v1081 = vmax.f32 %v1073, 0.0
    %v1082 = vmax.f32 %v1074, 0.0
    %vm1083 = vcmask 523520
    %v1084 = vsel %vm1083, %v1075, -inf
    %v1085 = vsel %vm1083, %v1076, -inf
    %v1086 = vsel %vm1083, %v1077, -inf
    %v1087 = vmax.f32 %v1084, %v1086
    %vm1088 = vcmask 522496
    %v1089 = vsel %vm1088, %v1078, -inf
    %v1090 = vmax.f32 %v1085, %v1089
    %v1091 = vmax.f32 %v1087, %v1090
    %v1092 = vrot.slane %v1091, 4
    %v1093 = vmax.f32 %v1091, %v1092
    %v1094 = vrot.slane %v1093, 2
    %v1095 = vmax.f32 %v1093, %v1094
    %v1096 = vrot.slane %v1095, 1
    %v1097 = vmax.f32 %v1095, %v1096
    %v1098 = vsel %vm1083, %v1079, -inf
    %v1099 = vsel %vm1083, %v1080, -inf
    %v1100 = vsel %vm1083, %v1081, -inf
    %v1101 = vmax.f32 %v1098, %v1100
    %v1102 = vsel %vm1088, %v1082, -inf
    %v1103 = vmax.f32 %v1099, %v1102
    %v1104 = vmax.f32 %v1101, %v1103
    %v1105 = vrot.slane %v1104, 4
    %v1106 = vmax.f32 %v1104, %v1105
    %v1107 = vrot.slane %v1106, 2
    %v1108 = vmax.f32 %v1106, %v1107
    %v1109 = vrot.slane %v1108, 1
    %v1110 = vmax.f32 %v1108, %v1109
    %v1119 = vrot.slane %v264, 1
    %v1120 = vrot.slane %v270, 1
    %v1121 = vsel %vm1020, %v1119, %v1120
    %v1122 = vrot.slane %v276, 1
    %v1123 = vsel %vm1020, %v1120, %v1122
    %v1124 = vrot.slane %v282, 1
    %v1125 = vsel %vm1020, %v1122, %v1124
    %v1126 = vrot.slane %v288, 1
    %v1127 = vrot.slane %v294, 1
    %v1128 = vsel %vm1020, %v1126, %v1127
    %v1129 = vrot.slane %v300, 1
    %v1130 = vsel %vm1020, %v1127, %v1129
    %v1131 = vrot.slane %v306, 1
    %v1132 = vsel %vm1020, %v1129, %v1131
    %1133 = vrot.lane.b32.xlu0 %v1121, 96
    %v1134 = vpop.permute.xlu0 %1133
    %1135 = vrot.lane.b32.xlu0 %v1123, 96
    %v1136 = vpop.permute.xlu0 %1135
    %1137 = vrot.lane.b32.xlu0 %v1125, 96
    %v1138 = vpop.permute.xlu0 %1137
    %1139 = vrot.lane.b32.xlu0 %v1124, 96
    %v1140 = vpop.permute.xlu0 %1139
    %1141 = vrot.lane.b32.xlu0 %v1128, 96
    %v1142 = vpop.permute.xlu0 %1141
    %1143 = vrot.lane.b32.xlu0 %v1130, 96
    %v1144 = vpop.permute.xlu0 %1143
    %1145 = vrot.lane.b32.xlu0 %v1132, 96
    %v1146 = vpop.permute.xlu0 %1145
    %1147 = vrot.lane.b32.xlu0 %v1131, 96
    %v1148 = vpop.permute.xlu0 %1147
    %v1157 = vadd.f32 %v262, %v1134
    %v1158 = vadd.f32 %v268, %v1136
    %v1159 = vadd.f32 %v274, %v1138
    %v1160 = vadd.f32 %v280, %v1140
    %v1161 = vadd.f32 %v286, %v1142
    %v1162 = vadd.f32 %v292, %v1144
    %v1163 = vadd.f32 %v298, %v1146
    %v1164 = vadd.f32 %v304, %v1148
    %vm1165 = vcmask 1045504
    %v1166 = vrot.slane %v264, 2
    %v1167 = vrot.slane %v270, 2
    %v1168 = vsel %vm1165, %v1166, %v1167
    %v1169 = vrot.slane %v276, 2
    %v1170 = vsel %vm1165, %v1167, %v1169
    %v1171 = vrot.slane %v282, 2
    %v1172 = vsel %vm1165, %v1169, %v1171
    %v1173 = vrot.slane %v288, 2
    %v1174 = vrot.slane %v294, 2
    %v1175 = vsel %vm1165, %v1173, %v1174
    %v1176 = vrot.slane %v300, 2
    %v1177 = vsel %vm1165, %v1174, %v1176
    %v1178 = vrot.slane %v306, 2
    %v1179 = vsel %vm1165, %v1176, %v1178
    %1180 = vrot.lane.b32.xlu0 %v1168, 64
    %v1181 = vpop.permute.xlu0 %1180
    %1182 = vrot.lane.b32.xlu0 %v1170, 64
    %v1183 = vpop.permute.xlu0 %1182
    %1184 = vrot.lane.b32.xlu0 %v1172, 64
    %v1185 = vpop.permute.xlu0 %1184
    %1186 = vrot.lane.b32.xlu0 %v1171, 64
    %v1187 = vpop.permute.xlu0 %1186
    %1188 = vrot.lane.b32.xlu0 %v1175, 64
    %v1189 = vpop.permute.xlu0 %1188
    %1190 = vrot.lane.b32.xlu0 %v1177, 64
    %v1191 = vpop.permute.xlu0 %1190
    %1192 = vrot.lane.b32.xlu0 %v1179, 64
    %v1193 = vpop.permute.xlu0 %1192
    %1194 = vrot.lane.b32.xlu0 %v1178, 64
    %v1195 = vpop.permute.xlu0 %1194
    %v1204 = vadd.f32 %v1157, %v1181
    %v1205 = vadd.f32 %v1158, %v1183
    %v1206 = vadd.f32 %v1159, %v1185
    %v1207 = vadd.f32 %v1160, %v1187
    %v1208 = vadd.f32 %v1161, %v1189
    %v1209 = vadd.f32 %v1162, %v1191
    %v1210 = vadd.f32 %v1163, %v1193
    %v1211 = vadd.f32 %v1164, %v1195
    %v1212 = vrot.slane %v264, 3
    %v1213 = vrot.slane %v270, 3
    %v1214 = vsel %vm152, %v1212, %v1213
    %v1215 = vrot.slane %v276, 3
    %v1216 = vsel %vm152, %v1213, %v1215
    %v1217 = vrot.slane %v282, 3
    %v1218 = vsel %vm152, %v1215, %v1217
    %v1219 = vrot.slane %v288, 3
    %v1220 = vrot.slane %v294, 3
    %v1221 = vsel %vm152, %v1219, %v1220
    %v1222 = vrot.slane %v300, 3
    %v1223 = vsel %vm152, %v1220, %v1222
    %v1224 = vrot.slane %v306, 3
    %v1225 = vsel %vm152, %v1222, %v1224
    %1226 = vrot.lane.b32.xlu0 %v1214, 32
    %v1227 = vpop.permute.xlu0 %1226
    %1228 = vrot.lane.b32.xlu0 %v1216, 32
    %v1229 = vpop.permute.xlu0 %1228
    %1230 = vrot.lane.b32.xlu0 %v1218, 32
    %v1231 = vpop.permute.xlu0 %1230
    %1232 = vrot.lane.b32.xlu0 %v1217, 32
    %v1233 = vpop.permute.xlu0 %1232
    %1234 = vrot.lane.b32.xlu0 %v1221, 32
    %v1235 = vpop.permute.xlu0 %1234
    %1236 = vrot.lane.b32.xlu0 %v1223, 32
    %v1237 = vpop.permute.xlu0 %1236
    %1238 = vrot.lane.b32.xlu0 %v1225, 32
    %v1239 = vpop.permute.xlu0 %1238
    %1240 = vrot.lane.b32.xlu0 %v1224, 32
    %v1241 = vpop.permute.xlu0 %1240
    %v1250 = vadd.f32 %v1204, %v1227
    %v1251 = vadd.f32 %v1205, %v1229
    %v1252 = vadd.f32 %v1206, %v1231
    %v1253 = vadd.f32 %v1207, %v1233
    %v1254 = vadd.f32 %v1208, %v1235
    %v1255 = vadd.f32 %v1209, %v1237
    %v1256 = vadd.f32 %v1210, %v1239
    %v1257 = vadd.f32 %v1211, %v1241
    %1258 = vrot.lane.b32.xlu0 %v967, 32
    %v1259 = vpop.permute.xlu0 %1258
    %v1261 = vadd.f32 %v1250, %v1259
    %v1262 = vadd.f32 %v1251, %v1259
    %v1263 = vadd.f32 %v1252, %v1259
    %v1264 = vadd.f32 %v1253, %v1259
    %v1265 = vadd.f32 %v1254, %v1259
    %v1266 = vadd.f32 %v1255, %v1259
    %v1267 = vadd.f32 %v1256, %v1259
    %v1268 = vadd.f32 %v1257, %v1259
    %v1269 = vmax.f32 %v1261, 0.0
    %v1270 = vmax.f32 %v1262, 0.0
    %v1271 = vmax.f32 %v1263, 0.0
    %v1272 = vmax.f32 %v1264, 0.0
    %v1273 = vmax.f32 %v1265, 0.0
    %v1274 = vmax.f32 %v1266, 0.0
    %v1275 = vmax.f32 %v1267, 0.0
    %v1276 = vmax.f32 %v1268, 0.0
    %vm1277 = vcmask 1048320
    %v1278 = vsel %vm1277, %v1269, -inf
    %v1279 = vsel %vm1277, %v1270, -inf
    %v1280 = vsel %vm1277, %v1271, -inf
    %v1281 = vmax.f32 %v1278, %v1280
    %vm1282 = vcmask 1045248
    %v1283 = vsel %vm1282, %v1272, -inf
    %v1284 = vmax.f32 %v1279, %v1283
    %v1285 = vmax.f32 %v1281, %v1284
    %v1286 = vrot.slane %v1285, 4
    %v1287 = vmax.f32 %v1285, %v1286
    %v1288 = vrot.slane %v1287, 2
    %v1289 = vmax.f32 %v1287, %v1288
    %v1290 = vrot.slane %v1289, 1
    %v1291 = vmax.f32 %v1289, %v1290
    %v1292 = vsel %vm1277, %v1273, -inf
    %v1293 = vsel %vm1277, %v1274, -inf
    %v1294 = vsel %vm1277, %v1275, -inf
    %v1295 = vmax.f32 %v1292, %v1294
    %v1296 = vsel %vm1282, %v1276, -inf
    %v1297 = vmax.f32 %v1293, %v1296
    %v1298 = vmax.f32 %v1295, %v1297
    %v1299 = vrot.slane %v1298, 4
    %v1300 = vmax.f32 %v1298, %v1299
    %v1301 = vrot.slane %v1300, 2
    %v1302 = vmax.f32 %v1300, %v1301
    %v1303 = vrot.slane %v1302, 1
    %v1304 = vmax.f32 %v1302, %v1303
    %v1313 = vrot.slane %v375, 1
    %v1314 = vrot.slane %v381, 1
    %v1315 = vsel %vm1020, %v1313, %v1314
    %v1316 = vrot.slane %v387, 1
    %v1317 = vsel %vm1020, %v1314, %v1316
    %v1318 = vrot.slane %v393, 1
    %v1319 = vsel %vm1020, %v1316, %v1318
    %v1320 = vrot.slane %v399, 1
    %v1321 = vrot.slane %v405, 1
    %v1322 = vsel %vm1020, %v1320, %v1321
    %v1323 = vrot.slane %v411, 1
    %v1324 = vsel %vm1020, %v1321, %v1323
    %v1325 = vrot.slane %v417, 1
    %v1326 = vsel %vm1020, %v1323, %v1325
    %1327 = vrot.lane.b32.xlu0 %v1315, 96
    %v1328 = vpop.permute.xlu0 %1327
    %1329 = vrot.lane.b32.xlu0 %v1317, 96
    %v1330 = vpop.permute.xlu0 %1329
    %1331 = vrot.lane.b32.xlu0 %v1319, 96
    %v1332 = vpop.permute.xlu0 %1331
    %1333 = vrot.lane.b32.xlu0 %v1318, 96
    %v1334 = vpop.permute.xlu0 %1333
    %1335 = vrot.lane.b32.xlu0 %v1322, 96
    %v1336 = vpop.permute.xlu0 %1335
    %1337 = vrot.lane.b32.xlu0 %v1324, 96
    %v1338 = vpop.permute.xlu0 %1337
    %1339 = vrot.lane.b32.xlu0 %v1326, 96
    %v1340 = vpop.permute.xlu0 %1339
    %1341 = vrot.lane.b32.xlu0 %v1325, 96
    %v1342 = vpop.permute.xlu0 %1341
    %v1351 = vadd.f32 %v264, %v1328
    %v1352 = vadd.f32 %v270, %v1330
    %v1353 = vadd.f32 %v276, %v1332
    %v1354 = vadd.f32 %v282, %v1334
    %v1355 = vadd.f32 %v288, %v1336
    %v1356 = vadd.f32 %v294, %v1338
    %v1357 = vadd.f32 %v300, %v1340
    %v1358 = vadd.f32 %v306, %v1342
    %v1359 = vrot.slane %v375, 2
    %v1360 = vrot.slane %v381, 2
    %v1361 = vsel %vm1165, %v1359, %v1360
    %v1362 = vrot.slane %v387, 2
    %v1363 = vsel %vm1165, %v1360, %v1362
    %v1364 = vrot.slane %v393, 2
    %v1365 = vsel %vm1165, %v1362, %v1364
    %v1366 = vrot.slane %v399, 2
    %v1367 = vrot.slane %v405, 2
    %v1368 = vsel %vm1165, %v1366, %v1367
    %v1369 = vrot.slane %v411, 2
    %v1370 = vsel %vm1165, %v1367, %v1369
    %v1371 = vrot.slane %v417, 2
    %v1372 = vsel %vm1165, %v1369, %v1371
    %1373 = vrot.lane.b32.xlu0 %v1361, 64
    %v1374 = vpop.permute.xlu0 %1373
    %1375 = vrot.lane.b32.xlu0 %v1363, 64
    %v1376 = vpop.permute.xlu0 %1375
    %1377 = vrot.lane.b32.xlu0 %v1365, 64
    %v1378 = vpop.permute.xlu0 %1377
    %1379 = vrot.lane.b32.xlu0 %v1364, 64
    %v1380 = vpop.permute.xlu0 %1379
    %1381 = vrot.lane.b32.xlu0 %v1368, 64
    %v1382 = vpop.permute.xlu0 %1381
    %1383 = vrot.lane.b32.xlu0 %v1370, 64
    %v1384 = vpop.permute.xlu0 %1383
    %1385 = vrot.lane.b32.xlu0 %v1372, 64
    %v1386 = vpop.permute.xlu0 %1385
    %1387 = vrot.lane.b32.xlu0 %v1371, 64
    %v1388 = vpop.permute.xlu0 %1387
    %v1397 = vadd.f32 %v1351, %v1374
    %v1398 = vadd.f32 %v1352, %v1376
    %v1399 = vadd.f32 %v1353, %v1378
    %v1400 = vadd.f32 %v1354, %v1380
    %v1401 = vadd.f32 %v1355, %v1382
    %v1402 = vadd.f32 %v1356, %v1384
    %v1403 = vadd.f32 %v1357, %v1386
    %v1404 = vadd.f32 %v1358, %v1388
    %v1405 = vrot.slane %v375, 3
    %v1406 = vrot.slane %v381, 3
    %v1407 = vsel %vm152, %v1405, %v1406
    %v1408 = vrot.slane %v387, 3
    %v1409 = vsel %vm152, %v1406, %v1408
    %v1410 = vrot.slane %v393, 3
    %v1411 = vsel %vm152, %v1408, %v1410
    %v1412 = vrot.slane %v399, 3
    %v1413 = vrot.slane %v405, 3
    %v1414 = vsel %vm152, %v1412, %v1413
    %v1415 = vrot.slane %v411, 3
    %v1416 = vsel %vm152, %v1413, %v1415
    %v1417 = vrot.slane %v417, 3
    %v1418 = vsel %vm152, %v1415, %v1417
    %1419 = vrot.lane.b32.xlu0 %v1407, 32
    %v1420 = vpop.permute.xlu0 %1419
    %1421 = vrot.lane.b32.xlu0 %v1409, 32
    %v1422 = vpop.permute.xlu0 %1421
    %1423 = vrot.lane.b32.xlu0 %v1411, 32
    %v1424 = vpop.permute.xlu0 %1423
    %1425 = vrot.lane.b32.xlu0 %v1410, 32
    %v1426 = vpop.permute.xlu0 %1425
    %1427 = vrot.lane.b32.xlu0 %v1414, 32
    %v1428 = vpop.permute.xlu0 %1427
    %1429 = vrot.lane.b32.xlu0 %v1416, 32
    %v1430 = vpop.permute.xlu0 %1429
    %1431 = vrot.lane.b32.xlu0 %v1418, 32
    %v1432 = vpop.permute.xlu0 %1431
    %1433 = vrot.lane.b32.xlu0 %v1417, 32
    %v1434 = vpop.permute.xlu0 %1433
    %v1443 = vadd.f32 %v1397, %v1420
    %v1444 = vadd.f32 %v1398, %v1422
    %v1445 = vadd.f32 %v1399, %v1424
    %v1446 = vadd.f32 %v1400, %v1426
    %v1447 = vadd.f32 %v1401, %v1428
    %v1448 = vadd.f32 %v1402, %v1430
    %v1449 = vadd.f32 %v1403, %v1432
    %v1450 = vadd.f32 %v1404, %v1434
    %vm1451 = vcmask 1043456
    %v1452 = vrot.slane %v375, 4
    %v1453 = vrot.slane %v381, 4
    %v1454 = vsel %vm1451, %v1452, %v1453
    %v1455 = vrot.slane %v387, 4
    %v1456 = vsel %vm1451, %v1453, %v1455
    %v1457 = vrot.slane %v393, 4
    %v1458 = vsel %vm1451, %v1455, %v1457
    %v1459 = vrot.slane %v399, 4
    %v1460 = vrot.slane %v405, 4
    %v1461 = vsel %vm1451, %v1459, %v1460
    %v1462 = vrot.slane %v411, 4
    %v1463 = vsel %vm1451, %v1460, %v1462
    %v1464 = vrot.slane %v417, 4
    %v1465 = vsel %vm1451, %v1462, %v1464
    %v1474 = vadd.f32 %v1443, %v1454
    %v1475 = vadd.f32 %v1444, %v1456
    %v1476 = vadd.f32 %v1445, %v1458
    %v1477 = vadd.f32 %v1446, %v1457
    %v1478 = vadd.f32 %v1447, %v1461
    %v1479 = vadd.f32 %v1448, %v1463
    %v1480 = vadd.f32 %v1449, %v1465
    %v1481 = vadd.f32 %v1450, %v1464
    %vm1490 = vcmask 1042432
    %v1491 = vrot.slane %v377, 5
    %v1492 = vrot.slane %v383, 5
    %v1493 = vsel %vm1490, %v1491, %v1492
    %v1494 = vrot.slane %v389, 5
    %v1495 = vsel %vm1490, %v1492, %v1494
    %v1496 = vrot.slane %v395, 5
    %v1497 = vsel %vm1490, %v1494, %v1496
    %v1498 = vrot.slane %v401, 5
    %v1499 = vrot.slane %v407, 5
    %v1500 = vsel %vm1490, %v1498, %v1499
    %v1501 = vrot.slane %v413, 5
    %v1502 = vsel %vm1490, %v1499, %v1501
    %v1503 = vrot.slane %v419, 5
    %v1504 = vsel %vm1490, %v1501, %v1503
    %1505 = vrot.lane.b32.xlu0 %v1493, 96
    %v1506 = vpop.permute.xlu0 %1505
    %1507 = vrot.lane.b32.xlu0 %v1495, 96
    %v1508 = vpop.permute.xlu0 %1507
    %1509 = vrot.lane.b32.xlu0 %v1497, 96
    %v1510 = vpop.permute.xlu0 %1509
    %1511 = vrot.lane.b32.xlu0 %v1496, 96
    %v1512 = vpop.permute.xlu0 %1511
    %1513 = vrot.lane.b32.xlu0 %v1500, 96
    %v1514 = vpop.permute.xlu0 %1513
    %1515 = vrot.lane.b32.xlu0 %v1502, 96
    %v1516 = vpop.permute.xlu0 %1515
    %1517 = vrot.lane.b32.xlu0 %v1504, 96
    %v1518 = vpop.permute.xlu0 %1517
    %1519 = vrot.lane.b32.xlu0 %v1503, 96
    %v1520 = vpop.permute.xlu0 %1519
    %v1529 = vadd.f32 %v1474, %v1506
    %v1530 = vadd.f32 %v1475, %v1508
    %v1531 = vadd.f32 %v1476, %v1510
    %v1532 = vadd.f32 %v1477, %v1512
    %v1533 = vadd.f32 %v1478, %v1514
    %v1534 = vadd.f32 %v1479, %v1516
    %v1535 = vadd.f32 %v1480, %v1518
    %v1536 = vadd.f32 %v1481, %v1520
    %vm1537 = vcmask 1041408
    %v1538 = vrot.slane %v377, 6
    %v1539 = vrot.slane %v383, 6
    %v1540 = vsel %vm1537, %v1538, %v1539
    %v1541 = vrot.slane %v389, 6
    %v1542 = vsel %vm1537, %v1539, %v1541
    %v1543 = vrot.slane %v395, 6
    %v1544 = vsel %vm1537, %v1541, %v1543
    %v1545 = vrot.slane %v401, 6
    %v1546 = vrot.slane %v407, 6
    %v1547 = vsel %vm1537, %v1545, %v1546
    %v1548 = vrot.slane %v413, 6
    %v1549 = vsel %vm1537, %v1546, %v1548
    %v1550 = vrot.slane %v419, 6
    %v1551 = vsel %vm1537, %v1548, %v1550
    %1552 = vrot.lane.b32.xlu0 %v1540, 64
    %v1553 = vpop.permute.xlu0 %1552
    %1554 = vrot.lane.b32.xlu0 %v1542, 64
    %v1555 = vpop.permute.xlu0 %1554
    %1556 = vrot.lane.b32.xlu0 %v1544, 64
    %v1557 = vpop.permute.xlu0 %1556
    %1558 = vrot.lane.b32.xlu0 %v1543, 64
    %v1559 = vpop.permute.xlu0 %1558
    %1560 = vrot.lane.b32.xlu0 %v1547, 64
    %v1561 = vpop.permute.xlu0 %1560
    %1562 = vrot.lane.b32.xlu0 %v1549, 64
    %v1563 = vpop.permute.xlu0 %1562
    %1564 = vrot.lane.b32.xlu0 %v1551, 64
    %v1565 = vpop.permute.xlu0 %1564
    %1566 = vrot.lane.b32.xlu0 %v1550, 64
    %v1567 = vpop.permute.xlu0 %1566
    %v1576 = vadd.f32 %v1529, %v1553
    %v1577 = vadd.f32 %v1530, %v1555
    %v1578 = vadd.f32 %v1531, %v1557
    %v1579 = vadd.f32 %v1532, %v1559
    %v1580 = vadd.f32 %v1533, %v1561
    %v1581 = vadd.f32 %v1534, %v1563
    %v1582 = vadd.f32 %v1535, %v1565
    %v1583 = vadd.f32 %v1536, %v1567
    %vm1584 = vcmask 1040384
    %v1585 = vrot.slane %v377, 7
    %v1586 = vrot.slane %v383, 7
    %v1587 = vsel %vm1584, %v1585, %v1586
    %v1588 = vrot.slane %v389, 7
    %v1589 = vsel %vm1584, %v1586, %v1588
    %v1590 = vrot.slane %v395, 7
    %v1591 = vsel %vm1584, %v1588, %v1590
    %v1592 = vrot.slane %v401, 7
    %v1593 = vrot.slane %v407, 7
    %v1594 = vsel %vm1584, %v1592, %v1593
    %v1595 = vrot.slane %v413, 7
    %v1596 = vsel %vm1584, %v1593, %v1595
    %v1597 = vrot.slane %v419, 7
    %v1598 = vsel %vm1584, %v1595, %v1597
    %1599 = vrot.lane.b32.xlu0 %v1587, 32
    %v1600 = vpop.permute.xlu0 %1599
    %1601 = vrot.lane.b32.xlu0 %v1589, 32
    %v1602 = vpop.permute.xlu0 %1601
    %1603 = vrot.lane.b32.xlu0 %v1591, 32
    %v1604 = vpop.permute.xlu0 %1603
    %1605 = vrot.lane.b32.xlu0 %v1590, 32
    %v1606 = vpop.permute.xlu0 %1605
    %1607 = vrot.lane.b32.xlu0 %v1594, 32
    %v1608 = vpop.permute.xlu0 %1607
    %1609 = vrot.lane.b32.xlu0 %v1596, 32
    %v1610 = vpop.permute.xlu0 %1609
    %1611 = vrot.lane.b32.xlu0 %v1598, 32
    %v1612 = vpop.permute.xlu0 %1611
    %1613 = vrot.lane.b32.xlu0 %v1597, 32
    %v1614 = vpop.permute.xlu0 %1613
    %v1623 = vadd.f32 %v1576, %v1600
    %v1624 = vadd.f32 %v1577, %v1602
    %v1625 = vadd.f32 %v1578, %v1604
    %v1626 = vadd.f32 %v1579, %v1606
    %v1627 = vadd.f32 %v1580, %v1608
    %v1628 = vadd.f32 %v1581, %v1610
    %v1629 = vadd.f32 %v1582, %v1612
    %v1630 = vadd.f32 %v1583, %v1614
    %v1631 = vadd.f32 %v1623, %v967
    %v1632 = vadd.f32 %v1624, %v967
    %v1633 = vadd.f32 %v1625, %v967
    %v1634 = vadd.f32 %v1626, %v967
    %v1635 = vadd.f32 %v1627, %v967
    %v1636 = vadd.f32 %v1628, %v967
    %v1637 = vadd.f32 %v1629, %v967
    %v1638 = vadd.f32 %v1630, %v967
    %v1639 = vmax.f32 %v1631, 0.0
    %v1640 = vmax.f32 %v1632, 0.0
    %v1641 = vmax.f32 %v1633, 0.0
    %v1642 = vmax.f32 %v1634, 0.0
    %v1643 = vmax.f32 %v1635, 0.0
    %v1644 = vmax.f32 %v1636, 0.0
    %v1645 = vmax.f32 %v1637, 0.0
    %v1646 = vmax.f32 %v1638, 0.0
    %v1647 = vsel %vm1277, %v1639, -inf
    %v1648 = vsel %vm1277, %v1640, -inf
    %v1649 = vsel %vm1277, %v1641, -inf
    %v1650 = vmax.f32 %v1647, %v1649
    %vm1651 = vcmask 1041152
    %v1652 = vsel %vm1651, %v1642, -inf
    %v1653 = vmax.f32 %v1648, %v1652
    %v1654 = vmax.f32 %v1650, %v1653
    %v1655 = vrot.slane %v1654, 4
    %v1656 = vmax.f32 %v1654, %v1655
    %v1657 = vrot.slane %v1656, 2
    %v1658 = vmax.f32 %v1656, %v1657
    %v1659 = vrot.slane %v1658, 1
    %v1660 = vmax.f32 %v1658, %v1659
    %v1661 = vsel %vm1277, %v1643, -inf
    %v1662 = vsel %vm1277, %v1644, -inf
    %v1663 = vsel %vm1277, %v1645, -inf
    %v1664 = vmax.f32 %v1661, %v1663
    %v1665 = vsel %vm1651, %v1646, -inf
    %v1666 = vmax.f32 %v1662, %v1665
    %v1667 = vmax.f32 %v1664, %v1666
    %v1668 = vrot.slane %v1667, 4
    %v1669 = vmax.f32 %v1667, %v1668
    %v1670 = vrot.slane %v1669, 2
    %v1671 = vmax.f32 %v1669, %v1670
    %v1672 = vrot.slane %v1671, 1
    %v1673 = vmax.f32 %v1671, %v1672
    %v1680 = vrot.slane %v488, 1
    %v1681 = vrot.slane %v494, 1
    %v1682 = vsel %vm1020, %v1680, %v1681
    %v1683 = vrot.slane %v500, 1
    %v1684 = vsel %vm1020, %v1681, %v1683
    %v1685 = vrot.slane %v511, 1
    %v1686 = vrot.slane %v517, 1
    %v1687 = vsel %vm1020, %v1685, %v1686
    %v1688 = vrot.slane %v523, 1
    %v1689 = vsel %vm1020, %v1686, %v1688
    %1690 = vrot.lane.b32.xlu0 %v1682, 96
    %v1691 = vpop.permute.xlu0 %1690
    %1692 = vrot.lane.b32.xlu0 %v1684, 96
    %v1693 = vpop.permute.xlu0 %1692
    %1694 = vrot.lane.b32.xlu0 %v1683, 96
    %v1695 = vpop.permute.xlu0 %1694
    %1696 = vrot.lane.b32.xlu0 %v1687, 96
    %v1697 = vpop.permute.xlu0 %1696
    %1698 = vrot.lane.b32.xlu0 %v1689, 96
    %v1699 = vpop.permute.xlu0 %1698
    %1700 = vrot.lane.b32.xlu0 %v1688, 96
    %v1701 = vpop.permute.xlu0 %1700
    %v1708 = vadd.f32 %v377, %v1691
    %v1709 = vadd.f32 %v383, %v1693
    %v1710 = vadd.f32 %v389, %v1695
    %v1711 = vadd.f32 %v401, %v1697
    %v1712 = vadd.f32 %v407, %v1699
    %v1713 = vadd.f32 %v413, %v1701
    %v1714 = vrot.slane %v488, 2
    %v1715 = vrot.slane %v494, 2
    %v1716 = vsel %vm1165, %v1714, %v1715
    %v1717 = vrot.slane %v500, 2
    %v1718 = vsel %vm1165, %v1715, %v1717
    %v1719 = vrot.slane %v511, 2
    %v1720 = vrot.slane %v517, 2
    %v1721 = vsel %vm1165, %v1719, %v1720
    %v1722 = vrot.slane %v523, 2
    %v1723 = vsel %vm1165, %v1720, %v1722
    %1724 = vrot.lane.b32.xlu0 %v1716, 64
    %v1725 = vpop.permute.xlu0 %1724
    %1726 = vrot.lane.b32.xlu0 %v1718, 64
    %v1727 = vpop.permute.xlu0 %1726
    %1728 = vrot.lane.b32.xlu0 %v1717, 64
    %v1729 = vpop.permute.xlu0 %1728
    %1730 = vrot.lane.b32.xlu0 %v1721, 64
    %v1731 = vpop.permute.xlu0 %1730
    %1732 = vrot.lane.b32.xlu0 %v1723, 64
    %v1733 = vpop.permute.xlu0 %1732
    %1734 = vrot.lane.b32.xlu0 %v1722, 64
    %v1735 = vpop.permute.xlu0 %1734
    %v1742 = vadd.f32 %v1708, %v1725
    %v1743 = vadd.f32 %v1709, %v1727
    %v1744 = vadd.f32 %v1710, %v1729
    %v1745 = vadd.f32 %v1711, %v1731
    %v1746 = vadd.f32 %v1712, %v1733
    %v1747 = vadd.f32 %v1713, %v1735
    %v1748 = vrot.slane %v488, 3
    %v1749 = vrot.slane %v494, 3
    %v1750 = vsel %vm152, %v1748, %v1749
    %v1751 = vrot.slane %v500, 3
    %v1752 = vsel %vm152, %v1749, %v1751
    %v1753 = vrot.slane %v511, 3
    %v1754 = vrot.slane %v517, 3
    %v1755 = vsel %vm152, %v1753, %v1754
    %v1756 = vrot.slane %v523, 3
    %v1757 = vsel %vm152, %v1754, %v1756
    %1758 = vrot.lane.b32.xlu0 %v1750, 32
    %v1759 = vpop.permute.xlu0 %1758
    %1760 = vrot.lane.b32.xlu0 %v1752, 32
    %v1761 = vpop.permute.xlu0 %1760
    %1762 = vrot.lane.b32.xlu0 %v1751, 32
    %v1763 = vpop.permute.xlu0 %1762
    %1764 = vrot.lane.b32.xlu0 %v1755, 32
    %v1765 = vpop.permute.xlu0 %1764
    %1766 = vrot.lane.b32.xlu0 %v1757, 32
    %v1767 = vpop.permute.xlu0 %1766
    %1768 = vrot.lane.b32.xlu0 %v1756, 32
    %v1769 = vpop.permute.xlu0 %1768
    %v1776 = vadd.f32 %v1742, %v1759
    %v1777 = vadd.f32 %v1743, %v1761
    %v1778 = vadd.f32 %v1744, %v1763
    %v1779 = vadd.f32 %v1745, %v1765
    %v1780 = vadd.f32 %v1746, %v1767
    %v1781 = vadd.f32 %v1747, %v1769
    %v1782 = vrot.slane %v488, 4
    %v1783 = vrot.slane %v494, 4
    %v1784 = vsel %vm1451, %v1782, %v1783
    %v1785 = vrot.slane %v500, 4
    %v1786 = vsel %vm1451, %v1783, %v1785
    %v1787 = vrot.slane %v511, 4
    %v1788 = vrot.slane %v517, 4
    %v1789 = vsel %vm1451, %v1787, %v1788
    %v1790 = vrot.slane %v523, 4
    %v1791 = vsel %vm1451, %v1788, %v1790
    %v1798 = vadd.f32 %v1776, %v1784
    %v1799 = vadd.f32 %v1777, %v1786
    %v1800 = vadd.f32 %v1778, %v1785
    %v1801 = vadd.f32 %v1779, %v1789
    %v1802 = vadd.f32 %v1780, %v1791
    %v1803 = vadd.f32 %v1781, %v1790
    %v1810 = vrot.slane %v490, 5
    %v1811 = vrot.slane %v496, 5
    %v1812 = vsel %vm1490, %v1810, %v1811
    %v1813 = vrot.slane %v502, 5
    %v1814 = vsel %vm1490, %v1811, %v1813
    %v1815 = vrot.slane %v513, 5
    %v1816 = vrot.slane %v519, 5
    %v1817 = vsel %vm1490, %v1815, %v1816
    %v1818 = vrot.slane %v525, 5
    %v1819 = vsel %vm1490, %v1816, %v1818
    %1820 = vrot.lane.b32.xlu0 %v1812, 96
    %v1821 = vpop.permute.xlu0 %1820
    %1822 = vrot.lane.b32.xlu0 %v1814, 96
    %v1823 = vpop.permute.xlu0 %1822
    %1824 = vrot.lane.b32.xlu0 %v1813, 96
    %v1825 = vpop.permute.xlu0 %1824
    %1826 = vrot.lane.b32.xlu0 %v1817, 96
    %v1827 = vpop.permute.xlu0 %1826
    %1828 = vrot.lane.b32.xlu0 %v1819, 96
    %v1829 = vpop.permute.xlu0 %1828
    %1830 = vrot.lane.b32.xlu0 %v1818, 96
    %v1831 = vpop.permute.xlu0 %1830
    %v1838 = vadd.f32 %v1798, %v1821
    %v1839 = vadd.f32 %v1799, %v1823
    %v1840 = vadd.f32 %v1800, %v1825
    %v1841 = vadd.f32 %v1801, %v1827
    %v1842 = vadd.f32 %v1802, %v1829
    %v1843 = vadd.f32 %v1803, %v1831
    %v1844 = vrot.slane %v490, 6
    %v1845 = vrot.slane %v496, 6
    %v1846 = vsel %vm1537, %v1844, %v1845
    %v1847 = vrot.slane %v502, 6
    %v1848 = vsel %vm1537, %v1845, %v1847
    %v1849 = vrot.slane %v513, 6
    %v1850 = vrot.slane %v519, 6
    %v1851 = vsel %vm1537, %v1849, %v1850
    %v1852 = vrot.slane %v525, 6
    %v1853 = vsel %vm1537, %v1850, %v1852
    %1854 = vrot.lane.b32.xlu0 %v1846, 64
    %v1855 = vpop.permute.xlu0 %1854
    %1856 = vrot.lane.b32.xlu0 %v1848, 64
    %v1857 = vpop.permute.xlu0 %1856
    %1858 = vrot.lane.b32.xlu0 %v1847, 64
    %v1859 = vpop.permute.xlu0 %1858
    %1860 = vrot.lane.b32.xlu0 %v1851, 64
    %v1861 = vpop.permute.xlu0 %1860
    %1862 = vrot.lane.b32.xlu0 %v1853, 64
    %v1863 = vpop.permute.xlu0 %1862
    %1864 = vrot.lane.b32.xlu0 %v1852, 64
    %v1865 = vpop.permute.xlu0 %1864
    %v1872 = vadd.f32 %v1838, %v1855
    %v1873 = vadd.f32 %v1839, %v1857
    %v1874 = vadd.f32 %v1840, %v1859
    %v1875 = vadd.f32 %v1841, %v1861
    %v1876 = vadd.f32 %v1842, %v1863
    %v1877 = vadd.f32 %v1843, %v1865
    %v1878 = vrot.slane %v490, 7
    %v1879 = vrot.slane %v496, 7
    %v1880 = vsel %vm1584, %v1878, %v1879
    %v1881 = vrot.slane %v502, 7
    %v1882 = vsel %vm1584, %v1879, %v1881
    %v1883 = vrot.slane %v513, 7
    %v1884 = vrot.slane %v519, 7
    %v1885 = vsel %vm1584, %v1883, %v1884
    %v1886 = vrot.slane %v525, 7
    %v1887 = vsel %vm1584, %v1884, %v1886
    %1888 = vrot.lane.b32.xlu0 %v1880, 32
    %v1889 = vpop.permute.xlu0 %1888
    %1890 = vrot.lane.b32.xlu0 %v1882, 32
    %v1891 = vpop.permute.xlu0 %1890
    %1892 = vrot.lane.b32.xlu0 %v1881, 32
    %v1893 = vpop.permute.xlu0 %1892
    %1894 = vrot.lane.b32.xlu0 %v1885, 32
    %v1895 = vpop.permute.xlu0 %1894
    %1896 = vrot.lane.b32.xlu0 %v1887, 32
    %v1897 = vpop.permute.xlu0 %1896
    %1898 = vrot.lane.b32.xlu0 %v1886, 32
    %v1899 = vpop.permute.xlu0 %1898
    %v1906 = vadd.f32 %v1872, %v1889
    %v1907 = vadd.f32 %v1873, %v1891
    %v1908 = vadd.f32 %v1874, %v1893
    %v1909 = vadd.f32 %v1875, %v1895
    %v1910 = vadd.f32 %v1876, %v1897
    %v1911 = vadd.f32 %v1877, %v1899
    %v1912 = vadd.f32 %v1906, %v496
    %v1913 = vadd.f32 %v1907, %v502
    %v1914 = vadd.f32 %v1908, %v507
    %v1915 = vadd.f32 %v1909, %v519
    %v1916 = vadd.f32 %v1910, %v525
    %v1917 = vadd.f32 %v1911, %v530
    %v1924 = vrot.slane %v604, 1
    %v1925 = vrot.slane %v610, 1
    %v1926 = vsel %vm1020, %v1924, %v1925
    %v1927 = vrot.slane %v616, 1
    %v1928 = vsel %vm1020, %v1925, %v1927
    %v1929 = vrot.slane %v627, 1
    %v1930 = vrot.slane %v633, 1
    %v1931 = vsel %vm1020, %v1929, %v1930
    %v1932 = vrot.slane %v639, 1
    %v1933 = vsel %vm1020, %v1930, %v1932
    %1934 = vrot.lane.b32.xlu0 %v1926, 96
    %v1935 = vpop.permute.xlu0 %1934
    %1936 = vrot.lane.b32.xlu0 %v1928, 96
    %v1937 = vpop.permute.xlu0 %1936
    %1938 = vrot.lane.b32.xlu0 %v1927, 96
    %v1939 = vpop.permute.xlu0 %1938
    %1940 = vrot.lane.b32.xlu0 %v1931, 96
    %v1941 = vpop.permute.xlu0 %1940
    %1942 = vrot.lane.b32.xlu0 %v1933, 96
    %v1943 = vpop.permute.xlu0 %1942
    %1944 = vrot.lane.b32.xlu0 %v1932, 96
    %v1945 = vpop.permute.xlu0 %1944
    %v1952 = vadd.f32 %v1912, %v1935
    %v1953 = vadd.f32 %v1913, %v1937
    %v1954 = vadd.f32 %v1914, %v1939
    %v1955 = vadd.f32 %v1915, %v1941
    %v1956 = vadd.f32 %v1916, %v1943
    %v1957 = vadd.f32 %v1917, %v1945
    %v1958 = vrot.slane %v604, 2
    %v1959 = vrot.slane %v610, 2
    %v1960 = vsel %vm1165, %v1958, %v1959
    %v1961 = vrot.slane %v616, 2
    %v1962 = vsel %vm1165, %v1959, %v1961
    %v1963 = vrot.slane %v627, 2
    %v1964 = vrot.slane %v633, 2
    %v1965 = vsel %vm1165, %v1963, %v1964
    %v1966 = vrot.slane %v639, 2
    %v1967 = vsel %vm1165, %v1964, %v1966
    %1968 = vrot.lane.b32.xlu0 %v1960, 64
    %v1969 = vpop.permute.xlu0 %1968
    %1970 = vrot.lane.b32.xlu0 %v1962, 64
    %v1971 = vpop.permute.xlu0 %1970
    %1972 = vrot.lane.b32.xlu0 %v1961, 64
    %v1973 = vpop.permute.xlu0 %1972
    %1974 = vrot.lane.b32.xlu0 %v1965, 64
    %v1975 = vpop.permute.xlu0 %1974
    %1976 = vrot.lane.b32.xlu0 %v1967, 64
    %v1977 = vpop.permute.xlu0 %1976
    %1978 = vrot.lane.b32.xlu0 %v1966, 64
    %v1979 = vpop.permute.xlu0 %1978
    %v1986 = vadd.f32 %v1952, %v1969
    %v1987 = vadd.f32 %v1953, %v1971
    %v1988 = vadd.f32 %v1954, %v1973
    %v1989 = vadd.f32 %v1955, %v1975
    %v1990 = vadd.f32 %v1956, %v1977
    %v1991 = vadd.f32 %v1957, %v1979
    %v1992 = vrot.slane %v604, 3
    %v1993 = vrot.slane %v610, 3
    %v1994 = vsel %vm152, %v1992, %v1993
    %v1995 = vrot.slane %v616, 3
    %v1996 = vsel %vm152, %v1993, %v1995
    %v1997 = vrot.slane %v627, 3
    %v1998 = vrot.slane %v633, 3
    %v1999 = vsel %vm152, %v1997, %v1998
    %v2000 = vrot.slane %v639, 3
    %v2001 = vsel %vm152, %v1998, %v2000
    %2002 = vrot.lane.b32.xlu0 %v1994, 32
    %v2003 = vpop.permute.xlu0 %2002
    %2004 = vrot.lane.b32.xlu0 %v1996, 32
    %v2005 = vpop.permute.xlu0 %2004
    %2006 = vrot.lane.b32.xlu0 %v1995, 32
    %v2007 = vpop.permute.xlu0 %2006
    %2008 = vrot.lane.b32.xlu0 %v1999, 32
    %v2009 = vpop.permute.xlu0 %2008
    %2010 = vrot.lane.b32.xlu0 %v2001, 32
    %v2011 = vpop.permute.xlu0 %2010
    %2012 = vrot.lane.b32.xlu0 %v2000, 32
    %v2013 = vpop.permute.xlu0 %2012
    %v2020 = vadd.f32 %v1986, %v2003
    %v2021 = vadd.f32 %v1987, %v2005
    %v2022 = vadd.f32 %v1988, %v2007
    %v2023 = vadd.f32 %v1989, %v2009
    %v2024 = vadd.f32 %v1990, %v2011
    %v2025 = vadd.f32 %v1991, %v2013
    %v2026 = vrot.slane %v604, 4
    %v2027 = vrot.slane %v610, 4
    %v2028 = vsel %vm1451, %v2026, %v2027
    %v2029 = vrot.slane %v616, 4
    %v2030 = vsel %vm1451, %v2027, %v2029
    %v2031 = vrot.slane %v627, 4
    %v2032 = vrot.slane %v633, 4
    %v2033 = vsel %vm1451, %v2031, %v2032
    %v2034 = vrot.slane %v639, 4
    %v2035 = vsel %vm1451, %v2032, %v2034
    %v2042 = vadd.f32 %v2020, %v2028
    %v2043 = vadd.f32 %v2021, %v2030
    %v2044 = vadd.f32 %v2022, %v2029
    %v2045 = vadd.f32 %v2023, %v2033
    %v2046 = vadd.f32 %v2024, %v2035
    %v2047 = vadd.f32 %v2025, %v2034
    %v2054 = vrot.slane %v606, 5
    %v2055 = vrot.slane %v612, 5
    %v2056 = vsel %vm1490, %v2054, %v2055
    %v2057 = vrot.slane %v618, 5
    %v2058 = vsel %vm1490, %v2055, %v2057
    %v2059 = vrot.slane %v629, 5
    %v2060 = vrot.slane %v635, 5
    %v2061 = vsel %vm1490, %v2059, %v2060
    %v2062 = vrot.slane %v641, 5
    %v2063 = vsel %vm1490, %v2060, %v2062
    %2064 = vrot.lane.b32.xlu0 %v2056, 96
    %v2065 = vpop.permute.xlu0 %2064
    %2066 = vrot.lane.b32.xlu0 %v2058, 96
    %v2067 = vpop.permute.xlu0 %2066
    %2068 = vrot.lane.b32.xlu0 %v2057, 96
    %v2069 = vpop.permute.xlu0 %2068
    %2070 = vrot.lane.b32.xlu0 %v2061, 96
    %v2071 = vpop.permute.xlu0 %2070
    %2072 = vrot.lane.b32.xlu0 %v2063, 96
    %v2073 = vpop.permute.xlu0 %2072
    %2074 = vrot.lane.b32.xlu0 %v2062, 96
    %v2075 = vpop.permute.xlu0 %2074
    %v2082 = vadd.f32 %v2042, %v2065
    %v2083 = vadd.f32 %v2043, %v2067
    %v2084 = vadd.f32 %v2044, %v2069
    %v2085 = vadd.f32 %v2045, %v2071
    %v2086 = vadd.f32 %v2046, %v2073
    %v2087 = vadd.f32 %v2047, %v2075
    %v2088 = vrot.slane %v606, 6
    %v2089 = vrot.slane %v612, 6
    %v2090 = vsel %vm1537, %v2088, %v2089
    %v2091 = vrot.slane %v618, 6
    %v2092 = vsel %vm1537, %v2089, %v2091
    %v2093 = vrot.slane %v629, 6
    %v2094 = vrot.slane %v635, 6
    %v2095 = vsel %vm1537, %v2093, %v2094
    %v2096 = vrot.slane %v641, 6
    %v2097 = vsel %vm1537, %v2094, %v2096
    %2098 = vrot.lane.b32.xlu0 %v2090, 64
    %v2099 = vpop.permute.xlu0 %2098
    %2100 = vrot.lane.b32.xlu0 %v2092, 64
    %v2101 = vpop.permute.xlu0 %2100
    %2102 = vrot.lane.b32.xlu0 %v2091, 64
    %v2103 = vpop.permute.xlu0 %2102
    %2104 = vrot.lane.b32.xlu0 %v2095, 64
    %v2105 = vpop.permute.xlu0 %2104
    %2106 = vrot.lane.b32.xlu0 %v2097, 64
    %v2107 = vpop.permute.xlu0 %2106
    %2108 = vrot.lane.b32.xlu0 %v2096, 64
    %v2109 = vpop.permute.xlu0 %2108
    %v2116 = vadd.f32 %v2082, %v2099
    %v2117 = vadd.f32 %v2083, %v2101
    %v2118 = vadd.f32 %v2084, %v2103
    %v2119 = vadd.f32 %v2085, %v2105
    %v2120 = vadd.f32 %v2086, %v2107
    %v2121 = vadd.f32 %v2087, %v2109
    %v2122 = vrot.slane %v606, 7
    %v2123 = vrot.slane %v612, 7
    %v2124 = vsel %vm1584, %v2122, %v2123
    %v2125 = vrot.slane %v618, 7
    %v2126 = vsel %vm1584, %v2123, %v2125
    %v2127 = vrot.slane %v629, 7
    %v2128 = vrot.slane %v635, 7
    %v2129 = vsel %vm1584, %v2127, %v2128
    %v2130 = vrot.slane %v641, 7
    %v2131 = vsel %vm1584, %v2128, %v2130
    %2132 = vrot.lane.b32.xlu0 %v2124, 32
    %v2133 = vpop.permute.xlu0 %2132
    %2134 = vrot.lane.b32.xlu0 %v2126, 32
    %v2135 = vpop.permute.xlu0 %2134
    %2136 = vrot.lane.b32.xlu0 %v2125, 32
    %v2137 = vpop.permute.xlu0 %2136
    %2138 = vrot.lane.b32.xlu0 %v2129, 32
    %v2139 = vpop.permute.xlu0 %2138
    %2140 = vrot.lane.b32.xlu0 %v2131, 32
    %v2141 = vpop.permute.xlu0 %2140
    %2142 = vrot.lane.b32.xlu0 %v2130, 32
    %v2143 = vpop.permute.xlu0 %2142
    %v2150 = vadd.f32 %v2116, %v2133
    %v2151 = vadd.f32 %v2117, %v2135
    %v2152 = vadd.f32 %v2118, %v2137
    %v2153 = vadd.f32 %v2119, %v2139
    %v2154 = vadd.f32 %v2120, %v2141
    %v2155 = vadd.f32 %v2121, %v2143
    %v2156 = vrot.slane %v962, 1
    %v2157 = vlaneseq
    %v2158 = vshrl.u32 %v2157, 7
    %v2159 = vsub.s32 0, %v2158
    %v2160 = vrot.slane %v2156, %v2159
    %2161 = vrot.lane.b32.xlu0 %v2160, 96
    %v2162 = vpop.permute.xlu0 %2161
    %v2164 = vadd.f32 %v2150, %v2162
    %v2165 = vadd.f32 %v2151, %v2162
    %v2166 = vadd.f32 %v2152, %v2162
    %v2167 = vadd.f32 %v2153, %v2162
    %v2168 = vadd.f32 %v2154, %v2162
    %v2169 = vadd.f32 %v2155, %v2162
    %v2170 = vmax.f32 %v2164, 0.0
    %v2171 = vmax.f32 %v2165, 0.0
    %v2172 = vmax.f32 %v2166, 0.0
    %v2173 = vmax.f32 %v2167, 0.0
    %v2174 = vmax.f32 %v2168, 0.0
    %v2175 = vmax.f32 %v2169, 0.0
    %v2176 = vsel %vm1277, %v2170, -inf
    %v2177 = vsel %vm1277, %v2171, -inf
    %v2178 = vsel %vm1651, %v2172, -inf
    %v2179 = vmax.f32 %v2176, %v2178
    %v2180 = vmax.f32 %v2179, %v2177
    %v2181 = vrot.slane %v2180, 4
    %v2182 = vmax.f32 %v2180, %v2181
    %v2183 = vrot.slane %v2182, 2
    %v2184 = vmax.f32 %v2182, %v2183
    %v2185 = vrot.slane %v2184, 1
    %v2186 = vmax.f32 %v2184, %v2185
    %v2187 = vsel %vm1277, %v2173, -inf
    %v2188 = vsel %vm1277, %v2174, -inf
    %v2189 = vsel %vm1651, %v2175, -inf
    %v2190 = vmax.f32 %v2187, %v2189
    %v2191 = vmax.f32 %v2190, %v2188
    %v2192 = vrot.slane %v2191, 4
    %v2193 = vmax.f32 %v2191, %v2192
    %v2194 = vrot.slane %v2193, 2
    %v2195 = vmax.f32 %v2193, %v2194
    %v2196 = vrot.slane %v2195, 1
    %v2197 = vmax.f32 %v2195, %v2196
    %v2202 = vrot.slane %v710, 1
    %v2203 = vrot.slane %v716, 1
    %v2204 = vsel %vm1020, %v2202, %v2203
    %v2205 = vrot.slane %v731, 1
    %v2206 = vrot.slane %v737, 1
    %v2207 = vsel %vm1020, %v2205, %v2206
    %2208 = vrot.lane.b32.xlu0 %v2204, 96
    %v2209 = vpop.permute.xlu0 %2208
    %2210 = vrot.lane.b32.xlu0 %v2203, 96
    %v2211 = vpop.permute.xlu0 %2210
    %2212 = vrot.lane.b32.xlu0 %v2207, 96
    %v2213 = vpop.permute.xlu0 %2212
    %2214 = vrot.lane.b32.xlu0 %v2206, 96
    %v2215 = vpop.permute.xlu0 %2214
    %v2220 = vadd.f32 %v600, %v2209
    %v2221 = vadd.f32 %v606, %v2211
    %v2222 = vadd.f32 %v623, %v2213
    %v2223 = vadd.f32 %v629, %v2215
    %v2224 = vrot.slane %v710, 2
    %v2225 = vrot.slane %v716, 2
    %v2226 = vsel %vm1165, %v2224, %v2225
    %v2227 = vrot.slane %v731, 2
    %v2228 = vrot.slane %v737, 2
    %v2229 = vsel %vm1165, %v2227, %v2228
    %2230 = vrot.lane.b32.xlu0 %v2226, 64
    %v2231 = vpop.permute.xlu0 %2230
    %2232 = vrot.lane.b32.xlu0 %v2225, 64
    %v2233 = vpop.permute.xlu0 %2232
    %2234 = vrot.lane.b32.xlu0 %v2229, 64
    %v2235 = vpop.permute.xlu0 %2234
    %2236 = vrot.lane.b32.xlu0 %v2228, 64
    %v2237 = vpop.permute.xlu0 %2236
    %v2242 = vadd.f32 %v2220, %v2231
    %v2243 = vadd.f32 %v2221, %v2233
    %v2244 = vadd.f32 %v2222, %v2235
    %v2245 = vadd.f32 %v2223, %v2237
    %v2246 = vrot.slane %v710, 3
    %v2247 = vrot.slane %v716, 3
    %v2248 = vsel %vm152, %v2246, %v2247
    %v2249 = vrot.slane %v731, 3
    %v2250 = vrot.slane %v737, 3
    %v2251 = vsel %vm152, %v2249, %v2250
    %2252 = vrot.lane.b32.xlu0 %v2248, 32
    %v2253 = vpop.permute.xlu0 %2252
    %2254 = vrot.lane.b32.xlu0 %v2247, 32
    %v2255 = vpop.permute.xlu0 %2254
    %2256 = vrot.lane.b32.xlu0 %v2251, 32
    %v2257 = vpop.permute.xlu0 %2256
    %2258 = vrot.lane.b32.xlu0 %v2250, 32
    %v2259 = vpop.permute.xlu0 %2258
    %v2264 = vadd.f32 %v2242, %v2253
    %v2265 = vadd.f32 %v2243, %v2255
    %v2266 = vadd.f32 %v2244, %v2257
    %v2267 = vadd.f32 %v2245, %v2259
    %v2268 = vrot.slane %v710, 4
    %v2269 = vrot.slane %v716, 4
    %v2270 = vsel %vm1451, %v2268, %v2269
    %v2271 = vrot.slane %v731, 4
    %v2272 = vrot.slane %v737, 4
    %v2273 = vsel %vm1451, %v2271, %v2272
    %v2278 = vadd.f32 %v2264, %v2270
    %v2279 = vadd.f32 %v2265, %v2269
    %v2280 = vadd.f32 %v2266, %v2273
    %v2281 = vadd.f32 %v2267, %v2272
    %v2286 = vrot.slane %v712, 5
    %v2287 = vrot.slane %v718, 5
    %v2288 = vsel %vm1490, %v2286, %v2287
    %v2289 = vrot.slane %v733, 5
    %v2290 = vrot.slane %v739, 5
    %v2291 = vsel %vm1490, %v2289, %v2290
    %2292 = vrot.lane.b32.xlu0 %v2288, 96
    %v2293 = vpop.permute.xlu0 %2292
    %2294 = vrot.lane.b32.xlu0 %v2287, 96
    %v2295 = vpop.permute.xlu0 %2294
    %2296 = vrot.lane.b32.xlu0 %v2291, 96
    %v2297 = vpop.permute.xlu0 %2296
    %2298 = vrot.lane.b32.xlu0 %v2290, 96
    %v2299 = vpop.permute.xlu0 %2298
    %v2304 = vadd.f32 %v2278, %v2293
    %v2305 = vadd.f32 %v2279, %v2295
    %v2306 = vadd.f32 %v2280, %v2297
    %v2307 = vadd.f32 %v2281, %v2299
    %v2308 = vrot.slane %v712, 6
    %v2309 = vrot.slane %v718, 6
    %v2310 = vsel %vm1537, %v2308, %v2309
    %v2311 = vrot.slane %v733, 6
    %v2312 = vrot.slane %v739, 6
    %v2313 = vsel %vm1537, %v2311, %v2312
    %2314 = vrot.lane.b32.xlu0 %v2310, 64
    %v2315 = vpop.permute.xlu0 %2314
    %2316 = vrot.lane.b32.xlu0 %v2309, 64
    %v2317 = vpop.permute.xlu0 %2316
    %2318 = vrot.lane.b32.xlu0 %v2313, 64
    %v2319 = vpop.permute.xlu0 %2318
    %2320 = vrot.lane.b32.xlu0 %v2312, 64
    %v2321 = vpop.permute.xlu0 %2320
    %v2326 = vadd.f32 %v2304, %v2315
    %v2327 = vadd.f32 %v2305, %v2317
    %v2328 = vadd.f32 %v2306, %v2319
    %v2329 = vadd.f32 %v2307, %v2321
    %v2330 = vrot.slane %v712, 7
    %v2331 = vrot.slane %v718, 7
    %v2332 = vsel %vm1584, %v2330, %v2331
    %v2333 = vrot.slane %v733, 7
    %v2334 = vrot.slane %v739, 7
    %v2335 = vsel %vm1584, %v2333, %v2334
    %2336 = vrot.lane.b32.xlu0 %v2332, 32
    %v2337 = vpop.permute.xlu0 %2336
    %2338 = vrot.lane.b32.xlu0 %v2331, 32
    %v2339 = vpop.permute.xlu0 %2338
    %2340 = vrot.lane.b32.xlu0 %v2335, 32
    %v2341 = vpop.permute.xlu0 %2340
    %2342 = vrot.lane.b32.xlu0 %v2334, 32
    %v2343 = vpop.permute.xlu0 %2342
    %v2348 = vadd.f32 %v2326, %v2337
    %v2349 = vadd.f32 %v2327, %v2339
    %v2350 = vadd.f32 %v2328, %v2341
    %v2351 = vadd.f32 %v2329, %v2343
    %v2352 = vadd.f32 %v2348, %v718
    %v2353 = vadd.f32 %v2349, %v723
    %v2354 = vadd.f32 %v2350, %v739
    %v2355 = vadd.f32 %v2351, %v744
    %v2360 = vrot.slane %v821, 1
    %v2361 = vrot.slane %v827, 1
    %v2362 = vsel %vm1020, %v2360, %v2361
    %v2363 = vrot.slane %v842, 1
    %v2364 = vrot.slane %v848, 1
    %v2365 = vsel %vm1020, %v2363, %v2364
    %2366 = vrot.lane.b32.xlu0 %v2362, 96
    %v2367 = vpop.permute.xlu0 %2366
    %2368 = vrot.lane.b32.xlu0 %v2361, 96
    %v2369 = vpop.permute.xlu0 %2368
    %2370 = vrot.lane.b32.xlu0 %v2365, 96
    %v2371 = vpop.permute.xlu0 %2370
    %2372 = vrot.lane.b32.xlu0 %v2364, 96
    %v2373 = vpop.permute.xlu0 %2372
    %v2378 = vadd.f32 %v2352, %v2367
    %v2379 = vadd.f32 %v2353, %v2369
    %v2380 = vadd.f32 %v2354, %v2371
    %v2381 = vadd.f32 %v2355, %v2373
    %v2382 = vrot.slane %v821, 2
    %v2383 = vrot.slane %v827, 2
    %v2384 = vsel %vm1165, %v2382, %v2383
    %v2385 = vrot.slane %v842, 2
    %v2386 = vrot.slane %v848, 2
    %v2387 = vsel %vm1165, %v2385, %v2386
    %2388 = vrot.lane.b32.xlu0 %v2384, 64
    %v2389 = vpop.permute.xlu0 %2388
    %2390 = vrot.lane.b32.xlu0 %v2383, 64
    %v2391 = vpop.permute.xlu0 %2390
    %2392 = vrot.lane.b32.xlu0 %v2387, 64
    %v2393 = vpop.permute.xlu0 %2392
    %2394 = vrot.lane.b32.xlu0 %v2386, 64
    %v2395 = vpop.permute.xlu0 %2394
    %v2400 = vadd.f32 %v2378, %v2389
    %v2401 = vadd.f32 %v2379, %v2391
    %v2402 = vadd.f32 %v2380, %v2393
    %v2403 = vadd.f32 %v2381, %v2395
    %v2404 = vrot.slane %v821, 3
    %v2405 = vrot.slane %v827, 3
    %v2406 = vsel %vm152, %v2404, %v2405
    %v2407 = vrot.slane %v842, 3
    %v2408 = vrot.slane %v848, 3
    %v2409 = vsel %vm152, %v2407, %v2408
    %2410 = vrot.lane.b32.xlu0 %v2406, 32
    %v2411 = vpop.permute.xlu0 %2410
    %2412 = vrot.lane.b32.xlu0 %v2405, 32
    %v2413 = vpop.permute.xlu0 %2412
    %2414 = vrot.lane.b32.xlu0 %v2409, 32
    %v2415 = vpop.permute.xlu0 %2414
    %2416 = vrot.lane.b32.xlu0 %v2408, 32
    %v2417 = vpop.permute.xlu0 %2416
    %v2422 = vadd.f32 %v2400, %v2411
    %v2423 = vadd.f32 %v2401, %v2413
    %v2424 = vadd.f32 %v2402, %v2415
    %v2425 = vadd.f32 %v2403, %v2417
    %v2426 = vrot.slane %v821, 4
    %v2427 = vrot.slane %v827, 4
    %v2428 = vsel %vm1451, %v2426, %v2427
    %v2429 = vrot.slane %v842, 4
    %v2430 = vrot.slane %v848, 4
    %v2431 = vsel %vm1451, %v2429, %v2430
    %v2436 = vadd.f32 %v2422, %v2428
    %v2437 = vadd.f32 %v2423, %v2427
    %v2438 = vadd.f32 %v2424, %v2431
    %v2439 = vadd.f32 %v2425, %v2430
    %v2444 = vrot.slane %v823, 5
    %v2445 = vrot.slane %v829, 5
    %v2446 = vsel %vm1490, %v2444, %v2445
    %v2447 = vrot.slane %v844, 5
    %v2448 = vrot.slane %v850, 5
    %v2449 = vsel %vm1490, %v2447, %v2448
    %2450 = vrot.lane.b32.xlu0 %v2446, 96
    %v2451 = vpop.permute.xlu0 %2450
    %2452 = vrot.lane.b32.xlu0 %v2445, 96
    %v2453 = vpop.permute.xlu0 %2452
    %2454 = vrot.lane.b32.xlu0 %v2449, 96
    %v2455 = vpop.permute.xlu0 %2454
    %2456 = vrot.lane.b32.xlu0 %v2448, 96
    %v2457 = vpop.permute.xlu0 %2456
    %v2462 = vadd.f32 %v2436, %v2451
    %v2463 = vadd.f32 %v2437, %v2453
    %v2464 = vadd.f32 %v2438, %v2455
    %v2465 = vadd.f32 %v2439, %v2457
    %v2466 = vrot.slane %v823, 6
    %v2467 = vrot.slane %v829, 6
    %v2468 = vsel %vm1537, %v2466, %v2467
    %v2469 = vrot.slane %v844, 6
    %v2470 = vrot.slane %v850, 6
    %v2471 = vsel %vm1537, %v2469, %v2470
    %2472 = vrot.lane.b32.xlu0 %v2468, 64
    %v2473 = vpop.permute.xlu0 %2472
    %2474 = vrot.lane.b32.xlu0 %v2467, 64
    %v2475 = vpop.permute.xlu0 %2474
    %2476 = vrot.lane.b32.xlu0 %v2471, 64
    %v2477 = vpop.permute.xlu0 %2476
    %2478 = vrot.lane.b32.xlu0 %v2470, 64
    %v2479 = vpop.permute.xlu0 %2478
    %v2484 = vadd.f32 %v2462, %v2473
    %v2485 = vadd.f32 %v2463, %v2475
    %v2486 = vadd.f32 %v2464, %v2477
    %v2487 = vadd.f32 %v2465, %v2479
    %v2488 = vrot.slane %v823, 7
    %v2489 = vrot.slane %v829, 7
    %v2490 = vsel %vm1584, %v2488, %v2489
    %v2491 = vrot.slane %v844, 7
    %v2492 = vrot.slane %v850, 7
    %v2493 = vsel %vm1584, %v2491, %v2492
    %2494 = vrot.lane.b32.xlu0 %v2490, 32
    %v2495 = vpop.permute.xlu0 %2494
    %2496 = vrot.lane.b32.xlu0 %v2489, 32
    %v2497 = vpop.permute.xlu0 %2496
    %2498 = vrot.lane.b32.xlu0 %v2493, 32
    %v2499 = vpop.permute.xlu0 %2498
    %2500 = vrot.lane.b32.xlu0 %v2492, 32
    %v2501 = vpop.permute.xlu0 %2500
    %v2506 = vadd.f32 %v2484, %v2495
    %v2507 = vadd.f32 %v2485, %v2497
    %v2508 = vadd.f32 %v2486, %v2499
    %v2509 = vadd.f32 %v2487, %v2501
    %v2510 = vadd.f32 %v2506, %v829
    %v2511 = vadd.f32 %v2507, %v834
    %v2512 = vadd.f32 %v2508, %v850
    %v2513 = vadd.f32 %v2509, %v855
    %v2518 = vrot.slane %v932, 1
    %v2519 = vrot.slane %v938, 1
    %v2520 = vsel %vm1020, %v2518, %v2519
    %v2521 = vrot.slane %v952, 1
    %v2522 = vrot.slane %v958, 1
    %v2523 = vsel %vm1020, %v2521, %v2522
    %2524 = vrot.lane.b32.xlu0 %v2520, 96
    %v2525 = vpop.permute.xlu0 %2524
    %2526 = vrot.lane.b32.xlu0 %v2519, 96
    %v2527 = vpop.permute.xlu0 %2526
    %2528 = vrot.lane.b32.xlu0 %v2523, 96
    %v2529 = vpop.permute.xlu0 %2528
    %2530 = vrot.lane.b32.xlu0 %v2522, 96
    %v2531 = vpop.permute.xlu0 %2530
    %v2536 = vadd.f32 %v2510, %v2525
    %v2537 = vadd.f32 %v2511, %v2527
    %v2538 = vadd.f32 %v2512, %v2529
    %v2539 = vadd.f32 %v2513, %v2531
    %v2540 = vrot.slane %v932, 2
    %v2541 = vrot.slane %v938, 2
    %v2542 = vsel %vm1165, %v2540, %v2541
    %v2543 = vrot.slane %v952, 2
    %v2544 = vrot.slane %v958, 2
    %v2545 = vsel %vm1165, %v2543, %v2544
    %2546 = vrot.lane.b32.xlu0 %v2542, 64
    %v2547 = vpop.permute.xlu0 %2546
    %2548 = vrot.lane.b32.xlu0 %v2541, 64
    %v2549 = vpop.permute.xlu0 %2548
    %2550 = vrot.lane.b32.xlu0 %v2545, 64
    %v2551 = vpop.permute.xlu0 %2550
    %2552 = vrot.lane.b32.xlu0 %v2544, 64
    %v2553 = vpop.permute.xlu0 %2552
    %v2558 = vadd.f32 %v2536, %v2547
    %v2559 = vadd.f32 %v2537, %v2549
    %v2560 = vadd.f32 %v2538, %v2551
    %v2561 = vadd.f32 %v2539, %v2553
    %v2562 = vrot.slane %v932, 3
    %v2563 = vrot.slane %v938, 3
    %v2564 = vsel %vm152, %v2562, %v2563
    %v2565 = vrot.slane %v952, 3
    %v2566 = vrot.slane %v958, 3
    %v2567 = vsel %vm152, %v2565, %v2566
    %2568 = vrot.lane.b32.xlu0 %v2564, 32
    %v2569 = vpop.permute.xlu0 %2568
    %2570 = vrot.lane.b32.xlu0 %v2563, 32
    %v2571 = vpop.permute.xlu0 %2570
    %2572 = vrot.lane.b32.xlu0 %v2567, 32
    %v2573 = vpop.permute.xlu0 %2572
    %2574 = vrot.lane.b32.xlu0 %v2566, 32
    %v2575 = vpop.permute.xlu0 %2574
    %v2580 = vadd.f32 %v2558, %v2569
    %v2581 = vadd.f32 %v2559, %v2571
    %v2582 = vadd.f32 %v2560, %v2573
    %v2583 = vadd.f32 %v2561, %v2575
    %v2584 = vrot.slane %v932, 4
    %v2585 = vrot.slane %v938, 4
    %v2586 = vsel %vm1451, %v2584, %v2585
    %v2587 = vrot.slane %v952, 4
    %v2588 = vrot.slane %v958, 4
    %v2589 = vsel %vm1451, %v2587, %v2588
    %v2594 = vadd.f32 %v2580, %v2586
    %v2595 = vadd.f32 %v2581, %v2585
    %v2596 = vadd.f32 %v2582, %v2589
    %v2597 = vadd.f32 %v2583, %v2588
    %v2602 = vrot.slane %v934, 5
    %v2603 = vrot.slane %v940, 5
    %v2604 = vsel %vm1490, %v2602, %v2603
    %v2605 = vrot.slane %v954, 5
    %v2606 = vrot.slane %v960, 5
    %v2607 = vsel %vm1490, %v2605, %v2606
    %2608 = vrot.lane.b32.xlu0 %v2604, 96
    %v2609 = vpop.permute.xlu0 %2608
    %2610 = vrot.lane.b32.xlu0 %v2603, 96
    %v2611 = vpop.permute.xlu0 %2610
    %2612 = vrot.lane.b32.xlu0 %v2607, 96
    %v2613 = vpop.permute.xlu0 %2612
    %2614 = vrot.lane.b32.xlu0 %v2606, 96
    %v2615 = vpop.permute.xlu0 %2614
    %v2620 = vadd.f32 %v2594, %v2609
    %v2621 = vadd.f32 %v2595, %v2611
    %v2622 = vadd.f32 %v2596, %v2613
    %v2623 = vadd.f32 %v2597, %v2615
    %v2624 = vrot.slane %v934, 6
    %v2625 = vrot.slane %v940, 6
    %v2626 = vsel %vm1537, %v2624, %v2625
    %v2627 = vrot.slane %v954, 6
    %v2628 = vrot.slane %v960, 6
    %v2629 = vsel %vm1537, %v2627, %v2628
    %2630 = vrot.lane.b32.xlu0 %v2626, 64
    %v2631 = vpop.permute.xlu0 %2630
    %2632 = vrot.lane.b32.xlu0 %v2625, 64
    %v2633 = vpop.permute.xlu0 %2632
    %2634 = vrot.lane.b32.xlu0 %v2629, 64
    %v2635 = vpop.permute.xlu0 %2634
    %2636 = vrot.lane.b32.xlu0 %v2628, 64
    %v2637 = vpop.permute.xlu0 %2636
    %v2642 = vadd.f32 %v2620, %v2631
    %v2643 = vadd.f32 %v2621, %v2633
    %v2644 = vadd.f32 %v2622, %v2635
    %v2645 = vadd.f32 %v2623, %v2637
    %v2646 = vrot.slane %v934, 7
    %v2647 = vrot.slane %v940, 7
    %v2648 = vsel %vm1584, %v2646, %v2647
    %v2649 = vrot.slane %v954, 7
    %v2650 = vrot.slane %v960, 7
    %v2651 = vsel %vm1584, %v2649, %v2650
    %2652 = vrot.lane.b32.xlu0 %v2648, 32
    %v2653 = vpop.permute.xlu0 %2652
    %2654 = vrot.lane.b32.xlu0 %v2647, 32
    %v2655 = vpop.permute.xlu0 %2654
    %2656 = vrot.lane.b32.xlu0 %v2651, 32
    %v2657 = vpop.permute.xlu0 %2656
    %2658 = vrot.lane.b32.xlu0 %v2650, 32
    %v2659 = vpop.permute.xlu0 %2658
    %v2664 = vadd.f32 %v2642, %v2653
    %v2665 = vadd.f32 %v2643, %v2655
    %v2666 = vadd.f32 %v2644, %v2657
    %v2667 = vadd.f32 %v2645, %v2659
    %2668 = vrot.lane.b32.xlu0 %v962, 96
    %v2669 = vpop.permute.xlu0 %2668
    %v2670 = vrot.slane %v2669, 1
    %v2671 = vlaneseq
    %v2672 = vshrl.u32 %v2671, 7
    %v2673 = vsub.s32 0, %v2672
    %v2674 = vrot.slane %v2670, %v2673
    %2675 = vrot.lane.b32.xlu0 %v2674, 96
    %v2676 = vpop.permute.xlu0 %2675
    %v2678 = vadd.f32 %v2664, %v2676
    %v2679 = vadd.f32 %v2665, %v2676
    %v2680 = vadd.f32 %v2666, %v2676
    %v2681 = vadd.f32 %v2667, %v2676
    %v2682 = vmax.f32 %v2678, 0.0
    %v2683 = vmax.f32 %v2679, 0.0
    %v2684 = vmax.f32 %v2680, 0.0
    %v2685 = vmax.f32 %v2681, 0.0
    %v2686 = vsel %vm1277, %v2682, -inf
    %v2687 = vsel %vm1651, %v2683, -inf
    %v2688 = vmax.f32 %v2686, %v2687
    %v2689 = vrot.slane %v2688, 4
    %v2690 = vmax.f32 %v2688, %v2689
    %v2691 = vrot.slane %v2690, 2
    %v2692 = vmax.f32 %v2690, %v2691
    %v2693 = vrot.slane %v2692, 1
    %v2694 = vmax.f32 %v2692, %v2693
    %v2695 = vsel %vm1277, %v2684, -inf
    %v2696 = vsel %vm1651, %v2685, -inf
    %v2697 = vmax.f32 %v2695, %v2696
    %v2698 = vrot.slane %v2697, 4
    %v2699 = vmax.f32 %v2697, %v2698
    %v2700 = vrot.slane %v2699, 2
    %v2701 = vmax.f32 %v2699, %v2700
    %v2702 = vrot.slane %v2701, 1
    %v2703 = vmax.f32 %v2701, %v2702
    %v2704 = vld [vmem:[%s3] sm:$0xff]
    %v2705 = vld [vmem:[%s3 + $0x8] sm:$0xff]
    %v2706 = vld [vmem:[%s3 + $0x10] sm:$0xff]
    %v2707 = vld [vmem:[%s3 + $0x18] sm:$0xff]
    %v2708 = vld [vmem:[%s3 + $0x20] sm:$0xff]
    %v2709 = vld [vmem:[%s3 + $0x28] sm:$0xff]
    %v2710 = vld [vmem:[%s3 + $0x30] sm:$0xff]
    %v2711 = vld [vmem:[%s3 + $0x38] sm:$0xff]
    %v2712 = vld [vmem:[%s3 + $0x40] sm:$0xff]
    %v2713 = vld [vmem:[%s3 + $0x48] sm:$0xff]
    %v2714 = vld [vmem:[%s3 + $0x50] sm:$0xff]
    %v2715 = vld [vmem:[%s3 + $0x58] sm:$0xff]
    %v2716 = vld [vmem:[%s3 + $0x60] sm:$0xff]
    %v2717 = vld [vmem:[%s3 + $0x68] sm:$0xff]
    %v2718 = vld [vmem:[%s3 + $0x70] sm:$0xff]
    %v2719 = vld [vmem:[%s3 + $0x78] sm:$0xff]
    %v2720 = vld [vmem:[%s3 + $0x80] sm:$0xff]
    %v2721 = vld [vmem:[%s3 + $0x88] sm:$0xff]
    %v2722 = vld [vmem:[%s3 + $0x90] sm:$0xff]
    %v2723 = vld [vmem:[%s3 + $0x98] sm:$0xff]
    %v2724 = vld [vmem:[%s3 + $0xa0] sm:$0xff]
    %v2725 = vld [vmem:[%s3 + $0xa8] sm:$0xff]
    %v2726 = vld [vmem:[%s3 + $0xb0] sm:$0xff]
    %v2727 = vld [vmem:[%s3 + $0xb8] sm:$0xff]
    %vm2730 = vcmask 1041409
    %v2731 = vsel %vm2730, %v1110, %v1097
    %2732 = vrot.lane.b32.xlu0 %v2731, 96
    %v2733 = vpop.permute.xlu0 %2732
    %v2734 = vsel %vm985, %v2733, 0
    %2736 = vmatprep.subr.mxu0 0.0
    %2737 = vmatpush1.msra.mxu0 %v2708
    %2738 = vmatprep.subr.mxu0 0.0
    %2739 = vmatpush1.msra.mxu0 %v2709
    %2740 = vmatprep.subr.mxu0 0.0
    %2741 = vmatpush1.msra.mxu0 %v2710
    %2742 = vmatprep.subr.mxu0 0.0
    %2743 = vmatpush1.msra.mxu0 %v2711
    %2744 = vmatprep.subr.mxu0 0.0
    %2745 = vmatpush1.msra.mxu0 0.0
    %2746 = vmatprep.subr.mxu0 0.0
    %2747 = vmatpush1.msra.mxu0 0.0
    %2748 = vmatprep.subr.mxu0 0.0
    %2749 = vmatpush1.msra.mxu0 0.0
    %2750 = vmatprep.subr.mxu0 0.0
    %2751 = vmatpush1.msra.mxu0 0.0
    %2752 = vmatprep.subr.mxu0 0.0
    %2753 = vmatpush1.msra.mxu0 0.0
    %2754 = vmatprep.subr.mxu0 0.0
    %2755 = vmatpush1.msra.mxu0 0.0
    %2756 = vmatprep.subr.mxu0 0.0
    %2757 = vmatpush1.msra.mxu0 0.0
    %2758 = vmatprep.subr.mxu0 0.0
    %2759 = vmatpush1.msra.mxu0 0.0
    %2760 = vmatprep.subr.mxu0 0.0
    %2761 = vmatpush1.msra.mxu0 0.0
    %2762 = vmatprep.subr.mxu0 0.0
    %2763 = vmatpush1.msra.mxu0 0.0
    %2764 = vmatprep.subr.mxu0 0.0
    %2765 = vmatpush1.msra.mxu0 0.0
    %2766 = vmatprep.subr.mxu0 0.0
    %2767 = vmatpush1.msra.mxu0 0.0
    %2768 = vmatprep.subr.mxu0 0.0
    %2769 = vmatpush1.msra.mxu0 0.0
    %2770 = vmatprep.subr.mxu0 0.0
    %2771 = vmatpush1.msra.mxu0 0.0
    %2772 = vmatprep.subr.mxu0 0.0
    %2773 = vmatpush1.msra.mxu0 0.0
    %2774 = vmatprep.subr.mxu0 0.0
    %2775 = vmatpush1.msra.mxu0 0.0
    %2776 = vmatprep.subr.mxu0 0.0
    %2777 = vmatpush1.msra.mxu0 0.0
    %2778 = vmatprep.subr.mxu0 0.0
    %2779 = vmatpush1.msra.mxu0 0.0
    %2780 = vmatprep.subr.mxu0 0.0
    %2781 = vmatpush1.msra.mxu0 0.0
    %2782 = vmatprep.subr.mxu0 0.0
    %2783 = vmatpush1.msra.mxu0 0.0
    %2784 = vmatprep.subr.mxu0 0.0
    %2785 = vmatpush1.msra.mxu0 0.0
    %2786 = vmatprep.subr.mxu0 0.0
    %2787 = vmatpush1.msra.mxu0 0.0
    %2788 = vmatprep.subr.mxu0 0.0
    %2789 = vmatpush1.msra.mxu0 0.0
    %2790 = vmatprep.subr.mxu0 0.0
    %2791 = vmatpush1.msra.mxu0 0.0
    %2792 = vmatprep.subr.mxu0 0.0
    %2793 = vmatpush1.msra.mxu0 0.0
    %2794 = vmatprep.subr.mxu0 0.0
    %2795 = vmatpush1.msra.mxu0 0.0
    %2796 = vmatprep.subr.mxu0 0.0
    %2797 = vmatpush1.msra.mxu0 0.0
    %2798 = vmatprep.subr.mxu0 0.0
    %2799 = vmatpush1.msra.mxu0 0.0
    %2800 = vmatprep.mubr.f32.mxu0 0.0
    %2801 = vmatmul.mubr.f32.gmra.mrb[0].mxu0 %v2734
    %v2802 = vpop.f32.mrb[0].mxu0
    %v2803 = vadd.f32 0.0, %v2802
    %v2804 = vpop.f32.mrb[0].mxu0
    %2805 = vdwg.mxu0
    %v2808 = vsel %vm2730, %v1011, %v998
    %v2809 = vsel %vm985, %v2808, 0
    %2811 = vmatprep.subr.mxu0 0.0
    %2812 = vmatpush1.msra.mxu0 %v2704
    %2813 = vmatprep.subr.mxu0 0.0
    %2814 = vmatpush1.msra.mxu0 %v2705
    %2815 = vmatprep.subr.mxu0 0.0
    %2816 = vmatpush1.msra.mxu0 %v2706
    %2817 = vmatprep.subr.mxu0 0.0
    %2818 = vmatpush1.msra.mxu0 %v2707
    %2819 = vmatprep.subr.mxu0 0.0
    %2820 = vmatpush1.msra.mxu0 0.0
    %2821 = vmatprep.subr.mxu0 0.0
    %2822 = vmatpush1.msra.mxu0 0.0
    %2823 = vmatprep.subr.mxu0 0.0
    %2824 = vmatpush1.msra.mxu0 0.0
    %2825 = vmatprep.subr.mxu0 0.0
    %2826 = vmatpush1.msra.mxu0 0.0
    %2827 = vmatprep.subr.mxu0 0.0
    %2828 = vmatpush1.msra.mxu0 0.0
    %2829 = vmatprep.subr.mxu0 0.0
    %2830 = vmatpush1.msra.mxu0 0.0
    %2831 = vmatprep.subr.mxu0 0.0
    %2832 = vmatpush1.msra.mxu0 0.0
    %2833 = vmatprep.subr.mxu0 0.0
    %2834 = vmatpush1.msra.mxu0 0.0
    %2835 = vmatprep.subr.mxu0 0.0
    %2836 = vmatpush1.msra.mxu0 0.0
    %2837 = vmatprep.subr.mxu0 0.0
    %2838 = vmatpush1.msra.mxu0 0.0
    %2839 = vmatprep.subr.mxu0 0.0
    %2840 = vmatpush1.msra.mxu0 0.0
    %2841 = vmatprep.subr.mxu0 0.0
    %2842 = vmatpush1.msra.mxu0 0.0
    %2843 = vmatprep.subr.mxu0 0.0
    %2844 = vmatpush1.msra.mxu0 0.0
    %2845 = vmatprep.subr.mxu0 0.0
    %2846 = vmatpush1.msra.mxu0 0.0
    %2847 = vmatprep.subr.mxu0 0.0
    %2848 = vmatpush1.msra.mxu0 0.0
    %2849 = vmatprep.subr.mxu0 0.0
    %2850 = vmatpush1.msra.mxu0 0.0
    %2851 = vmatprep.subr.mxu0 0.0
    %2852 = vmatpush1.msra.mxu0 0.0
    %2853 = vmatprep.subr.mxu0 0.0
    %2854 = vmatpush1.msra.mxu0 0.0
    %2855 = vmatprep.subr.mxu0 0.0
    %2856 = vmatpush1.msra.mxu0 0.0
    %2857 = vmatprep.subr.mxu0 0.0
    %2858 = vmatpush1.msra.mxu0 0.0
    %2859 = vmatprep.subr.mxu0 0.0
    %2860 = vmatpush1.msra.mxu0 0.0
    %2861 = vmatprep.subr.mxu0 0.0
    %2862 = vmatpush1.msra.mxu0 0.0
    %2863 = vmatprep.subr.mxu0 0.0
    %2864 = vmatpush1.msra.mxu0 0.0
    %2865 = vmatprep.subr.mxu0 0.0
    %2866 = vmatpush1.msra.mxu0 0.0
    %2867 = vmatprep.subr.mxu0 0.0
    %2868 = vmatpush1.msra.mxu0 0.0
    %2869 = vmatprep.subr.mxu0 0.0
    %2870 = vmatpush1.msra.mxu0 0.0
    %2871 = vmatprep.subr.mxu0 0.0
    %2872 = vmatpush1.msra.mxu0 0.0
    %2873 = vmatprep.subr.mxu0 0.0
    %2874 = vmatpush1.msra.mxu0 0.0
    %2875 = vmatprep.mubr.f32.mxu0 0.0
    %2876 = vmatmul.mubr.f32.gmra.mrb[0].mxu0 %v2809
    %v2877 = vpop.f32.mrb[0].mxu0
    %v2878 = vadd.f32 %v2803, %v2877
    %v2879 = vpop.f32.mrb[0].mxu0
    %2880 = vdwg.mxu0
    %v2883 = vsel %vm2730, %v1304, %v1291
    %2884 = vrot.lane.b32.xlu0 %v2883, 32
    %v2885 = vpop.permute.xlu0 %2884
    %v2886 = vsel %vm985, %v2885, 0
    %2888 = vmatprep.subr.mxu0 0.0
    %2889 = vmatpush1.msra.mxu0 %v2712
    %2890 = vmatprep.subr.mxu0 0.0
    %2891 = vmatpush1.msra.mxu0 %v2713
    %2892 = vmatprep.subr.mxu0 0.0
    %2893 = vmatpush1.msra.mxu0 %v2714
    %2894 = vmatprep.subr.mxu0 0.0
    %2895 = vmatpush1.msra.mxu0 %v2715
    %2896 = vmatprep.subr.mxu0 0.0
    %2897 = vmatpush1.msra.mxu0 0.0
    %2898 = vmatprep.subr.mxu0 0.0
    %2899 = vmatpush1.msra.mxu0 0.0
    %2900 = vmatprep.subr.mxu0 0.0
    %2901 = vmatpush1.msra.mxu0 0.0
    %2902 = vmatprep.subr.mxu0 0.0
    %2903 = vmatpush1.msra.mxu0 0.0
    %2904 = vmatprep.subr.mxu0 0.0
    %2905 = vmatpush1.msra.mxu0 0.0
    %2906 = vmatprep.subr.mxu0 0.0
    %2907 = vmatpush1.msra.mxu0 0.0
    %2908 = vmatprep.subr.mxu0 0.0
    %2909 = vmatpush1.msra.mxu0 0.0
    %2910 = vmatprep.subr.mxu0 0.0
    %2911 = vmatpush1.msra.mxu0 0.0
    %2912 = vmatprep.subr.mxu0 0.0
    %2913 = vmatpush1.msra.mxu0 0.0
    %2914 = vmatprep.subr.mxu0 0.0
    %2915 = vmatpush1.msra.mxu0 0.0
    %2916 = vmatprep.subr.mxu0 0.0
    %2917 = vmatpush1.msra.mxu0 0.0
    %2918 = vmatprep.subr.mxu0 0.0
    %2919 = vmatpush1.msra.mxu0 0.0
    %2920 = vmatprep.subr.mxu0 0.0
    %2921 = vmatpush1.msra.mxu0 0.0
    %2922 = vmatprep.subr.mxu0 0.0
    %2923 = vmatpush1.msra.mxu0 0.0
    %2924 = vmatprep.subr.mxu0 0.0
    %2925 = vmatpush1.msra.mxu0 0.0
    %2926 = vmatprep.subr.mxu0 0.0
    %2927 = vmatpush1.msra.mxu0 0.0
    %2928 = vmatprep.subr.mxu0 0.0
    %2929 = vmatpush1.msra.mxu0 0.0
    %2930 = vmatprep.subr.mxu0 0.0
    %2931 = vmatpush1.msra.mxu0 0.0
    %2932 = vmatprep.subr.mxu0 0.0
    %2933 = vmatpush1.msra.mxu0 0.0
    %2934 = vmatprep.subr.mxu0 0.0
    %2935 = vmatpush1.msra.mxu0 0.0
    %2936 = vmatprep.subr.mxu0 0.0
    %2937 = vmatpush1.msra.mxu0 0.0
    %2938 = vmatprep.subr.mxu0 0.0
    %2939 = vmatpush1.msra.mxu0 0.0
    %2940 = vmatprep.subr.mxu0 0.0
    %2941 = vmatpush1.msra.mxu0 0.0
    %2942 = vmatprep.subr.mxu0 0.0
    %2943 = vmatpush1.msra.mxu0 0.0
    %2944 = vmatprep.subr.mxu0 0.0
    %2945 = vmatpush1.msra.mxu0 0.0
    %2946 = vmatprep.subr.mxu0 0.0
    %2947 = vmatpush1.msra.mxu0 0.0
    %2948 = vmatprep.subr.mxu0 0.0
    %2949 = vmatpush1.msra.mxu0 0.0
    %2950 = vmatprep.subr.mxu0 0.0
    %2951 = vmatpush1.msra.mxu0 0.0
    %2952 = vmatprep.mubr.f32.mxu0 0.0
    %2953 = vmatmul.mubr.f32.gmra.mrb[0].mxu0 %v2886
    %v2954 = vpop.f32.mrb[0].mxu0
    %v2955 = vadd.f32 0.0, %v2954
    %v2956 = vpop.f32.mrb[0].mxu0
    %2957 = vdwg.mxu0
    %v2958 = vadd.f32 %v2878, %v2955
    %v2961 = vsel %vm2730, %v1673, %v1660
    %2962 = vrot.lane.b32.xlu0 %v2961, 32
    %v2963 = vpop.permute.xlu0 %2962
    %v2964 = vsel %vm985, %v2963, 0
    %2966 = vmatprep.subr.mxu0 0.0
    %2967 = vmatpush1.msra.mxu0 %v2716
    %2968 = vmatprep.subr.mxu0 0.0
    %2969 = vmatpush1.msra.mxu0 %v2717
    %2970 = vmatprep.subr.mxu0 0.0
    %2971 = vmatpush1.msra.mxu0 %v2718
    %2972 = vmatprep.subr.mxu0 0.0
    %2973 = vmatpush1.msra.mxu0 %v2719
    %2974 = vmatprep.subr.mxu0 0.0
    %2975 = vmatpush1.msra.mxu0 0.0
    %2976 = vmatprep.subr.mxu0 0.0
    %2977 = vmatpush1.msra.mxu0 0.0
    %2978 = vmatprep.subr.mxu0 0.0
    %2979 = vmatpush1.msra.mxu0 0.0
    %2980 = vmatprep.subr.mxu0 0.0
    %2981 = vmatpush1.msra.mxu0 0.0
    %2982 = vmatprep.subr.mxu0 0.0
    %2983 = vmatpush1.msra.mxu0 0.0
    %2984 = vmatprep.subr.mxu0 0.0
    %2985 = vmatpush1.msra.mxu0 0.0
    %2986 = vmatprep.subr.mxu0 0.0
    %2987 = vmatpush1.msra.mxu0 0.0
    %2988 = vmatprep.subr.mxu0 0.0
    %2989 = vmatpush1.msra.mxu0 0.0
    %2990 = vmatprep.subr.mxu0 0.0
    %2991 = vmatpush1.msra.mxu0 0.0
    %2992 = vmatprep.subr.mxu0 0.0
    %2993 = vmatpush1.msra.mxu0 0.0
    %2994 = vmatprep.subr.mxu0 0.0
    %2995 = vmatpush1.msra.mxu0 0.0
    %2996 = vmatprep.subr.mxu0 0.0
    %2997 = vmatpush1.msra.mxu0 0.0
    %2998 = vmatprep.subr.mxu0 0.0
    %2999 = vmatpush1.msra.mxu0 0.0
    %3000 = vmatprep.subr.mxu0 0.0
    %3001 = vmatpush1.msra.mxu0 0.0
    %3002 = vmatprep.subr.mxu0 0.0
    %3003 = vmatpush1.msra.mxu0 0.0
    %3004 = vmatprep.subr.mxu0 0.0
    %3005 = vmatpush1.msra.mxu0 0.0
    %3006 = vmatprep.subr.mxu0 0.0
    %3007 = vmatpush1.msra.mxu0 0.0
    %3008 = vmatprep.subr.mxu0 0.0
    %3009 = vmatpush1.msra.mxu0 0.0
    %3010 = vmatprep.subr.mxu0 0.0
    %3011 = vmatpush1.msra.mxu0 0.0
    %3012 = vmatprep.subr.mxu0 0.0
    %3013 = vmatpush1.msra.mxu0 0.0
    %3014 = vmatprep.subr.mxu0 0.0
    %3015 = vmatpush1.msra.mxu0 0.0
    %3016 = vmatprep.subr.mxu0 0.0
    %3017 = vmatpush1.msra.mxu0 0.0
    %3018 = vmatprep.subr.mxu0 0.0
    %3019 = vmatpush1.msra.mxu0 0.0
    %3020 = vmatprep.subr.mxu0 0.0
    %3021 = vmatpush1.msra.mxu0 0.0
    %3022 = vmatprep.subr.mxu0 0.0
    %3023 = vmatpush1.msra.mxu0 0.0
    %3024 = vmatprep.subr.mxu0 0.0
    %3025 = vmatpush1.msra.mxu0 0.0
    %3026 = vmatprep.subr.mxu0 0.0
    %3027 = vmatpush1.msra.mxu0 0.0
    %3028 = vmatprep.subr.mxu0 0.0
    %3029 = vmatpush1.msra.mxu0 0.0
    %3030 = vmatprep.mubr.f32.mxu0 0.0
    %3031 = vmatmul.mubr.f32.gmra.mrb[0].mxu0 %v2964
    %v3032 = vpop.f32.mrb[0].mxu0
    %v3033 = vadd.f32 0.0, %v3032
    %v3034 = vpop.f32.mrb[0].mxu0
    %3035 = vdwg.mxu0
    %v3036 = vadd.f32 %v2958, %v3033
    %v3039 = vsel %vm2730, %v2197, %v2186
    %3040 = vrot.lane.b32.xlu0 %v3039, 32
    %v3041 = vpop.permute.xlu0 %3040
    %v3042 = vsel %vm985, %v3041, 0
    %3044 = vmatprep.subr.mxu0 0.0
    %3045 = vmatpush1.msra.mxu0 %v2720
    %3046 = vmatprep.subr.mxu0 0.0
    %3047 = vmatpush1.msra.mxu0 %v2721
    %3048 = vmatprep.subr.mxu0 0.0
    %3049 = vmatpush1.msra.mxu0 %v2722
    %3050 = vmatprep.subr.mxu0 0.0
    %3051 = vmatpush1.msra.mxu0 %v2723
    %3052 = vmatprep.subr.mxu0 0.0
    %3053 = vmatpush1.msra.mxu0 0.0
    %3054 = vmatprep.subr.mxu0 0.0
    %3055 = vmatpush1.msra.mxu0 0.0
    %3056 = vmatprep.subr.mxu0 0.0
    %3057 = vmatpush1.msra.mxu0 0.0
    %3058 = vmatprep.subr.mxu0 0.0
    %3059 = vmatpush1.msra.mxu0 0.0
    %3060 = vmatprep.subr.mxu0 0.0
    %3061 = vmatpush1.msra.mxu0 0.0
    %3062 = vmatprep.subr.mxu0 0.0
    %3063 = vmatpush1.msra.mxu0 0.0
    %3064 = vmatprep.subr.mxu0 0.0
    %3065 = vmatpush1.msra.mxu0 0.0
    %3066 = vmatprep.subr.mxu0 0.0
    %3067 = vmatpush1.msra.mxu0 0.0
    %3068 = vmatprep.subr.mxu0 0.0
    %3069 = vmatpush1.msra.mxu0 0.0
    %3070 = vmatprep.subr.mxu0 0.0
    %3071 = vmatpush1.msra.mxu0 0.0
    %3072 = vmatprep.subr.mxu0 0.0
    %3073 = vmatpush1.msra.mxu0 0.0
    %3074 = vmatprep.subr.mxu0 0.0
    %3075 = vmatpush1.msra.mxu0 0.0
    %3076 = vmatprep.subr.mxu0 0.0
    %3077 = vmatpush1.msra.mxu0 0.0
    %3078 = vmatprep.subr.mxu0 0.0
    %3079 = vmatpush1.msra.mxu0 0.0
    %3080 = vmatprep.subr.mxu0 0.0
    %3081 = vmatpush1.msra.mxu0 0.0
    %3082 = vmatprep.subr.mxu0 0.0
    %3083 = vmatpush1.msra.mxu0 0.0
    %3084 = vmatprep.subr.mxu0 0.0
    %3085 = vmatpush1.msra.mxu0 0.0
    %3086 = vmatprep.subr.mxu0 0.0
    %3087 = vmatpush1.msra.mxu0 0.0
    %3088 = vmatprep.subr.mxu0 0.0
    %3089 = vmatpush1.msra.mxu0 0.0
    %3090 = vmatprep.subr.mxu0 0.0
    %3091 = vmatpush1.msra.mxu0 0.0
    %3092 = vmatprep.subr.mxu0 0.0
    %3093 = vmatpush1.msra.mxu0 0.0
    %3094 = vmatprep.subr.mxu0 0.0
    %3095 = vmatpush1.msra.mxu0 0.0
    %3096 = vmatprep.subr.mxu0 0.0
    %3097 = vmatpush1.msra.mxu0 0.0
    %3098 = vmatprep.subr.mxu0 0.0
    %3099 = vmatpush1.msra.mxu0 0.0
    %3100 = vmatprep.subr.mxu0 0.0
    %3101 = vmatpush1.msra.mxu0 0.0
    %3102 = vmatprep.subr.mxu0 0.0
    %3103 = vmatpush1.msra.mxu0 0.0
    %3104 = vmatprep.subr.mxu0 0.0
    %3105 = vmatpush1.msra.mxu0 0.0
    %3106 = vmatprep.subr.mxu0 0.0
    %3107 = vmatpush1.msra.mxu0 0.0
    %3108 = vmatprep.mubr.f32.mxu0 0.0
    %3109 = vmatmul.mubr.f32.gmra.mrb[0].mxu0 %v3042
    %v3110 = vpop.f32.mrb[0].mxu0
    %v3111 = vadd.f32 0.0, %v3110
    %v3112 = vpop.f32.mrb[0].mxu0
    %3113 = vdwg.mxu0
    %v3114 = vadd.f32 %v3036, %v3111
    %v3117 = vsel %vm2730, %v2703, %v2694
    %3118 = vrot.lane.b32.xlu0 %v3117, 32
    %v3119 = vpop.permute.xlu0 %3118
    %v3120 = vsel %vm985, %v3119, 0
    %3122 = vmatprep.subr.mxu0 0.0
    %3123 = vmatpush1.msra.mxu0 %v2724
    %3124 = vmatprep.subr.mxu0 0.0
    %3125 = vmatpush1.msra.mxu0 %v2725
    %3126 = vmatprep.subr.mxu0 0.0
    %3127 = vmatpush1.msra.mxu0 %v2726
    %3128 = vmatprep.subr.mxu0 0.0
    %3129 = vmatpush1.msra.mxu0 %v2727
    %3130 = vmatprep.subr.mxu0 0.0
    %3131 = vmatpush1.msra.mxu0 0.0
    %3132 = vmatprep.subr.mxu0 0.0
    %3133 = vmatpush1.msra.mxu0 0.0
    %3134 = vmatprep.subr.mxu0 0.0
    %3135 = vmatpush1.msra.mxu0 0.0
    %3136 = vmatprep.subr.mxu0 0.0
    %3137 = vmatpush1.msra.mxu0 0.0
    %3138 = vmatprep.subr.mxu0 0.0
    %3139 = vmatpush1.msra.mxu0 0.0
    %3140 = vmatprep.subr.mxu0 0.0
    %3141 = vmatpush1.msra.mxu0 0.0
    %3142 = vmatprep.subr.mxu0 0.0
    %3143 = vmatpush1.msra.mxu0 0.0
    %3144 = vmatprep.subr.mxu0 0.0
    %3145 = vmatpush1.msra.mxu0 0.0
    %3146 = vmatprep.subr.mxu0 0.0
    %3147 = vmatpush1.msra.mxu0 0.0
    %3148 = vmatprep.subr.mxu0 0.0
    %3149 = vmatpush1.msra.mxu0 0.0
    %3150 = vmatprep.subr.mxu0 0.0
    %3151 = vmatpush1.msra.mxu0 0.0
    %3152 = vmatprep.subr.mxu0 0.0
    %3153 = vmatpush1.msra.mxu0 0.0
    %3154 = vmatprep.subr.mxu0 0.0
    %3155 = vmatpush1.msra.mxu0 0.0
    %3156 = vmatprep.subr.mxu0 0.0
    %3157 = vmatpush1.msra.mxu0 0.0
    %3158 = vmatprep.subr.mxu0 0.0
    %3159 = vmatpush1.msra.mxu0 0.0
    %3160 = vmatprep.subr.mxu0 0.0
    %3161 = vmatpush1.msra.mxu0 0.0
    %3162 = vmatprep.subr.mxu0 0.0
    %3163 = vmatpush1.msra.mxu0 0.0
    %3164 = vmatprep.subr.mxu0 0.0
    %3165 = vmatpush1.msra.mxu0 0.0
    %3166 = vmatprep.subr.mxu0 0.0
    %3167 = vmatpush1.msra.mxu0 0.0
    %3168 = vmatprep.subr.mxu0 0.0
    %3169 = vmatpush1.msra.mxu0 0.0
    %3170 = vmatprep.subr.mxu0 0.0
    %3171 = vmatpush1.msra.mxu0 0.0
    %3172 = vmatprep.subr.mxu0 0.0
    %3173 = vmatpush1.msra.mxu0 0.0
    %3174 = vmatprep.subr.mxu0 0.0
    %3175 = vmatpush1.msra.mxu0 0.0
    %3176 = vmatprep.subr.mxu0 0.0
    %3177 = vmatpush1.msra.mxu0 0.0
    %3178 = vmatprep.subr.mxu0 0.0
    %3179 = vmatpush1.msra.mxu0 0.0
    %3180 = vmatprep.subr.mxu0 0.0
    %3181 = vmatpush1.msra.mxu0 0.0
    %3182 = vmatprep.subr.mxu0 0.0
    %3183 = vmatpush1.msra.mxu0 0.0
    %3184 = vmatprep.subr.mxu0 0.0
    %3185 = vmatpush1.msra.mxu0 0.0
    %3186 = vmatprep.mubr.f32.mxu0 0.0
    %3187 = vmatmul.mubr.f32.gmra.mrb[0].mxu0 %v3120
    %v3188 = vpop.f32.mrb[0].mxu0
    %v3189 = vadd.f32 0.0, %v3188
    %v3190 = vpop.f32.mrb[0].mxu0
    %3191 = vdwg.mxu0
    %v3192 = vadd.f32 %v3114, %v3189
    %v3193 = vld [vmem:[%s4] sm:$0x1]
    %v3195 = vlaneseq
    %v3196 = vshrl.u32 %v3195, 7
    %v3197 = vsub.s32 0, %v3196
    %v3198 = vrot.slane %v3193, %v3197
    %v3200 = vadd.f32 %v3192, %v3198
    %3201 = vst [vmem:[#allocation6] sm:$0x3] %v3200
    %v3202 = vld [vmem:[%s5] sm:$0xff]
    %v3203 = vld [vmem:[%s5 + $0x8] sm:$0xff]
    %v3204 = vld [vmem:[%s5 + $0x10] sm:$0xff]
    %v3205 = vld [vmem:[%s5 + $0x18] sm:$0xff]
    %v3206 = vld [vmem:[%s5 + $0x20] sm:$0xff]
    %v3207 = vld [vmem:[%s5 + $0x28] sm:$0xff]
    %v3208 = vld [vmem:[%s5 + $0x30] sm:$0xff]
    %v3209 = vld [vmem:[%s5 + $0x38] sm:$0xff]
    %v3210 = vld [vmem:[%s5 + $0x40] sm:$0xff]
    %v3211 = vld [vmem:[%s5 + $0x48] sm:$0xff]
    %v3212 = vld [vmem:[%s5 + $0x50] sm:$0xff]
    %v3213 = vld [vmem:[%s5 + $0x58] sm:$0xff]
    %v3214 = vld [vmem:[%s5 + $0x60] sm:$0xff]
    %v3215 = vld [vmem:[%s5 + $0x68] sm:$0xff]
    %v3216 = vld [vmem:[%s5 + $0x70] sm:$0xff]
    %v3217 = vld [vmem:[%s5 + $0x78] sm:$0xff]
    %v3218 = vld [vmem:[%s6] sm:$0x1]
    %v3220 = vlaneseq
    %v3221 = vshrl.u32 %v3220, 7
    %v3222 = vsub.s32 0, %v3221
    %v3223 = vrot.slane %v3218, %v3222
    %3225 = vmatprep.subr.mxu0 0.0
    %3226 = vmatpush1.msra.mxu0 %v3202
    %3227 = vmatprep.subr.mxu0 0.0
    %3228 = vmatpush1.msra.mxu0 %v3203
    %3229 = vmatprep.subr.mxu0 0.0
    %3230 = vmatpush1.msra.mxu0 %v3204
    %3231 = vmatprep.subr.mxu0 0.0
    %3232 = vmatpush1.msra.mxu0 %v3205
    %3233 = vmatprep.subr.mxu0 0.0
    %3234 = vmatpush1.msra.mxu0 %v3206
    %3235 = vmatprep.subr.mxu0 0.0
    %3236 = vmatpush1.msra.mxu0 %v3207
    %3237 = vmatprep.subr.mxu0 0.0
    %3238 = vmatpush1.msra.mxu0 %v3208
    %3239 = vmatprep.subr.mxu0 0.0
    %3240 = vmatpush1.msra.mxu0 %v3209
    %3241 = vmatprep.subr.mxu0 0.0
    %3242 = vmatpush1.msra.mxu0 %v3210
    %3243 = vmatprep.subr.mxu0 0.0
    %3244 = vmatpush1.msra.mxu0 %v3211
    %3245 = vmatprep.subr.mxu0 0.0
    %3246 = vmatpush1.msra.mxu0 %v3212
    %3247 = vmatprep.subr.mxu0 0.0
    %3248 = vmatpush1.msra.mxu0 %v3213
    %3249 = vmatprep.subr.mxu0 0.0
    %3250 = vmatpush1.msra.mxu0 %v3214
    %3251 = vmatprep.subr.mxu0 0.0
    %3252 = vmatpush1.msra.mxu0 %v3215
    %3253 = vmatprep.subr.mxu0 0.0
    %3254 = vmatpush1.msra.mxu0 %v3216
    %3255 = vmatprep.subr.mxu0 0.0
    %3256 = vmatpush1.msra.mxu0 %v3217
    %3257 = vmatprep.subr.mxu0 0.0
    %3258 = vmatpush1.msra.mxu0 0.0
    %3259 = vmatprep.subr.mxu0 0.0
    %3260 = vmatpush1.msra.mxu0 0.0
    %3261 = vmatprep.subr.mxu0 0.0
    %3262 = vmatpush1.msra.mxu0 0.0
    %3263 = vmatprep.subr.mxu0 0.0
    %3264 = vmatpush1.msra.mxu0 0.0
    %3265 = vmatprep.subr.mxu0 0.0
    %3266 = vmatpush1.msra.mxu0 0.0
    %3267 = vmatprep.subr.mxu0 0.0
    %3268 = vmatpush1.msra.mxu0 0.0
    %3269 = vmatprep.subr.mxu0 0.0
    %3270 = vmatpush1.msra.mxu0 0.0
    %3271 = vmatprep.subr.mxu0 0.0
    %3272 = vmatpush1.msra.mxu0 0.0
    %3273 = vmatprep.subr.mxu0 0.0
    %3274 = vmatpush1.msra.mxu0 0.0
    %3275 = vmatprep.subr.mxu0 0.0
    %3276 = vmatpush1.msra.mxu0 0.0
    %3277 = vmatprep.subr.mxu0 0.0
    %3278 = vmatpush1.msra.mxu0 0.0
    %3279 = vmatprep.subr.mxu0 0.0
    %3280 = vmatpush1.msra.mxu0 0.0
    %3281 = vmatprep.subr.mxu0 0.0
    %3282 = vmatpush1.msra.mxu0 0.0
    %3283 = vmatprep.subr.mxu0 0.0
    %3284 = vmatpush1.msra.mxu0 0.0
    %3285 = vmatprep.subr.mxu0 0.0
    %3286 = vmatpush1.msra.mxu0 0.0
    %3287 = vmatprep.subr.mxu0 0.0
    %3288 = vmatpush1.msra.mxu0 0.0
    %3289 = vmatprep.mubr.f32.mxu0 0.0
    %3290 = vmatmul.mubr.f32.gmra.mrb[0].mxu0 %v3200
    %v3291 = vpop.f32.mrb[0].mxu0
    %v3292 = vadd.f32 %v3223, %v3291
    %v3293 = vpop.f32.mrb[0].mxu0
    %3294 = vdwg.mxu0
    %v3295 = vmax.f32 %v3292, 0.0
    %v3296 = vld [vmem:[%s7] sm:$0xff]
    %v3297 = vld [vmem:[%s7 + $0x8] sm:$0xff]
    %v3298 = vld [vmem:[%s7 + $0x10] sm:$0xff]
    %v3299 = vld [vmem:[%s7 + $0x18] sm:$0xff]
    %v3300 = vld [vmem:[%s7 + $0x20] sm:$0xff]
    %v3301 = vld [vmem:[%s7 + $0x28] sm:$0xff]
    %v3302 = vld [vmem:[%s7 + $0x30] sm:$0xff]
    %v3303 = vld [vmem:[%s7 + $0x38] sm:$0xff]
    %v3304 = vld [vmem:[%s8] sm:$0x1]
    %v3306 = vlaneseq
    %v3307 = vshrl.u32 %v3306, 7
    %v3308 = vsub.s32 0, %v3307
    %v3309 = vrot.slane %v3304, %v3308
    %vm3311 = vcmask 523264
    %v3313 = vsel %vm3311, %v3295, 0
    %3315 = vmatprep.subr.mxu0 0.0
    %3316 = vmatpush1.msra.mxu0 %v3296
    %3317 = vmatprep.subr.mxu0 0.0
    %3318 = vmatpush1.msra.mxu0 %v3297
    %3319 = vmatprep.subr.mxu0 0.0
    %3320 = vmatpush1.msra.mxu0 %v3298
    %3321 = vmatprep.subr.mxu0 0.0
    %3322 = vmatpush1.msra.mxu0 %v3299
    %3323 = vmatprep.subr.mxu0 0.0
    %3324 = vmatpush1.msra.mxu0 %v3300
    %3325 = vmatprep.subr.mxu0 0.0
    %3326 = vmatpush1.msra.mxu0 %v3301
    %3327 = vmatprep.subr.mxu0 0.0
    %3328 = vmatpush1.msra.mxu0 %v3302
    %3329 = vmatprep.subr.mxu0 0.0
    %3330 = vmatpush1.msra.mxu0 %v3303
    %3331 = vmatprep.subr.mxu0 0.0
    %3332 = vmatpush1.msra.mxu0 0.0
    %3333 = vmatprep.subr.mxu0 0.0
    %3334 = vmatpush1.msra.mxu0 0.0
    %3335 = vmatprep.subr.mxu0 0.0
    %3336 = vmatpush1.msra.mxu0 0.0
    %3337 = vmatprep.subr.mxu0 0.0
    %3338 = vmatpush1.msra.mxu0 0.0
    %3339 = vmatprep.subr.mxu0 0.0
    %3340 = vmatpush1.msra.mxu0 0.0
    %3341 = vmatprep.subr.mxu0 0.0
    %3342 = vmatpush1.msra.mxu0 0.0
    %3343 = vmatprep.subr.mxu0 0.0
    %3344 = vmatpush1.msra.mxu0 0.0
    %3345 = vmatprep.subr.mxu0 0.0
    %3346 = vmatpush1.msra.mxu0 0.0
    %3347 = vmatprep.subr.mxu0 0.0
    %3348 = vmatpush1.msra.mxu0 0.0
    %3349 = vmatprep.subr.mxu0 0.0
    %3350 = vmatpush1.msra.mxu0 0.0
    %3351 = vmatprep.subr.mxu0 0.0
    %3352 = vmatpush1.msra.mxu0 0.0
    %3353 = vmatprep.subr.mxu0 0.0
    %3354 = vmatpush1.msra.mxu0 0.0
    %3355 = vmatprep.subr.mxu0 0.0
    %3356 = vmatpush1.msra.mxu0 0.0
    %3357 = vmatprep.subr.mxu0 0.0
    %3358 = vmatpush1.msra.mxu0 0.0
    %3359 = vmatprep.subr.mxu0 0.0
    %3360 = vmatpush1.msra.mxu0 0.0
    %3361 = vmatprep.subr.mxu0 0.0
    %3362 = vmatpush1.msra.mxu0 0.0
    %3363 = vmatprep.subr.mxu0 0.0
    %3364 = vmatpush1.msra.mxu0 0.0
    %3365 = vmatprep.subr.mxu0 0.0
    %3366 = vmatpush1.msra.mxu0 0.0
    %3367 = vmatprep.subr.mxu0 0.0
    %3368 = vmatpush1.msra.mxu0 0.0
    %3369 = vmatprep.subr.mxu0 0.0
    %3370 = vmatpush1.msra.mxu0 0.0
    %3371 = vmatprep.subr.mxu0 0.0
    %3372 = vmatpush1.msra.mxu0 0.0
    %3373 = vmatprep.subr.mxu0 0.0
    %3374 = vmatpush1.msra.mxu0 0.0
    %3375 = vmatprep.subr.mxu0 0.0
    %3376 = vmatpush1.msra.mxu0 0.0
    %3377 = vmatprep.subr.mxu0 0.0
    %3378 = vmatpush1.msra.mxu0 0.0
    %3379 = vmatprep.mubr.f32.mxu0 0.0
    %3380 = vmatmul.mubr.f32.gmra.mrb[0].mxu0 %v3313
    %v3381 = vpop.f32.mrb[0].mxu0
    %v3382 = vadd.f32 %v3309, %v3381
    %v3383 = vpop.f32.mrb[0].mxu0
    %3384 = vdwg.mxu0
    %vm3385 = vcmask 9216
    %3386 = vst.msk [vmem:[#allocation5] sm:$0x3] %vm3385, %v3382
    // Predicated region
    $region42: #{textcnn_forward.1} parent=1 // pred_check
      _
    $region43: #{textcnn_forward.1} parent=1 // pred_check_branch
      %3388 = sbr.rel (0) target = $region45
    $region44: #{textcnn_forward.1} parent=1 // pred_region
      %s3390 = ssub.s32 32, 32
      %3391 = vsyncadd [#allocation4], %s3390
      %s3393 = sshll.u32 [#allocation5], 4
      %s3394 = int_to_ptr.vmem [resolvable:$true] %s3393
      %3396 = dma.vmem_to_hbm [thread:$0]  %s3394, 32, %s9, [#allocation4]
    $region45: #{textcnn_forward.1} parent=1 // pred_fallthru
      _
    // Predicated region
    $region46: #{textcnn_forward.1} parent=1 // pred_check
      _
    $region47: #{textcnn_forward.1} parent=1 // pred_check_branch
      %3398 = sbr.rel (0) target = $region49
    $region48: #{textcnn_forward.1} parent=1 // pred_region
      %s3400 = ssub.s32 32, 32
      %3401 = vsyncadd [#allocation7], %s3400
      %s3403 = sshll.u32 [#allocation6], 4
      %s3404 = int_to_ptr.vmem [resolvable:$true] %s3403
      %3406 = dma.vmem_to_hbm [thread:$0]  %s3404, 32, %s10, [#allocation7]
    $region49: #{textcnn_forward.1} parent=1 // pred_fallthru
      _
    // Predicated region
    $region50: #{textcnn_forward.1} parent=1 // pred_check
      _
    $region51: #{textcnn_forward.1} parent=1 // pred_check_branch
      %3408 = sbr.rel (0) target = $region53
    $region52: #{textcnn_forward.1} parent=1 // pred_region
      %3409 = dma.done [#allocation4], 32
    $region53: #{textcnn_forward.1} parent=1 // pred_fallthru
      _
    // Predicated region
    $region54: #{textcnn_forward.1} parent=1 // pred_check
      _
    $region55: #{textcnn_forward.1} parent=1 // pred_check_branch
      %3411 = sbr.rel (0) target = $region57
    $region56: #{textcnn_forward.1} parent=1 // pred_region
      %3412 = dma.done [#allocation7], 32
    $region57: #{textcnn_forward.1} parent=1 // pred_fallthru
      _
    %3413 = vsyncpa [#allocation3], 1
    %3414 = vsyncpa [#allocation4], 1
    %3415 = vsyncpa [#allocation7], 1

</llo_original>
